<compile_context>
chip_gen: v6e
topology: v6e:2x2x1
jax: 0.10.0
libtpu: 0.0.40
codegen_flags: <defaults>
</compile_context>

<pallas_src>
import functools
import jax
import jax.numpy as jnp
from jax.experimental import pallas as pl
from jax.experimental.pallas import tpu as pltpu  # noqa: F401  (kept for parity)

H = 128            # LSTM hidden size
IN_DIM = 3         # LSTM input size
D1, D2, D3 = 500, 100, 1
D1P, D2P = 512, 128  # lane-padded MLP hidden dims (zero padding, math unchanged)


# ----------------------------------------------------------------------------
# Fused kernel: interleaved 2-layer LSTM recurrence -> MLP head, one invocation.
# ----------------------------------------------------------------------------
def fused_sp_kernel(x_ref, wih0_ref, whh0_ref, b0_ref, w1cat_ref, b1l_ref,
                    w1_ref, b1_ref, w2_ref, b2_ref, w3_ref, b3_ref,
                    out_ref, *, seq_len, batch):
    T, B = seq_len, batch

    # Per-lane scale so one tanh covers all 4 gates:
    #   sigmoid(x) = 0.5*(1 + tanh(0.5*x))  for i/f/o gates, tanh(x) for the g gate.
    lane = jax.lax.broadcasted_iota(jnp.int32, (1, 4 * H), 1)
    gate_scale = jnp.where((lane >= 2 * H) & (lane < 3 * H),
                           jnp.float32(1.0), jnp.float32(0.5))

    def gate_acts(pre):                      # pre: (B, 4H) gate pre-activations
        t_all = jnp.tanh(pre * gate_scale)   # single EUP call for all 4 gates
        i_g = 0.5 * (t_all[:, 0 * H:1 * H] + 1.0)
        f_g = 0.5 * (t_all[:, 1 * H:2 * H] + 1.0)
        g_g = t_all[:, 2 * H:3 * H]
        o_g = 0.5 * (t_all[:, 3 * H:4 * H] + 1.0)
        return i_g, f_g, g_g, o_g

    # Layer-0 input projection for all T*B rows in one MXU matmul (K = 3 is tiny).
    xp0 = jnp.dot(x_ref[...], wih0_ref[...],
                  preferred_element_type=jnp.float32) + b0_ref[...]      # (T*B, 4H)

    whh0 = whh0_ref[...]      # (H, 4H)   loop-invariant recurrent weight, layer 0
    w1cat = w1cat_ref[...]    # (2H, 4H)  [wih1; whh1] fused weight, layer 1
    b1l = b1l_ref[...]        # (1, 4H)

    h0 = jnp.zeros((B, H), jnp.float32)
    c0 = jnp.zeros((B, H), jnp.float32)
    h1 = jnp.zeros((B, H), jnp.float32)
    c1 = jnp.zeros((B, H), jnp.float32)
    h1_steps = []

    # Fully unrolled, wavefront-interleaved recurrence; h/c stay in vregs.
    for t in range(T):
        # ---- layer 0, step t ----
        g0 = xp0[t * B:(t + 1) * B, :] + jnp.dot(
            h0, whh0, preferred_element_type=jnp.float32)                # (B, 4H)
        i0, f0, gg0, o0 = gate_acts(g0)
        c0 = f0 * c0 + i0 * gg0
        h0 = o0 * jnp.tanh(c0)

        # ---- layer 1, step t: fused [h0_t, h1_{t-1}] @ [wih1; whh1] ----
        g1 = jnp.dot(jnp.concatenate([h0, h1], axis=1), w1cat,
                     preferred_element_type=jnp.float32) + b1l            # (B, 4H)
        i1, f1, gg1, o1 = gate_acts(g1)
        c1 = f1 * c1 + i1 * gg1
        h1 = o1 * jnp.tanh(c1)
        h1_steps.append(h1)

    # ---- MLP head: 128 -> 512(pad 500) -> ReLU -> 128(pad 100) -> ReLU -> 1 ----
    r = jnp.concatenate(h1_steps, axis=0)                                 # (T*B, H)
    z1 = jnp.maximum(
        jnp.dot(r, w1_ref[...], preferred_element_type=jnp.float32) + b1_ref[...],
        0.0)                                                              # (T*B, 512)
    z2 = jnp.maximum(
        jnp.dot(z1, w2_ref[...], preferred_element_type=jnp.float32) + b2_ref[...],
        0.0)                                                              # (T*B, 128)
    # Final 100->1 layer as a trans_b dot: (1,128) x (T*B,128)^T -> lane-dense (1,T*B).
    yrow = jax.lax.dot_general(w3_ref[...], z2, (((1,), (1,)), ((), ())),
                               preferred_element_type=jnp.float32)        # (1, T*B)
    out_ref[...] = yrow + b3_ref[...]


# ----------------------------------------------------------------------------
# One-time parameter prep (outside the per-call jitted path): pad + concat.
# ----------------------------------------------------------------------------
def prepare_params(params):
    return {
        "wih0": params["wih0"],
        "whh0": params["whh0"],
        "b0": params["b0"],
        # fused layer-1 weight: rows = [wih1; whh1]  ->  (2H, 4H)
        "w1cat": jnp.concatenate([params["wih1"], params["whh1"]], axis=0),
        "b1l": params["b1_lstm"],
        "w1": jnp.pad(params["w1"], ((0, 0), (0, D1P - D1))),
        "b1": jnp.pad(params["b1"], ((0, 0), (0, D1P - D1))),
        "w2": jnp.pad(params["w2"], ((0, D1P - D1), (0, D2P - D2))),
        "b2": jnp.pad(params["b2"], ((0, 0), (0, D2P - D2))),
        "w3": jnp.pad(params["w3"].reshape(1, D2), ((0, 0), (0, D2P - D2))),
        "b3": params["b3"],
    }


def sp_forward(x, p):
    # x: (T, B, 3)  ->  (T, B, 1)
    T, B, _ = x.shape
    kernel = functools.partial(fused_sp_kernel, seq_len=T, batch=B)
    out = pl.pallas_call(
        kernel,
        out_shape=jax.ShapeDtypeStruct((1, T * B), jnp.float32),
        # No grid: single invocation, whole arrays (~1.3 MiB) resident in VMEM
        # (fits within default scoped VMEM on v5e/v6e/v7x).
    )(x.reshape(T * B, IN_DIM),
      p["wih0"], p["whh0"], p["b0"], p["w1cat"], p["b1l"],
      p["w1"], p["b1"], p["w2"], p["b2"], p["w3"], p["b3"])
    return out.reshape(T, B, D3)


sp_forward = jax.jit(sp_forward)


# ----------------------------------------------------------------------------
# Parameter init (deterministic, PyTorch-style uniform(-1/sqrt(fan), 1/sqrt(fan)))
# ----------------------------------------------------------------------------
def init_params(key):
    def uniform(key, shape, fan):
        bound = 1.0 / jnp.sqrt(jnp.float32(fan))
        return jax.random.uniform(key, shape, jnp.float32, -bound, bound)

    keys = jax.random.split(key, 16)
    params = {}
    # LSTM layer 0: input IN_DIM -> H   (weights stored transposed: (in, 4H))
    params["wih0"] = uniform(keys[0], (IN_DIM, 4 * H), H)
    params["whh0"] = uniform(keys[1], (H, 4 * H), H)
    params["b0"] = (uniform(keys[2], (1, 4 * H), H)
                    + uniform(keys[3], (1, 4 * H), H))      # b_ih + b_hh
    # LSTM layer 1: input H -> H
    params["wih1"] = uniform(keys[4], (H, 4 * H), H)
    params["whh1"] = uniform(keys[5], (H, 4 * H), H)
    params["b1_lstm"] = (uniform(keys[6], (1, 4 * H), H)
                         + uniform(keys[7], (1, 4 * H), H))
    # Linear layers (stored transposed: (in, out))
    params["w1"] = uniform(keys[8], (H, D1), H)
    params["b1"] = uniform(keys[9], (1, D1), H)
    params["w2"] = uniform(keys[10], (D1, D2), D1)
    params["b2"] = uniform(keys[11], (1, D2), D1)
    params["w3"] = uniform(keys[12], (D2, D3), D2)
    params["b3"] = uniform(keys[13], (1, D3), D2)
    return params


# ----------------------------------------------------------------------------
# Pure-JAX reference (same math) for a correctness check.
# ----------------------------------------------------------------------------
def sp_reference(x, params):
    T, B, _ = x.shape

    def lstm_layer(xs, wih, whh, b):
        def step(carry, x_t):
            h, c = carry
            gates = x_t @ wih + h @ whh + b
            i = jax.nn.sigmoid(gates[:, 0 * H:1 * H])
            f = jax.nn.sigmoid(gates[:, 1 * H:2 * H])
            g = jnp.tanh(gates[:, 2 * H:3 * H])
            o = jax.nn.sigmoid(gates[:, 3 * H:4 * H])
            c = f * c + i * g
            h = o * jnp.tanh(c)
            return (h, c), h
        init = (jnp.zeros((B, H), jnp.float32), jnp.zeros((B, H), jnp.float32))
        _, hs = jax.lax.scan(step, init, xs)
        return hs

    h0 = lstm_layer(x, params["wih0"], params["whh0"], params["b0"])
    h1 = lstm_layer(h0, params["wih1"], params["whh1"], params["b1_lstm"])
    r = h1.reshape(T * B, H)
    z1 = jnp.maximum(r @ params["w1"] + params["b1"], 0.0)
    z2 = jnp.maximum(z1 @ params["w2"] + params["b2"], 0.0)
    return (z2 @ params["w3"] + params["b3"]).reshape(T, B, D3)


if __name__ == "__main__":
    key = jax.random.PRNGKey(0)
    k_x, k_p = jax.random.split(key)
    T, B = 8, 2                               # small seq / batch, input feature dim = 3
    x = jax.random.normal(k_x, (T, B, IN_DIM), dtype=jnp.float32)
    params = init_params(k_p)
    prepped = prepare_params(params)          # one-time pad / concat, outside jit

    y = sp_forward(x, prepped)
    jax.block_until_ready(y)
    assert y.shape == (T, B, D3)

    with jax.default_matmul_precision("highest"):
        y_ref = sp_reference(x, params)
    err = float(jnp.max(jnp.abs(y - y_ref)))
    assert err < 5e-3, f"mismatch vs reference: max abs err = {err}"

    print("KERNEL_OK")
</pallas_src>

<mosaic_0001>
module attributes {stable_mosaic.version = 11 : i64} {
  func.func @fused_sp_kernel(%arg0: memref<16x3xf32, #tpu.memory_space<vmem>>, %arg1: memref<3x512xf32, #tpu.memory_space<vmem>>, %arg2: memref<128x512xf32, #tpu.memory_space<vmem>>, %arg3: memref<1x512xf32, #tpu.memory_space<vmem>>, %arg4: memref<256x512xf32, #tpu.memory_space<vmem>>, %arg5: memref<1x512xf32, #tpu.memory_space<vmem>>, %arg6: memref<128x512xf32, #tpu.memory_space<vmem>>, %arg7: memref<1x512xf32, #tpu.memory_space<vmem>>, %arg8: memref<512x128xf32, #tpu.memory_space<vmem>>, %arg9: memref<1x128xf32, #tpu.memory_space<vmem>>, %arg10: memref<1x128xf32, #tpu.memory_space<vmem>>, %arg11: memref<1x1xf32, #tpu.memory_space<vmem>>, %arg12: memref<1x16xf32, #tpu.memory_space<vmem>>) attributes {dimension_semantics = [], scalar_prefetch = 0 : i64, scratch_operands = 0 : i64, tpu.core_type = #tpu.core_type<tc>} {
    %0 = tpu.iota {dimensions = array<i32: 1>} : vector<1x512xi32>
    %c256_i32 = arith.constant 256 : i32
    %1 = vector.broadcast %c256_i32 : i32 to vector<1x512xi32>
    %2 = arith.cmpi sge, %0, %1 : vector<1x512xi32>
    %c384_i32 = arith.constant 384 : i32
    %3 = vector.broadcast %c384_i32 : i32 to vector<1x512xi32>
    %4 = arith.cmpi slt, %0, %3 : vector<1x512xi32>
    %5 = arith.andi %2, %4 : vector<1x512xi1>
    %cst = arith.constant 1.000000e+00 : f32
    %cst_0 = arith.constant 5.000000e-01 : f32
    %6 = vector.broadcast %cst : f32 to vector<1x512xf32>
    %7 = vector.broadcast %cst_0 : f32 to vector<1x512xf32>
    %8 = arith.select %5, %6, %7 : vector<1x512xi1>, vector<1x512xf32>
    %c0 = arith.constant 0 : index
    %c0_1 = arith.constant 0 : index
    %9 = vector.load %arg0[%c0, %c0_1] : memref<16x3xf32, #tpu.memory_space<vmem>>, vector<16x3xf32>
    %c0_2 = arith.constant 0 : index
    %c0_3 = arith.constant 0 : index
    %10 = vector.load %arg1[%c0_2, %c0_3] : memref<3x512xf32, #tpu.memory_space<vmem>>, vector<3x512xf32>
    %cst_4 = arith.constant dense<0.000000e+00> : vector<16x512xf32>
    %11 = tpu.matmul %9, %10, %cst_4 {dimension_numbers = #tpu.dot_dimension_numbers<[1], [0], [0], [1], [0, 0, 1, 1], [], []>} : vector<16x3xf32>, vector<3x512xf32>, vector<16x512xf32> -> vector<16x512xf32>
    %c0_5 = arith.constant 0 : index
    %c0_6 = arith.constant 0 : index
    %12 = vector.load %arg3[%c0_5, %c0_6] : memref<1x512xf32, #tpu.memory_space<vmem>>, vector<1x512xf32>
    %13 = vector.broadcast %12 : vector<1x512xf32> to vector<16x512xf32>
    %14 = arith.addf %11, %13 : vector<16x512xf32>
    %c0_7 = arith.constant 0 : index
    %c0_8 = arith.constant 0 : index
    %15 = vector.load %arg2[%c0_7, %c0_8] : memref<128x512xf32, #tpu.memory_space<vmem>>, vector<128x512xf32>
    %c0_9 = arith.constant 0 : index
    %c0_10 = arith.constant 0 : index
    %16 = vector.load %arg4[%c0_9, %c0_10] : memref<256x512xf32, #tpu.memory_space<vmem>>, vector<256x512xf32>
    %c0_11 = arith.constant 0 : index
    %c0_12 = arith.constant 0 : index
    %17 = vector.load %arg5[%c0_11, %c0_12] : memref<1x512xf32, #tpu.memory_space<vmem>>, vector<1x512xf32>
    %cst_13 = arith.constant 0.000000e+00 : f32
    %18 = vector.broadcast %cst_13 : f32 to vector<2x128xf32>
    %cst_14 = arith.constant 0.000000e+00 : f32
    %19 = vector.broadcast %cst_14 : f32 to vector<2x128xf32>
    %cst_15 = arith.constant 0.000000e+00 : f32
    %20 = vector.broadcast %cst_15 : f32 to vector<2x128xf32>
    %cst_16 = arith.constant 0.000000e+00 : f32
    %21 = vector.broadcast %cst_16 : f32 to vector<2x128xf32>
    %22 = vector.extract_strided_slice %14 {offsets = [0, 0], sizes = [2, 512], strides = [1, 1]} : vector<16x512xf32> to vector<2x512xf32>
    %cst_17 = arith.constant dense<0.000000e+00> : vector<2x512xf32>
    %23 = tpu.matmul %18, %15, %cst_17 {dimension_numbers = #tpu.dot_dimension_numbers<[1], [0], [0], [1], [0, 0, 1, 1], [], []>} : vector<2x128xf32>, vector<128x512xf32>, vector<2x512xf32> -> vector<2x512xf32>
    %24 = arith.addf %22, %23 : vector<2x512xf32>
    %25 = vector.broadcast %8 : vector<1x512xf32> to vector<2x512xf32>
    %26 = arith.mulf %24, %25 : vector<2x512xf32>
    %27 = math.tanh %26 : vector<2x512xf32>
    %28 = vector.extract_strided_slice %27 {offsets = [0, 0], sizes = [2, 128], strides = [1, 1]} : vector<2x512xf32> to vector<2x128xf32>
    %cst_18 = arith.constant 1.000000e+00 : f32
    %29 = vector.broadcast %cst_18 : f32 to vector<2x128xf32>
    %30 = arith.addf %28, %29 : vector<2x128xf32>
    %cst_19 = arith.constant 5.000000e-01 : f32
    %31 = vector.broadcast %cst_19 : f32 to vector<2x128xf32>
    %32 = arith.mulf %31, %30 : vector<2x128xf32>
    %33 = vector.extract_strided_slice %27 {offsets = [0, 128], sizes = [2, 128], strides = [1, 1]} : vector<2x512xf32> to vector<2x128xf32>
    %cst_20 = arith.constant 1.000000e+00 : f32
    %34 = vector.broadcast %cst_20 : f32 to vector<2x128xf32>
    %35 = arith.addf %33, %34 : vector<2x128xf32>
    %cst_21 = arith.constant 5.000000e-01 : f32
    %36 = vector.broadcast %cst_21 : f32 to vector<2x128xf32>
    %37 = arith.mulf %36, %35 : vector<2x128xf32>
    %38 = vector.extract_strided_slice %27 {offsets = [0, 256], sizes = [2, 128], strides = [1, 1]} : vector<2x512xf32> to vector<2x128xf32>
    %39 = vector.extract_strided_slice %27 {offsets = [0, 384], sizes = [2, 128], strides = [1, 1]} : vector<2x512xf32> to vector<2x128xf32>
    %cst_22 = arith.constant 1.000000e+00 : f32
    %40 = vector.broadcast %cst_22 : f32 to vector<2x128xf32>
    %41 = arith.addf %39, %40 : vector<2x128xf32>
    %cst_23 = arith.constant 5.000000e-01 : f32
    %42 = vector.broadcast %cst_23 : f32 to vector<2x128xf32>
    %43 = arith.mulf %42, %41 : vector<2x128xf32>
    %44 = arith.mulf %37, %19 : vector<2x128xf32>
    %45 = arith.mulf %32, %38 : vector<2x128xf32>
    %46 = arith.addf %44, %45 : vector<2x128xf32>
    %47 = math.tanh %46 : vector<2x128xf32>
    %48 = arith.mulf %43, %47 : vector<2x128xf32>
    %49 = tpu.concatenate %48, %20 in 1 : vector<2x128xf32>, vector<2x128xf32> -> vector<2x256xf32>
    %cst_24 = arith.constant dense<0.000000e+00> : vector<2x512xf32>
    %50 = tpu.matmul %49, %16, %cst_24 {dimension_numbers = #tpu.dot_dimension_numbers<[1], [0], [0], [1], [0, 0, 1, 1], [], []>} : vector<2x256xf32>, vector<256x512xf32>, vector<2x512xf32> -> vector<2x512xf32>
    %51 = vector.broadcast %17 : vector<1x512xf32> to vector<2x512xf32>
    %52 = arith.addf %50, %51 : vector<2x512xf32>
    %53 = vector.broadcast %8 : vector<1x512xf32> to vector<2x512xf32>
    %54 = arith.mulf %52, %53 : vector<2x512xf32>
    %55 = math.tanh %54 : vector<2x512xf32>
    %56 = vector.extract_strided_slice %55 {offsets = [0, 0], sizes = [2, 128], strides = [1, 1]} : vector<2x512xf32> to vector<2x128xf32>
    %cst_25 = arith.constant 1.000000e+00 : f32
    %57 = vector.broadcast %cst_25 : f32 to vector<2x128xf32>
    %58 = arith.addf %56, %57 : vector<2x128xf32>
    %cst_26 = arith.constant 5.000000e-01 : f32
    %59 = vector.broadcast %cst_26 : f32 to vector<2x128xf32>
    %60 = arith.mulf %59, %58 : vector<2x128xf32>
    %61 = vector.extract_strided_slice %55 {offsets = [0, 128], sizes = [2, 128], strides = [1, 1]} : vector<2x512xf32> to vector<2x128xf32>
    %cst_27 = arith.constant 1.000000e+00 : f32
    %62 = vector.broadcast %cst_27 : f32 to vector<2x128xf32>
    %63 = arith.addf %61, %62 : vector<2x128xf32>
    %cst_28 = arith.constant 5.000000e-01 : f32
    %64 = vector.broadcast %cst_28 : f32 to vector<2x128xf32>
    %65 = arith.mulf %64, %63 : vector<2x128xf32>
    %66 = vector.extract_strided_slice %55 {offsets = [0, 256], sizes = [2, 128], strides = [1, 1]} : vector<2x512xf32> to vector<2x128xf32>
    %67 = vector.extract_strided_slice %55 {offsets = [0, 384], sizes = [2, 128], strides = [1, 1]} : vector<2x512xf32> to vector<2x128xf32>
    %cst_29 = arith.constant 1.000000e+00 : f32
    %68 = vector.broadcast %cst_29 : f32 to vector<2x128xf32>
    %69 = arith.addf %67, %68 : vector<2x128xf32>
    %cst_30 = arith.constant 5.000000e-01 : f32
    %70 = vector.broadcast %cst_30 : f32 to vector<2x128xf32>
    %71 = arith.mulf %70, %69 : vector<2x128xf32>
    %72 = arith.mulf %65, %21 : vector<2x128xf32>
    %73 = arith.mulf %60, %66 : vector<2x128xf32>
    %74 = arith.addf %72, %73 : vector<2x128xf32>
    %75 = math.tanh %74 : vector<2x128xf32>
    %76 = arith.mulf %71, %75 : vector<2x128xf32>
    %77 = vector.extract_strided_slice %14 {offsets = [2, 0], sizes = [2, 512], strides = [1, 1]} : vector<16x512xf32> to vector<2x512xf32>
    %cst_31 = arith.constant dense<0.000000e+00> : vector<2x512xf32>
    %78 = tpu.matmul %48, %15, %cst_31 {dimension_numbers = #tpu.dot_dimension_numbers<[1], [0], [0], [1], [0, 0, 1, 1], [], []>} : vector<2x128xf32>, vector<128x512xf32>, vector<2x512xf32> -> vector<2x512xf32>
    %79 = arith.addf %77, %78 : vector<2x512xf32>
    %80 = vector.broadcast %8 : vector<1x512xf32> to vector<2x512xf32>
    %81 = arith.mulf %79, %80 : vector<2x512xf32>
    %82 = math.tanh %81 : vector<2x512xf32>
    %83 = vector.extract_strided_slice %82 {offsets = [0, 0], sizes = [2, 128], strides = [1, 1]} : vector<2x512xf32> to vector<2x128xf32>
    %cst_32 = arith.constant 1.000000e+00 : f32
    %84 = vector.broadcast %cst_32 : f32 to vector<2x128xf32>
    %85 = arith.addf %83, %84 : vector<2x128xf32>
    %cst_33 = arith.constant 5.000000e-01 : f32
    %86 = vector.broadcast %cst_33 : f32 to vector<2x128xf32>
    %87 = arith.mulf %86, %85 : vector<2x128xf32>
    %88 = vector.extract_strided_slice %82 {offsets = [0, 128], sizes = [2, 128], strides = [1, 1]} : vector<2x512xf32> to vector<2x128xf32>
    %cst_34 = arith.constant 1.000000e+00 : f32
    %89 = vector.broadcast %cst_34 : f32 to vector<2x128xf32>
    %90 = arith.addf %88, %89 : vector<2x128xf32>
    %cst_35 = arith.constant 5.000000e-01 : f32
    %91 = vector.broadcast %cst_35 : f32 to vector<2x128xf32>
    %92 = arith.mulf %91, %90 : vector<2x128xf32>
    %93 = vector.extract_strided_slice %82 {offsets = [0, 256], sizes = [2, 128], strides = [1, 1]} : vector<2x512xf32> to vector<2x128xf32>
    %94 = vector.extract_strided_slice %82 {offsets = [0, 384], sizes = [2, 128], strides = [1, 1]} : vector<2x512xf32> to vector<2x128xf32>
    %cst_36 = arith.constant 1.000000e+00 : f32
    %95 = vector.broadcast %cst_36 : f32 to vector<2x128xf32>
    %96 = arith.addf %94, %95 : vector<2x128xf32>
    %cst_37 = arith.constant 5.000000e-01 : f32
    %97 = vector.broadcast %cst_37 : f32 to vector<2x128xf32>
    %98 = arith.mulf %97, %96 : vector<2x128xf32>
    %99 = arith.mulf %92, %46 : vector<2x128xf32>
    %100 = arith.mulf %87, %93 : vector<2x128xf32>
    %101 = arith.addf %99, %100 : vector<2x128xf32>
    %102 = math.tanh %101 : vector<2x128xf32>
    %103 = arith.mulf %98, %102 : vector<2x128xf32>
    %104 = tpu.concatenate %103, %76 in 1 : vector<2x128xf32>, vector<2x128xf32> -> vector<2x256xf32>
    %cst_38 = arith.constant dense<0.000000e+00> : vector<2x512xf32>
    %105 = tpu.matmul %104, %16, %cst_38 {dimension_numbers = #tpu.dot_dimension_numbers<[1], [0], [0], [1], [0, 0, 1, 1], [], []>} : vector<2x256xf32>, vector<256x512xf32>, vector<2x512xf32> -> vector<2x512xf32>
    %106 = vector.broadcast %17 : vector<1x512xf32> to vector<2x512xf32>
    %107 = arith.addf %105, %106 : vector<2x512xf32>
    %108 = vector.broadcast %8 : vector<1x512xf32> to vector<2x512xf32>
    %109 = arith.mulf %107, %108 : vector<2x512xf32>
    %110 = math.tanh %109 : vector<2x512xf32>
    %111 = vector.extract_strided_slice %110 {offsets = [0, 0], sizes = [2, 128], strides = [1, 1]} : vector<2x512xf32> to vector<2x128xf32>
    %cst_39 = arith.constant 1.000000e+00 : f32
    %112 = vector.broadcast %cst_39 : f32 to vector<2x128xf32>
    %113 = arith.addf %111, %112 : vector<2x128xf32>
    %cst_40 = arith.constant 5.000000e-01 : f32
    %114 = vector.broadcast %cst_40 : f32 to vector<2x128xf32>
    %115 = arith.mulf %114, %113 : vector<2x128xf32>
    %116 = vector.extract_strided_slice %110 {offsets = [0, 128], sizes = [2, 128], strides = [1, 1]} : vector<2x512xf32> to vector<2x128xf32>
    %cst_41 = arith.constant 1.000000e+00 : f32
    %117 = vector.broadcast %cst_41 : f32 to vector<2x128xf32>
    %118 = arith.addf %116, %117 : vector<2x128xf32>
    %cst_42 = arith.constant 5.000000e-01 : f32
    %119 = vector.broadcast %cst_42 : f32 to vector<2x128xf32>
    %120 = arith.mulf %119, %118 : vector<2x128xf32>
    %121 = vector.extract_strided_slice %110 {offsets = [0, 256], sizes = [2, 128], strides = [1, 1]} : vector<2x512xf32> to vector<2x128xf32>
    %122 = vector.extract_strided_slice %110 {offsets = [0, 384], sizes = [2, 128], strides = [1, 1]} : vector<2x512xf32> to vector<2x128xf32>
    %cst_43 = arith.constant 1.000000e+00 : f32
    %123 = vector.broadcast %cst_43 : f32 to vector<2x128xf32>
    %124 = arith.addf %122, %123 : vector<2x128xf32>
    %cst_44 = arith.constant 5.000000e-01 : f32
    %125 = vector.broadcast %cst_44 : f32 to vector<2x128xf32>
    %126 = arith.mulf %125, %124 : vector<2x128xf32>
    %127 = arith.mulf %120, %74 : vector<2x128xf32>
    %128 = arith.mulf %115, %121 : vector<2x128xf32>
    %129 = arith.addf %127, %128 : vector<2x128xf32>
    %130 = math.tanh %129 : vector<2x128xf32>
    %131 = arith.mulf %126, %130 : vector<2x128xf32>
    %132 = vector.extract_strided_slice %14 {offsets = [4, 0], sizes = [2, 512], strides = [1, 1]} : vector<16x512xf32> to vector<2x512xf32>
    %cst_45 = arith.constant dense<0.000000e+00> : vector<2x512xf32>
    %133 = tpu.matmul %103, %15, %cst_45 {dimension_numbers = #tpu.dot_dimension_numbers<[1], [0], [0], [1], [0, 0, 1, 1], [], []>} : vector<2x128xf32>, vector<128x512xf32>, vector<2x512xf32> -> vector<2x512xf32>
    %134 = arith.addf %132, %133 : vector<2x512xf32>
    %135 = vector.broadcast %8 : vector<1x512xf32> to vector<2x512xf32>
    %136 = arith.mulf %134, %135 : vector<2x512xf32>
    %137 = math.tanh %136 : vector<2x512xf32>
    %138 = vector.extract_strided_slice %137 {offsets = [0, 0], sizes = [2, 128], strides = [1, 1]} : vector<2x512xf32> to vector<2x128xf32>
    %cst_46 = arith.constant 1.000000e+00 : f32
    %139 = vector.broadcast %cst_46 : f32 to vector<2x128xf32>
    %140 = arith.addf %138, %139 : vector<2x128xf32>
    %cst_47 = arith.constant 5.000000e-01 : f32
    %141 = vector.broadcast %cst_47 : f32 to vector<2x128xf32>
    %142 = arith.mulf %141, %140 : vector<2x128xf32>
    %143 = vector.extract_strided_slice %137 {offsets = [0, 128], sizes = [2, 128], strides = [1, 1]} : vector<2x512xf32> to vector<2x128xf32>
    %cst_48 = arith.constant 1.000000e+00 : f32
    %144 = vector.broadcast %cst_48 : f32 to vector<2x128xf32>
    %145 = arith.addf %143, %144 : vector<2x128xf32>
    %cst_49 = arith.constant 5.000000e-01 : f32
    %146 = vector.broadcast %cst_49 : f32 to vector<2x128xf32>
    %147 = arith.mulf %146, %145 : vector<2x128xf32>
    %148 = vector.extract_strided_slice %137 {offsets = [0, 256], sizes = [2, 128], strides = [1, 1]} : vector<2x512xf32> to vector<2x128xf32>
    %149 = vector.extract_strided_slice %137 {offsets = [0, 384], sizes = [2, 128], strides = [1, 1]} : vector<2x512xf32> to vector<2x128xf32>
    %cst_50 = arith.constant 1.000000e+00 : f32
    %150 = vector.broadcast %cst_50 : f32 to vector<2x128xf32>
    %151 = arith.addf %149, %150 : vector<2x128xf32>
    %cst_51 = arith.constant 5.000000e-01 : f32
    %152 = vector.broadcast %cst_51 : f32 to vector<2x128xf32>
    %153 = arith.mulf %152, %151 : vector<2x128xf32>
    %154 = arith.mulf %147, %101 : vector<2x128xf32>
    %155 = arith.mulf %142, %148 : vector<2x128xf32>
    %156 = arith.addf %154, %155 : vector<2x128xf32>
    %157 = math.tanh %156 : vector<2x128xf32>
    %158 = arith.mulf %153, %157 : vector<2x128xf32>
    %159 = tpu.concatenate %158, %131 in 1 : vector<2x128xf32>, vector<2x128xf32> -> vector<2x256xf32>
    %cst_52 = arith.constant dense<0.000000e+00> : vector<2x512xf32>
    %160 = tpu.matmul %159, %16, %cst_52 {dimension_numbers = #tpu.dot_dimension_numbers<[1], [0], [0], [1], [0, 0, 1, 1], [], []>} : vector<2x256xf32>, vector<256x512xf32>, vector<2x512xf32> -> vector<2x512xf32>
    %161 = vector.broadcast %17 : vector<1x512xf32> to vector<2x512xf32>
    %162 = arith.addf %160, %161 : vector<2x512xf32>
    %163 = vector.broadcast %8 : vector<1x512xf32> to vector<2x512xf32>
    %164 = arith.mulf %162, %163 : vector<2x512xf32>
    %165 = math.tanh %164 : vector<2x512xf32>
    %166 = vector.extract_strided_slice %165 {offsets = [0, 0], sizes = [2, 128], strides = [1, 1]} : vector<2x512xf32> to vector<2x128xf32>
    %cst_53 = arith.constant 1.000000e+00 : f32
    %167 = vector.broadcast %cst_53 : f32 to vector<2x128xf32>
    %168 = arith.addf %166, %167 : vector<2x128xf32>
    %cst_54 = arith.constant 5.000000e-01 : f32
    %169 = vector.broadcast %cst_54 : f32 to vector<2x128xf32>
    %170 = arith.mulf %169, %168 : vector<2x128xf32>
    %171 = vector.extract_strided_slice %165 {offsets = [0, 128], sizes = [2, 128], strides = [1, 1]} : vector<2x512xf32> to vector<2x128xf32>
    %cst_55 = arith.constant 1.000000e+00 : f32
    %172 = vector.broadcast %cst_55 : f32 to vector<2x128xf32>
    %173 = arith.addf %171, %172 : vector<2x128xf32>
    %cst_56 = arith.constant 5.000000e-01 : f32
    %174 = vector.broadcast %cst_56 : f32 to vector<2x128xf32>
    %175 = arith.mulf %174, %173 : vector<2x128xf32>
    %176 = vector.extract_strided_slice %165 {offsets = [0, 256], sizes = [2, 128], strides = [1, 1]} : vector<2x512xf32> to vector<2x128xf32>
    %177 = vector.extract_strided_slice %165 {offsets = [0, 384], sizes = [2, 128], strides = [1, 1]} : vector<2x512xf32> to vector<2x128xf32>
    %cst_57 = arith.constant 1.000000e+00 : f32
    %178 = vector.broadcast %cst_57 : f32 to vector<2x128xf32>
    %179 = arith.addf %177, %178 : vector<2x128xf32>
    %cst_58 = arith.constant 5.000000e-01 : f32
    %180 = vector.broadcast %cst_58 : f32 to vector<2x128xf32>
    %181 = arith.mulf %180, %179 : vector<2x128xf32>
    %182 = arith.mulf %175, %129 : vector<2x128xf32>
    %183 = arith.mulf %170, %176 : vector<2x128xf32>
    %184 = arith.addf %182, %183 : vector<2x128xf32>
    %185 = math.tanh %184 : vector<2x128xf32>
    %186 = arith.mulf %181, %185 : vector<2x128xf32>
    %187 = vector.extract_strided_slice %14 {offsets = [6, 0], sizes = [2, 512], strides = [1, 1]} : vector<16x512xf32> to vector<2x512xf32>
    %cst_59 = arith.constant dense<0.000000e+00> : vector<2x512xf32>
    %188 = tpu.matmul %158, %15, %cst_59 {dimension_numbers = #tpu.dot_dimension_numbers<[1], [0], [0], [1], [0, 0, 1, 1], [], []>} : vector<2x128xf32>, vector<128x512xf32>, vector<2x512xf32> -> vector<2x512xf32>
    %189 = arith.addf %187, %188 : vector<2x512xf32>
    %190 = vector.broadcast %8 : vector<1x512xf32> to vector<2x512xf32>
    %191 = arith.mulf %189, %190 : vector<2x512xf32>
    %192 = math.tanh %191 : vector<2x512xf32>
    %193 = vector.extract_strided_slice %192 {offsets = [0, 0], sizes = [2, 128], strides = [1, 1]} : vector<2x512xf32> to vector<2x128xf32>
    %cst_60 = arith.constant 1.000000e+00 : f32
    %194 = vector.broadcast %cst_60 : f32 to vector<2x128xf32>
    %195 = arith.addf %193, %194 : vector<2x128xf32>
    %cst_61 = arith.constant 5.000000e-01 : f32
    %196 = vector.broadcast %cst_61 : f32 to vector<2x128xf32>
    %197 = arith.mulf %196, %195 : vector<2x128xf32>
    %198 = vector.extract_strided_slice %192 {offsets = [0, 128], sizes = [2, 128], strides = [1, 1]} : vector<2x512xf32> to vector<2x128xf32>
    %cst_62 = arith.constant 1.000000e+00 : f32
    %199 = vector.broadcast %cst_62 : f32 to vector<2x128xf32>
    %200 = arith.addf %198, %199 : vector<2x128xf32>
    %cst_63 = arith.constant 5.000000e-01 : f32
    %201 = vector.broadcast %cst_63 : f32 to vector<2x128xf32>
    %202 = arith.mulf %201, %200 : vector<2x128xf32>
    %203 = vector.extract_strided_slice %192 {offsets = [0, 256], sizes = [2, 128], strides = [1, 1]} : vector<2x512xf32> to vector<2x128xf32>
    %204 = vector.extract_strided_slice %192 {offsets = [0, 384], sizes = [2, 128], strides = [1, 1]} : vector<2x512xf32> to vector<2x128xf32>
    %cst_64 = arith.constant 1.000000e+00 : f32
    %205 = vector.broadcast %cst_64 : f32 to vector<2x128xf32>
    %206 = arith.addf %204, %205 : vector<2x128xf32>
    %cst_65 = arith.constant 5.000000e-01 : f32
    %207 = vector.broadcast %cst_65 : f32 to vector<2x128xf32>
    %208 = arith.mulf %207, %206 : vector<2x128xf32>
    %209 = arith.mulf %202, %156 : vector<2x128xf32>
    %210 = arith.mulf %197, %203 : vector<2x128xf32>
    %211 = arith.addf %209, %210 : vector<2x128xf32>
    %212 = math.tanh %211 : vector<2x128xf32>
    %213 = arith.mulf %208, %212 : vector<2x128xf32>
    %214 = tpu.concatenate %213, %186 in 1 : vector<2x128xf32>, vector<2x128xf32> -> vector<2x256xf32>
    %cst_66 = arith.constant dense<0.000000e+00> : vector<2x512xf32>
    %215 = tpu.matmul %214, %16, %cst_66 {dimension_numbers = #tpu.dot_dimension_numbers<[1], [0], [0], [1], [0, 0, 1, 1], [], []>} : vector<2x256xf32>, vector<256x512xf32>, vector<2x512xf32> -> vector<2x512xf32>
    %216 = vector.broadcast %17 : vector<1x512xf32> to vector<2x512xf32>
    %217 = arith.addf %215, %216 : vector<2x512xf32>
    %218 = vector.broadcast %8 : vector<1x512xf32> to vector<2x512xf32>
    %219 = arith.mulf %217, %218 : vector<2x512xf32>
    %220 = math.tanh %219 : vector<2x512xf32>
    %221 = vector.extract_strided_slice %220 {offsets = [0, 0], sizes = [2, 128], strides = [1, 1]} : vector<2x512xf32> to vector<2x128xf32>
    %cst_67 = arith.constant 1.000000e+00 : f32
    %222 = vector.broadcast %cst_67 : f32 to vector<2x128xf32>
    %223 = arith.addf %221, %222 : vector<2x128xf32>
    %cst_68 = arith.constant 5.000000e-01 : f32
    %224 = vector.broadcast %cst_68 : f32 to vector<2x128xf32>
    %225 = arith.mulf %224, %223 : vector<2x128xf32>
    %226 = vector.extract_strided_slice %220 {offsets = [0, 128], sizes = [2, 128], strides = [1, 1]} : vector<2x512xf32> to vector<2x128xf32>
    %cst_69 = arith.constant 1.000000e+00 : f32
    %227 = vector.broadcast %cst_69 : f32 to vector<2x128xf32>
    %228 = arith.addf %226, %227 : vector<2x128xf32>
    %cst_70 = arith.constant 5.000000e-01 : f32
    %229 = vector.broadcast %cst_70 : f32 to vector<2x128xf32>
    %230 = arith.mulf %229, %228 : vector<2x128xf32>
    %231 = vector.extract_strided_slice %220 {offsets = [0, 256], sizes = [2, 128], strides = [1, 1]} : vector<2x512xf32> to vector<2x128xf32>
    %232 = vector.extract_strided_slice %220 {offsets = [0, 384], sizes = [2, 128], strides = [1, 1]} : vector<2x512xf32> to vector<2x128xf32>
    %cst_71 = arith.constant 1.000000e+00 : f32
    %233 = vector.broadcast %cst_71 : f32 to vector<2x128xf32>
    %234 = arith.addf %232, %233 : vector<2x128xf32>
    %cst_72 = arith.constant 5.000000e-01 : f32
    %235 = vector.broadcast %cst_72 : f32 to vector<2x128xf32>
    %236 = arith.mulf %235, %234 : vector<2x128xf32>
    %237 = arith.mulf %230, %184 : vector<2x128xf32>
    %238 = arith.mulf %225, %231 : vector<2x128xf32>
    %239 = arith.addf %237, %238 : vector<2x128xf32>
    %240 = math.tanh %239 : vector<2x128xf32>
    %241 = arith.mulf %236, %240 : vector<2x128xf32>
    %242 = vector.extract_strided_slice %14 {offsets = [8, 0], sizes = [2, 512], strides = [1, 1]} : vector<16x512xf32> to vector<2x512xf32>
    %cst_73 = arith.constant dense<0.000000e+00> : vector<2x512xf32>
    %243 = tpu.matmul %213, %15, %cst_73 {dimension_numbers = #tpu.dot_dimension_numbers<[1], [0], [0], [1], [0, 0, 1, 1], [], []>} : vector<2x128xf32>, vector<128x512xf32>, vector<2x512xf32> -> vector<2x512xf32>
    %244 = arith.addf %242, %243 : vector<2x512xf32>
    %245 = vector.broadcast %8 : vector<1x512xf32> to vector<2x512xf32>
    %246 = arith.mulf %244, %245 : vector<2x512xf32>
    %247 = math.tanh %246 : vector<2x512xf32>
    %248 = vector.extract_strided_slice %247 {offsets = [0, 0], sizes = [2, 128], strides = [1, 1]} : vector<2x512xf32> to vector<2x128xf32>
    %cst_74 = arith.constant 1.000000e+00 : f32
    %249 = vector.broadcast %cst_74 : f32 to vector<2x128xf32>
    %250 = arith.addf %248, %249 : vector<2x128xf32>
    %cst_75 = arith.constant 5.000000e-01 : f32
    %251 = vector.broadcast %cst_75 : f32 to vector<2x128xf32>
    %252 = arith.mulf %251, %250 : vector<2x128xf32>
    %253 = vector.extract_strided_slice %247 {offsets = [0, 128], sizes = [2, 128], strides = [1, 1]} : vector<2x512xf32> to vector<2x128xf32>
    %cst_76 = arith.constant 1.000000e+00 : f32
    %254 = vector.broadcast %cst_76 : f32 to vector<2x128xf32>
    %255 = arith.addf %253, %254 : vector<2x128xf32>
    %cst_77 = arith.constant 5.000000e-01 : f32
    %256 = vector.broadcast %cst_77 : f32 to vector<2x128xf32>
    %257 = arith.mulf %256, %255 : vector<2x128xf32>
    %258 = vector.extract_strided_slice %247 {offsets = [0, 256], sizes = [2, 128], strides = [1, 1]} : vector<2x512xf32> to vector<2x128xf32>
    %259 = vector.extract_strided_slice %247 {offsets = [0, 384], sizes = [2, 128], strides = [1, 1]} : vector<2x512xf32> to vector<2x128xf32>
    %cst_78 = arith.constant 1.000000e+00 : f32
    %260 = vector.broadcast %cst_78 : f32 to vector<2x128xf32>
    %261 = arith.addf %259, %260 : vector<2x128xf32>
    %cst_79 = arith.constant 5.000000e-01 : f32
    %262 = vector.broadcast %cst_79 : f32 to vector<2x128xf32>
    %263 = arith.mulf %262, %261 : vector<2x128xf32>
    %264 = arith.mulf %257, %211 : vector<2x128xf32>
    %265 = arith.mulf %252, %258 : vector<2x128xf32>
    %266 = arith.addf %264, %265 : vector<2x128xf32>
    %267 = math.tanh %266 : vector<2x128xf32>
    %268 = arith.mulf %263, %267 : vector<2x128xf32>
    %269 = tpu.concatenate %268, %241 in 1 : vector<2x128xf32>, vector<2x128xf32> -> vector<2x256xf32>
    %cst_80 = arith.constant dense<0.000000e+00> : vector<2x512xf32>
    %270 = tpu.matmul %269, %16, %cst_80 {dimension_numbers = #tpu.dot_dimension_numbers<[1], [0], [0], [1], [0, 0, 1, 1], [], []>} : vector<2x256xf32>, vector<256x512xf32>, vector<2x512xf32> -> vector<2x512xf32>
    %271 = vector.broadcast %17 : vector<1x512xf32> to vector<2x512xf32>
    %272 = arith.addf %270, %271 : vector<2x512xf32>
    %273 = vector.broadcast %8 : vector<1x512xf32> to vector<2x512xf32>
    %274 = arith.mulf %272, %273 : vector<2x512xf32>
    %275 = math.tanh %274 : vector<2x512xf32>
    %276 = vector.extract_strided_slice %275 {offsets = [0, 0], sizes = [2, 128], strides = [1, 1]} : vector<2x512xf32> to vector<2x128xf32>
    %cst_81 = arith.constant 1.000000e+00 : f32
    %277 = vector.broadcast %cst_81 : f32 to vector<2x128xf32>
    %278 = arith.addf %276, %277 : vector<2x128xf32>
    %cst_82 = arith.constant 5.000000e-01 : f32
    %279 = vector.broadcast %cst_82 : f32 to vector<2x128xf32>
    %280 = arith.mulf %279, %278 : vector<2x128xf32>
    %281 = vector.extract_strided_slice %275 {offsets = [0, 128], sizes = [2, 128], strides = [1, 1]} : vector<2x512xf32> to vector<2x128xf32>
    %cst_83 = arith.constant 1.000000e+00 : f32
    %282 = vector.broadcast %cst_83 : f32 to vector<2x128xf32>
    %283 = arith.addf %281, %282 : vector<2x128xf32>
    %cst_84 = arith.constant 5.000000e-01 : f32
    %284 = vector.broadcast %cst_84 : f32 to vector<2x128xf32>
    %285 = arith.mulf %284, %283 : vector<2x128xf32>
    %286 = vector.extract_strided_slice %275 {offsets = [0, 256], sizes = [2, 128], strides = [1, 1]} : vector<2x512xf32> to vector<2x128xf32>
    %287 = vector.extract_strided_slice %275 {offsets = [0, 384], sizes = [2, 128], strides = [1, 1]} : vector<2x512xf32> to vector<2x128xf32>
    %cst_85 = arith.constant 1.000000e+00 : f32
    %288 = vector.broadcast %cst_85 : f32 to vector<2x128xf32>
    %289 = arith.addf %287, %288 : vector<2x128xf32>
    %cst_86 = arith.constant 5.000000e-01 : f32
    %290 = vector.broadcast %cst_86 : f32 to vector<2x128xf32>
    %291 = arith.mulf %290, %289 : vector<2x128xf32>
    %292 = arith.mulf %285, %239 : vector<2x128xf32>
    %293 = arith.mulf %280, %286 : vector<2x128xf32>
    %294 = arith.addf %292, %293 : vector<2x128xf32>
    %295 = math.tanh %294 : vector<2x128xf32>
    %296 = arith.mulf %291, %295 : vector<2x128xf32>
    %297 = vector.extract_strided_slice %14 {offsets = [10, 0], sizes = [2, 512], strides = [1, 1]} : vector<16x512xf32> to vector<2x512xf32>
    %cst_87 = arith.constant dense<0.000000e+00> : vector<2x512xf32>
    %298 = tpu.matmul %268, %15, %cst_87 {dimension_numbers = #tpu.dot_dimension_numbers<[1], [0], [0], [1], [0, 0, 1, 1], [], []>} : vector<2x128xf32>, vector<128x512xf32>, vector<2x512xf32> -> vector<2x512xf32>
    %299 = arith.addf %297, %298 : vector<2x512xf32>
    %300 = vector.broadcast %8 : vector<1x512xf32> to vector<2x512xf32>
    %301 = arith.mulf %299, %300 : vector<2x512xf32>
    %302 = math.tanh %301 : vector<2x512xf32>
    %303 = vector.extract_strided_slice %302 {offsets = [0, 0], sizes = [2, 128], strides = [1, 1]} : vector<2x512xf32> to vector<2x128xf32>
    %cst_88 = arith.constant 1.000000e+00 : f32
    %304 = vector.broadcast %cst_88 : f32 to vector<2x128xf32>
    %305 = arith.addf %303, %304 : vector<2x128xf32>
    %cst_89 = arith.constant 5.000000e-01 : f32
    %306 = vector.broadcast %cst_89 : f32 to vector<2x128xf32>
    %307 = arith.mulf %306, %305 : vector<2x128xf32>
    %308 = vector.extract_strided_slice %302 {offsets = [0, 128], sizes = [2, 128], strides = [1, 1]} : vector<2x512xf32> to vector<2x128xf32>
    %cst_90 = arith.constant 1.000000e+00 : f32
    %309 = vector.broadcast %cst_90 : f32 to vector<2x128xf32>
    %310 = arith.addf %308, %309 : vector<2x128xf32>
    %cst_91 = arith.constant 5.000000e-01 : f32
    %311 = vector.broadcast %cst_91 : f32 to vector<2x128xf32>
    %312 = arith.mulf %311, %310 : vector<2x128xf32>
    %313 = vector.extract_strided_slice %302 {offsets = [0, 256], sizes = [2, 128], strides = [1, 1]} : vector<2x512xf32> to vector<2x128xf32>
    %314 = vector.extract_strided_slice %302 {offsets = [0, 384], sizes = [2, 128], strides = [1, 1]} : vector<2x512xf32> to vector<2x128xf32>
    %cst_92 = arith.constant 1.000000e+00 : f32
    %315 = vector.broadcast %cst_92 : f32 to vector<2x128xf32>
    %316 = arith.addf %314, %315 : vector<2x128xf32>
    %cst_93 = arith.constant 5.000000e-01 : f32
    %317 = vector.broadcast %cst_93 : f32 to vector<2x128xf32>
    %318 = arith.mulf %317, %316 : vector<2x128xf32>
    %319 = arith.mulf %312, %266 : vector<2x128xf32>
    %320 = arith.mulf %307, %313 : vector<2x128xf32>
    %321 = arith.addf %319, %320 : vector<2x128xf32>
    %322 = math.tanh %321 : vector<2x128xf32>
    %323 = arith.mulf %318, %322 : vector<2x128xf32>
    %324 = tpu.concatenate %323, %296 in 1 : vector<2x128xf32>, vector<2x128xf32> -> vector<2x256xf32>
    %cst_94 = arith.constant dense<0.000000e+00> : vector<2x512xf32>
    %325 = tpu.matmul %324, %16, %cst_94 {dimension_numbers = #tpu.dot_dimension_numbers<[1], [0], [0], [1], [0, 0, 1, 1], [], []>} : vector<2x256xf32>, vector<256x512xf32>, vector<2x512xf32> -> vector<2x512xf32>
    %326 = vector.broadcast %17 : vector<1x512xf32> to vector<2x512xf32>
    %327 = arith.addf %325, %326 : vector<2x512xf32>
    %328 = vector.broadcast %8 : vector<1x512xf32> to vector<2x512xf32>
    %329 = arith.mulf %327, %328 : vector<2x512xf32>
    %330 = math.tanh %329 : vector<2x512xf32>
    %331 = vector.extract_strided_slice %330 {offsets = [0, 0], sizes = [2, 128], strides = [1, 1]} : vector<2x512xf32> to vector<2x128xf32>
    %cst_95 = arith.constant 1.000000e+00 : f32
    %332 = vector.broadcast %cst_95 : f32 to vector<2x128xf32>
    %333 = arith.addf %331, %332 : vector<2x128xf32>
    %cst_96 = arith.constant 5.000000e-01 : f32
    %334 = vector.broadcast %cst_96 : f32 to vector<2x128xf32>
    %335 = arith.mulf %334, %333 : vector<2x128xf32>
    %336 = vector.extract_strided_slice %330 {offsets = [0, 128], sizes = [2, 128], strides = [1, 1]} : vector<2x512xf32> to vector<2x128xf32>
    %cst_97 = arith.constant 1.000000e+00 : f32
    %337 = vector.broadcast %cst_97 : f32 to vector<2x128xf32>
    %338 = arith.addf %336, %337 : vector<2x128xf32>
    %cst_98 = arith.constant 5.000000e-01 : f32
    %339 = vector.broadcast %cst_98 : f32 to vector<2x128xf32>
    %340 = arith.mulf %339, %338 : vector<2x128xf32>
    %341 = vector.extract_strided_slice %330 {offsets = [0, 256], sizes = [2, 128], strides = [1, 1]} : vector<2x512xf32> to vector<2x128xf32>
    %342 = vector.extract_strided_slice %330 {offsets = [0, 384], sizes = [2, 128], strides = [1, 1]} : vector<2x512xf32> to vector<2x128xf32>
    %cst_99 = arith.constant 1.000000e+00 : f32
    %343 = vector.broadcast %cst_99 : f32 to vector<2x128xf32>
    %344 = arith.addf %342, %343 : vector<2x128xf32>
    %cst_100 = arith.constant 5.000000e-01 : f32
    %345 = vector.broadcast %cst_100 : f32 to vector<2x128xf32>
    %346 = arith.mulf %345, %344 : vector<2x128xf32>
    %347 = arith.mulf %340, %294 : vector<2x128xf32>
    %348 = arith.mulf %335, %341 : vector<2x128xf32>
    %349 = arith.addf %347, %348 : vector<2x128xf32>
    %350 = math.tanh %349 : vector<2x128xf32>
    %351 = arith.mulf %346, %350 : vector<2x128xf32>
    %352 = vector.extract_strided_slice %14 {offsets = [12, 0], sizes = [2, 512], strides = [1, 1]} : vector<16x512xf32> to vector<2x512xf32>
    %cst_101 = arith.constant dense<0.000000e+00> : vector<2x512xf32>
    %353 = tpu.matmul %323, %15, %cst_101 {dimension_numbers = #tpu.dot_dimension_numbers<[1], [0], [0], [1], [0, 0, 1, 1], [], []>} : vector<2x128xf32>, vector<128x512xf32>, vector<2x512xf32> -> vector<2x512xf32>
    %354 = arith.addf %352, %353 : vector<2x512xf32>
    %355 = vector.broadcast %8 : vector<1x512xf32> to vector<2x512xf32>
    %356 = arith.mulf %354, %355 : vector<2x512xf32>
    %357 = math.tanh %356 : vector<2x512xf32>
    %358 = vector.extract_strided_slice %357 {offsets = [0, 0], sizes = [2, 128], strides = [1, 1]} : vector<2x512xf32> to vector<2x128xf32>
    %cst_102 = arith.constant 1.000000e+00 : f32
    %359 = vector.broadcast %cst_102 : f32 to vector<2x128xf32>
    %360 = arith.addf %358, %359 : vector<2x128xf32>
    %cst_103 = arith.constant 5.000000e-01 : f32
    %361 = vector.broadcast %cst_103 : f32 to vector<2x128xf32>
    %362 = arith.mulf %361, %360 : vector<2x128xf32>
    %363 = vector.extract_strided_slice %357 {offsets = [0, 128], sizes = [2, 128], strides = [1, 1]} : vector<2x512xf32> to vector<2x128xf32>
    %cst_104 = arith.constant 1.000000e+00 : f32
    %364 = vector.broadcast %cst_104 : f32 to vector<2x128xf32>
    %365 = arith.addf %363, %364 : vector<2x128xf32>
    %cst_105 = arith.constant 5.000000e-01 : f32
    %366 = vector.broadcast %cst_105 : f32 to vector<2x128xf32>
    %367 = arith.mulf %366, %365 : vector<2x128xf32>
    %368 = vector.extract_strided_slice %357 {offsets = [0, 256], sizes = [2, 128], strides = [1, 1]} : vector<2x512xf32> to vector<2x128xf32>
    %369 = vector.extract_strided_slice %357 {offsets = [0, 384], sizes = [2, 128], strides = [1, 1]} : vector<2x512xf32> to vector<2x128xf32>
    %cst_106 = arith.constant 1.000000e+00 : f32
    %370 = vector.broadcast %cst_106 : f32 to vector<2x128xf32>
    %371 = arith.addf %369, %370 : vector<2x128xf32>
    %cst_107 = arith.constant 5.000000e-01 : f32
    %372 = vector.broadcast %cst_107 : f32 to vector<2x128xf32>
    %373 = arith.mulf %372, %371 : vector<2x128xf32>
    %374 = arith.mulf %367, %321 : vector<2x128xf32>
    %375 = arith.mulf %362, %368 : vector<2x128xf32>
    %376 = arith.addf %374, %375 : vector<2x128xf32>
    %377 = math.tanh %376 : vector<2x128xf32>
    %378 = arith.mulf %373, %377 : vector<2x128xf32>
    %379 = tpu.concatenate %378, %351 in 1 : vector<2x128xf32>, vector<2x128xf32> -> vector<2x256xf32>
    %cst_108 = arith.constant dense<0.000000e+00> : vector<2x512xf32>
    %380 = tpu.matmul %379, %16, %cst_108 {dimension_numbers = #tpu.dot_dimension_numbers<[1], [0], [0], [1], [0, 0, 1, 1], [], []>} : vector<2x256xf32>, vector<256x512xf32>, vector<2x512xf32> -> vector<2x512xf32>
    %381 = vector.broadcast %17 : vector<1x512xf32> to vector<2x512xf32>
    %382 = arith.addf %380, %381 : vector<2x512xf32>
    %383 = vector.broadcast %8 : vector<1x512xf32> to vector<2x512xf32>
    %384 = arith.mulf %382, %383 : vector<2x512xf32>
    %385 = math.tanh %384 : vector<2x512xf32>
    %386 = vector.extract_strided_slice %385 {offsets = [0, 0], sizes = [2, 128], strides = [1, 1]} : vector<2x512xf32> to vector<2x128xf32>
    %cst_109 = arith.constant 1.000000e+00 : f32
    %387 = vector.broadcast %cst_109 : f32 to vector<2x128xf32>
    %388 = arith.addf %386, %387 : vector<2x128xf32>
    %cst_110 = arith.constant 5.000000e-01 : f32
    %389 = vector.broadcast %cst_110 : f32 to vector<2x128xf32>
    %390 = arith.mulf %389, %388 : vector<2x128xf32>
    %391 = vector.extract_strided_slice %385 {offsets = [0, 128], sizes = [2, 128], strides = [1, 1]} : vector<2x512xf32> to vector<2x128xf32>
    %cst_111 = arith.constant 1.000000e+00 : f32
    %392 = vector.broadcast %cst_111 : f32 to vector<2x128xf32>
    %393 = arith.addf %391, %392 : vector<2x128xf32>
    %cst_112 = arith.constant 5.000000e-01 : f32
    %394 = vector.broadcast %cst_112 : f32 to vector<2x128xf32>
    %395 = arith.mulf %394, %393 : vector<2x128xf32>
    %396 = vector.extract_strided_slice %385 {offsets = [0, 256], sizes = [2, 128], strides = [1, 1]} : vector<2x512xf32> to vector<2x128xf32>
    %397 = vector.extract_strided_slice %385 {offsets = [0, 384], sizes = [2, 128], strides = [1, 1]} : vector<2x512xf32> to vector<2x128xf32>
    %cst_113 = arith.constant 1.000000e+00 : f32
    %398 = vector.broadcast %cst_113 : f32 to vector<2x128xf32>
    %399 = arith.addf %397, %398 : vector<2x128xf32>
    %cst_114 = arith.constant 5.000000e-01 : f32
    %400 = vector.broadcast %cst_114 : f32 to vector<2x128xf32>
    %401 = arith.mulf %400, %399 : vector<2x128xf32>
    %402 = arith.mulf %395, %349 : vector<2x128xf32>
    %403 = arith.mulf %390, %396 : vector<2x128xf32>
    %404 = arith.addf %402, %403 : vector<2x128xf32>
    %405 = math.tanh %404 : vector<2x128xf32>
    %406 = arith.mulf %401, %405 : vector<2x128xf32>
    %407 = vector.extract_strided_slice %14 {offsets = [14, 0], sizes = [2, 512], strides = [1, 1]} : vector<16x512xf32> to vector<2x512xf32>
    %cst_115 = arith.constant dense<0.000000e+00> : vector<2x512xf32>
    %408 = tpu.matmul %378, %15, %cst_115 {dimension_numbers = #tpu.dot_dimension_numbers<[1], [0], [0], [1], [0, 0, 1, 1], [], []>} : vector<2x128xf32>, vector<128x512xf32>, vector<2x512xf32> -> vector<2x512xf32>
    %409 = arith.addf %407, %408 : vector<2x512xf32>
    %410 = vector.broadcast %8 : vector<1x512xf32> to vector<2x512xf32>
    %411 = arith.mulf %409, %410 : vector<2x512xf32>
    %412 = math.tanh %411 : vector<2x512xf32>
    %413 = vector.extract_strided_slice %412 {offsets = [0, 0], sizes = [2, 128], strides = [1, 1]} : vector<2x512xf32> to vector<2x128xf32>
    %cst_116 = arith.constant 1.000000e+00 : f32
    %414 = vector.broadcast %cst_116 : f32 to vector<2x128xf32>
    %415 = arith.addf %413, %414 : vector<2x128xf32>
    %cst_117 = arith.constant 5.000000e-01 : f32
    %416 = vector.broadcast %cst_117 : f32 to vector<2x128xf32>
    %417 = arith.mulf %416, %415 : vector<2x128xf32>
    %418 = vector.extract_strided_slice %412 {offsets = [0, 128], sizes = [2, 128], strides = [1, 1]} : vector<2x512xf32> to vector<2x128xf32>
    %cst_118 = arith.constant 1.000000e+00 : f32
    %419 = vector.broadcast %cst_118 : f32 to vector<2x128xf32>
    %420 = arith.addf %418, %419 : vector<2x128xf32>
    %cst_119 = arith.constant 5.000000e-01 : f32
    %421 = vector.broadcast %cst_119 : f32 to vector<2x128xf32>
    %422 = arith.mulf %421, %420 : vector<2x128xf32>
    %423 = vector.extract_strided_slice %412 {offsets = [0, 256], sizes = [2, 128], strides = [1, 1]} : vector<2x512xf32> to vector<2x128xf32>
    %424 = vector.extract_strided_slice %412 {offsets = [0, 384], sizes = [2, 128], strides = [1, 1]} : vector<2x512xf32> to vector<2x128xf32>
    %cst_120 = arith.constant 1.000000e+00 : f32
    %425 = vector.broadcast %cst_120 : f32 to vector<2x128xf32>
    %426 = arith.addf %424, %425 : vector<2x128xf32>
    %cst_121 = arith.constant 5.000000e-01 : f32
    %427 = vector.broadcast %cst_121 : f32 to vector<2x128xf32>
    %428 = arith.mulf %427, %426 : vector<2x128xf32>
    %429 = arith.mulf %422, %376 : vector<2x128xf32>
    %430 = arith.mulf %417, %423 : vector<2x128xf32>
    %431 = arith.addf %429, %430 : vector<2x128xf32>
    %432 = math.tanh %431 : vector<2x128xf32>
    %433 = arith.mulf %428, %432 : vector<2x128xf32>
    %434 = tpu.concatenate %433, %406 in 1 : vector<2x128xf32>, vector<2x128xf32> -> vector<2x256xf32>
    %cst_122 = arith.constant dense<0.000000e+00> : vector<2x512xf32>
    %435 = tpu.matmul %434, %16, %cst_122 {dimension_numbers = #tpu.dot_dimension_numbers<[1], [0], [0], [1], [0, 0, 1, 1], [], []>} : vector<2x256xf32>, vector<256x512xf32>, vector<2x512xf32> -> vector<2x512xf32>
    %436 = vector.broadcast %17 : vector<1x512xf32> to vector<2x512xf32>
    %437 = arith.addf %435, %436 : vector<2x512xf32>
    %438 = vector.broadcast %8 : vector<1x512xf32> to vector<2x512xf32>
    %439 = arith.mulf %437, %438 : vector<2x512xf32>
    %440 = math.tanh %439 : vector<2x512xf32>
    %441 = vector.extract_strided_slice %440 {offsets = [0, 0], sizes = [2, 128], strides = [1, 1]} : vector<2x512xf32> to vector<2x128xf32>
    %cst_123 = arith.constant 1.000000e+00 : f32
    %442 = vector.broadcast %cst_123 : f32 to vector<2x128xf32>
    %443 = arith.addf %441, %442 : vector<2x128xf32>
    %cst_124 = arith.constant 5.000000e-01 : f32
    %444 = vector.broadcast %cst_124 : f32 to vector<2x128xf32>
    %445 = arith.mulf %444, %443 : vector<2x128xf32>
    %446 = vector.extract_strided_slice %440 {offsets = [0, 128], sizes = [2, 128], strides = [1, 1]} : vector<2x512xf32> to vector<2x128xf32>
    %cst_125 = arith.constant 1.000000e+00 : f32
    %447 = vector.broadcast %cst_125 : f32 to vector<2x128xf32>
    %448 = arith.addf %446, %447 : vector<2x128xf32>
    %cst_126 = arith.constant 5.000000e-01 : f32
    %449 = vector.broadcast %cst_126 : f32 to vector<2x128xf32>
    %450 = arith.mulf %449, %448 : vector<2x128xf32>
    %451 = vector.extract_strided_slice %440 {offsets = [0, 256], sizes = [2, 128], strides = [1, 1]} : vector<2x512xf32> to vector<2x128xf32>
    %452 = vector.extract_strided_slice %440 {offsets = [0, 384], sizes = [2, 128], strides = [1, 1]} : vector<2x512xf32> to vector<2x128xf32>
    %cst_127 = arith.constant 1.000000e+00 : f32
    %453 = vector.broadcast %cst_127 : f32 to vector<2x128xf32>
    %454 = arith.addf %452, %453 : vector<2x128xf32>
    %cst_128 = arith.constant 5.000000e-01 : f32
    %455 = vector.broadcast %cst_128 : f32 to vector<2x128xf32>
    %456 = arith.mulf %455, %454 : vector<2x128xf32>
    %457 = arith.mulf %450, %404 : vector<2x128xf32>
    %458 = arith.mulf %445, %451 : vector<2x128xf32>
    %459 = arith.addf %457, %458 : vector<2x128xf32>
    %460 = math.tanh %459 : vector<2x128xf32>
    %461 = arith.mulf %456, %460 : vector<2x128xf32>
    %462 = tpu.concatenate %76, %131, %186, %241, %296, %351, %406, %461 in 0 : vector<2x128xf32>, vector<2x128xf32>, vector<2x128xf32>, vector<2x128xf32>, vector<2x128xf32>, vector<2x128xf32>, vector<2x128xf32>, vector<2x128xf32> -> vector<16x128xf32>
    %c0_129 = arith.constant 0 : index
    %c0_130 = arith.constant 0 : index
    %463 = vector.load %arg6[%c0_129, %c0_130] : memref<128x512xf32, #tpu.memory_space<vmem>>, vector<128x512xf32>
    %cst_131 = arith.constant dense<0.000000e+00> : vector<16x512xf32>
    %464 = tpu.matmul %462, %463, %cst_131 {dimension_numbers = #tpu.dot_dimension_numbers<[1], [0], [0], [1], [0, 0, 1, 1], [], []>} : vector<16x128xf32>, vector<128x512xf32>, vector<16x512xf32> -> vector<16x512xf32>
    %c0_132 = arith.constant 0 : index
    %c0_133 = arith.constant 0 : index
    %465 = vector.load %arg7[%c0_132, %c0_133] : memref<1x512xf32, #tpu.memory_space<vmem>>, vector<1x512xf32>
    %466 = vector.broadcast %465 : vector<1x512xf32> to vector<16x512xf32>
    %467 = arith.addf %464, %466 : vector<16x512xf32>
    %cst_134 = arith.constant 0.000000e+00 : f32
    %468 = vector.broadcast %cst_134 : f32 to vector<16x512xf32>
    %469 = arith.maximumf %467, %468 : vector<16x512xf32>
    %c0_135 = arith.constant 0 : index
    %c0_136 = arith.constant 0 : index
    %470 = vector.load %arg8[%c0_135, %c0_136] : memref<512x128xf32, #tpu.memory_space<vmem>>, vector<512x128xf32>
    %cst_137 = arith.constant dense<0.000000e+00> : vector<16x128xf32>
    %471 = tpu.matmul %469, %470, %cst_137 {dimension_numbers = #tpu.dot_dimension_numbers<[1], [0], [0], [1], [0, 0, 1, 1], [], []>} : vector<16x512xf32>, vector<512x128xf32>, vector<16x128xf32> -> vector<16x128xf32>
    %c0_138 = arith.constant 0 : index
    %c0_139 = arith.constant 0 : index
    %472 = vector.load %arg9[%c0_138, %c0_139] : memref<1x128xf32, #tpu.memory_space<vmem>>, vector<1x128xf32>
    %473 = vector.broadcast %472 : vector<1x128xf32> to vector<16x128xf32>
    %474 = arith.addf %471, %473 : vector<16x128xf32>
    %cst_140 = arith.constant 0.000000e+00 : f32
    %475 = vector.broadcast %cst_140 : f32 to vector<16x128xf32>
    %476 = arith.maximumf %474, %475 : vector<16x128xf32>
    %c0_141 = arith.constant 0 : index
    %c0_142 = arith.constant 0 : index
    %477 = vector.load %arg10[%c0_141, %c0_142] : memref<1x128xf32, #tpu.memory_space<vmem>>, vector<1x128xf32>
    %cst_143 = arith.constant dense<0.000000e+00> : vector<1x16xf32>
    %478 = tpu.matmul %477, %476, %cst_143 {dimension_numbers = #tpu.dot_dimension_numbers<[1], [1], [0], [0], [0, 0, 1, 0], [], []>} : vector<1x128xf32>, vector<16x128xf32>, vector<1x16xf32> -> vector<1x16xf32>
    %c0_144 = arith.constant 0 : index
    %c0_145 = arith.constant 0 : index
    %479 = vector.load %arg11[%c0_144, %c0_145] : memref<1x1xf32, #tpu.memory_space<vmem>>, vector<1x1xf32>
    %480 = vector.broadcast %479 : vector<1x1xf32> to vector<1x16xf32>
    %481 = arith.addf %478, %480 : vector<1x16xf32>
    %c0_146 = arith.constant 0 : index
    %c0_147 = arith.constant 0 : index
    %482 = vector.load %arg12[%c0_146, %c0_147] : memref<1x16xf32, #tpu.memory_space<vmem>>, vector<1x16xf32>
    tpu.vector_store %arg12[%c0_146, %c0_147], %481 {strides = array<i32>} : memref<1x16xf32, #tpu.memory_space<vmem>>, vector<1x16xf32>,
    return
  }
}

</mosaic_0001>

<llo_original>
// kernel: sp_forward.1
$region0: #{sp_forward.1}
  #allocation0 [shape = 'u32[]', space=smem, size = 0x4, offset = 0x4, fixed_abs, tag = 'smem constant byte address 0x4 - core index']
  #allocation1 [shape = 'u32[144,128]{1,0:T(1,128)}', space=vmem, size = 0x12000, scoped, tag = 'internal scratch']
  #allocation2 [shape = 'f32[1,1]{1,0:T(1,128)S(1)}', space=vmem, size = 0x200, scoped, tag = 'scoped memory for sp_forward.1']
  %s0 = inlined_call_operand.vmem [shape: f32[16,3], index: 0, kind: input, shape index: {}]
  %s1 = inlined_call_operand.vmem [shape: f32[3,512], index: 1, kind: input, shape index: {}]
  %s2 = inlined_call_operand.hbm [shape: f32[128,512], index: 2, kind: input, shape index: {}]
  %s3 = inlined_call_operand.vmem [shape: f32[1,512], index: 3, kind: input, shape index: {}]
  %s4 = inlined_call_operand.hbm [shape: f32[256,512], index: 4, kind: input, shape index: {}]
  %s5 = inlined_call_operand.vmem [shape: f32[1,512], index: 5, kind: input, shape index: {}]
  %s6 = inlined_call_operand.hbm [shape: f32[128,512], index: 6, kind: input, shape index: {}]
  %s7 = inlined_call_operand.vmem [shape: f32[1,512], index: 7, kind: input, shape index: {}]
  %s8 = inlined_call_operand.hbm [shape: f32[512,128], index: 8, kind: input, shape index: {}]
  %s9 = inlined_call_operand.vmem [shape: f32[1,128], index: 9, kind: input, shape index: {}]
  %s10 = inlined_call_operand.hbm [shape: f32[1,128], index: 10, kind: input, shape index: {}]
  %s11 = inlined_call_operand.<no memory space> [shape: f32[1,1], index: 11, kind: input, shape index: {}]
  %s12 = inlined_call_operand.vmem [shape: f32[1,16], index: 12, kind: output, shape index: {}]
  %s13 = sld [smem:[#allocation0]]
  $region78: #{sp_forward.1} parent=0
    _
  %s15 = ssub.s32 1, %s13
  %s16 = scalar_select 0, %s15, %s13
  %v17 = vstv %s11
  %18 = vst [vmem:[#allocation2] sm:$0x1] %v17
  $region1: #{sp_forward.1} parent=0
    #allocation3 [shape = 'u8[262144]{0}', space=vmem, size = 0x40000, scoped, tag = 'input window, operand 2, single buffered']
    #allocation4 [shape = 's32[1]{0}', space=sflag, size = 0x4, scoped, tag = 'scoped memory for sp_forward.1']
    #allocation5 [shape = 'u8[524288]{0}', space=vmem, size = 0x80000, scoped, tag = 'input window, operand 4, single buffered']
    #allocation6 [shape = 's32[1]{0}', space=sflag, size = 0x4, scoped, tag = 'scoped memory for sp_forward.1']
    #allocation7 [shape = 'u8[262144]{0}', space=vmem, size = 0x40000, scoped, tag = 'input window, operand 6, single buffered']
    #allocation8 [shape = 'u8[262144]{0}', space=vmem, size = 0x40000, scoped, tag = 'input window, operand 8, single buffered']
    #allocation9 [shape = 's32[1]{0}', space=sflag, size = 0x4, scoped, tag = 'scoped memory for sp_forward.1']
    #allocation10 [shape = 'u8[512]{0}', space=vmem, size = 0x400, scoped, tag = 'input window, operand 10, single buffered']
    %19 = vsyncpa [#allocation4], 0
    %20 = vsyncpa [#allocation6], 0
    %21 = vsyncpa [#allocation9], 0
    // Predicated region
    $region2: #{sp_forward.1} parent=1 // pred_check
      _
    $region3: #{sp_forward.1} parent=1 // pred_check_branch
      %23 = sbr.rel (0) target = $region5
    $region4: #{sp_forward.1} parent=1 // pred_region
      _
    $region5: #{sp_forward.1} parent=1 // pred_fallthru
      _
    // Predicated region
    $region6: #{sp_forward.1} parent=1 // pred_check
      _
    $region7: #{sp_forward.1} parent=1 // pred_check_branch
      %25 = sbr.rel (0) target = $region9
    $region8: #{sp_forward.1} parent=1 // pred_region
      _
    $region9: #{sp_forward.1} parent=1 // pred_fallthru
      _
    // Predicated region
    $region10: #{sp_forward.1} parent=1 // pred_check
      _
    $region11: #{sp_forward.1} parent=1 // pred_check_branch
      %27 = sbr.rel (0) target = $region13
    $region12: #{sp_forward.1} parent=1 // pred_region
      %s29 = ssub.s32 8192, 8192
      %30 = vsyncadd [#allocation4], %s29
      %s31 = sshll.u32 [#allocation3], 4
      %s32 = int_to_ptr.vmem [resolvable:$true] %s31
      %37 = dma.hbm_to_vmem [thread:$0]  %s2, 8192, %s32, [#allocation4], 512, 512, 32
    $region13: #{sp_forward.1} parent=1 // pred_fallthru
      _
    // Predicated region
    $region14: #{sp_forward.1} parent=1 // pred_check
      _
    $region15: #{sp_forward.1} parent=1 // pred_check_branch
      %39 = sbr.rel (0) target = $region17
    $region16: #{sp_forward.1} parent=1 // pred_region
      _
    $region17: #{sp_forward.1} parent=1 // pred_fallthru
      _
    // Predicated region
    $region18: #{sp_forward.1} parent=1 // pred_check
      _
    $region19: #{sp_forward.1} parent=1 // pred_check_branch
      %41 = sbr.rel (0) target = $region21
    $region20: #{sp_forward.1} parent=1 // pred_region
      %s43 = ssub.s32 16384, 16384
      %44 = vsyncadd [#allocation6], %s43
      %s45 = sshll.u32 [#allocation5], 4
      %s46 = int_to_ptr.vmem [resolvable:$true] %s45
      %51 = dma.hbm_to_vmem [thread:$0]  %s4, 16384, %s46, [#allocation6], 512, 512, 32
    $region21: #{sp_forward.1} parent=1 // pred_fallthru
      _
    // Predicated region
    $region22: #{sp_forward.1} parent=1 // pred_check
      _
    $region23: #{sp_forward.1} parent=1 // pred_check_branch
      %53 = sbr.rel (0) target = $region25
    $region24: #{sp_forward.1} parent=1 // pred_region
      _
    $region25: #{sp_forward.1} parent=1 // pred_fallthru
      _
    // Predicated region
    $region26: #{sp_forward.1} parent=1 // pred_check
      _
    $region27: #{sp_forward.1} parent=1 // pred_check_branch
      %55 = sbr.rel (0) target = $region29
    $region28: #{sp_forward.1} parent=1 // pred_region
      %s57 = ssub.s32 8192, 8192
      %58 = vsyncadd [#allocation6], %s57
      %s59 = sshll.u32 [#allocation7], 4
      %s60 = int_to_ptr.vmem [resolvable:$true] %s59
      %65 = dma.hbm_to_vmem [thread:$0]  %s6, 8192, %s60, [#allocation6], 512, 512, 32
    $region29: #{sp_forward.1} parent=1 // pred_fallthru
      _
    // Predicated region
    $region30: #{sp_forward.1} parent=1 // pred_check
      _
    $region31: #{sp_forward.1} parent=1 // pred_check_branch
      %67 = sbr.rel (0) target = $region33
    $region32: #{sp_forward.1} parent=1 // pred_region
      _
    $region33: #{sp_forward.1} parent=1 // pred_fallthru
      _
    // Predicated region
    $region34: #{sp_forward.1} parent=1 // pred_check
      _
    $region35: #{sp_forward.1} parent=1 // pred_check_branch
      %69 = sbr.rel (0) target = $region37
    $region36: #{sp_forward.1} parent=1 // pred_region
      %s71 = ssub.s32 8192, 8192
      %72 = vsyncadd [#allocation9], %s71
      %s73 = sshll.u32 [#allocation8], 4
      %s74 = int_to_ptr.vmem [resolvable:$true] %s73
      %79 = dma.hbm_to_vmem [thread:$0]  %s8, 8192, %s74, [#allocation9], 128, 128, 8
    $region37: #{sp_forward.1} parent=1 // pred_fallthru
      _
    // Predicated region
    $region38: #{sp_forward.1} parent=1 // pred_check
      _
    $region39: #{sp_forward.1} parent=1 // pred_check_branch
      %81 = sbr.rel (0) target = $region41
    $region40: #{sp_forward.1} parent=1 // pred_region
      _
    $region41: #{sp_forward.1} parent=1 // pred_fallthru
      _
    // Predicated region
    $region42: #{sp_forward.1} parent=1 // pred_check
      _
    $region43: #{sp_forward.1} parent=1 // pred_check_branch
      %83 = sbr.rel (0) target = $region45
    $region44: #{sp_forward.1} parent=1 // pred_region
      %s85 = ssub.s32 16, 16
      %86 = vsyncadd [#allocation9], %s85
      %s88 = sshll.u32 [#allocation10], 4
      %s89 = int_to_ptr.vmem [resolvable:$true] %s88
      %91 = dma.hbm_to_vmem [thread:$0]  %s10, 16, %s89, [#allocation9]
    $region45: #{sp_forward.1} parent=1 // pred_fallthru
      _
    // Predicated region
    $region46: #{sp_forward.1} parent=1 // pred_check
      _
    $region47: #{sp_forward.1} parent=1 // pred_check_branch
      %93 = sbr.rel (0) target = $region49
    $region48: #{sp_forward.1} parent=1 // pred_region
      _
    $region49: #{sp_forward.1} parent=1 // pred_fallthru
      _
    // Predicated region
    $region50: #{sp_forward.1} parent=1 // pred_check
      _
    $region51: #{sp_forward.1} parent=1 // pred_check_branch
      %95 = sbr.rel (0) target = $region53
    $region52: #{sp_forward.1} parent=1 // pred_region
      %96 = dma.done [#allocation4], 8192
    $region53: #{sp_forward.1} parent=1 // pred_fallthru
      _
    // Predicated region
    $region54: #{sp_forward.1} parent=1 // pred_check
      _
    $region55: #{sp_forward.1} parent=1 // pred_check_branch
      %98 = sbr.rel (0) target = $region57
    $region56: #{sp_forward.1} parent=1 // pred_region
      %99 = dma.done [#allocation6], 16384
    $region57: #{sp_forward.1} parent=1 // pred_fallthru
      _
    // Predicated region
    $region58: #{sp_forward.1} parent=1 // pred_check
      _
    $region59: #{sp_forward.1} parent=1 // pred_check_branch
      %101 = sbr.rel (0) target = $region61
    $region60: #{sp_forward.1} parent=1 // pred_region
      %102 = dma.done [#allocation6], 8192
    $region61: #{sp_forward.1} parent=1 // pred_fallthru
      _
    // Predicated region
    $region62: #{sp_forward.1} parent=1 // pred_check
      _
    $region63: #{sp_forward.1} parent=1 // pred_check_branch
      %104 = sbr.rel (0) target = $region65
    $region64: #{sp_forward.1} parent=1 // pred_region
      %105 = dma.done [#allocation9], 8192
    $region65: #{sp_forward.1} parent=1 // pred_fallthru
      _
    // Predicated region
    $region66: #{sp_forward.1} parent=1 // pred_check
      _
    $region67: #{sp_forward.1} parent=1 // pred_check_branch
      %107 = sbr.rel (0) target = $region69
    $region68: #{sp_forward.1} parent=1 // pred_region
      %108 = dma.done [#allocation9], 16
    $region69: #{sp_forward.1} parent=1 // pred_fallthru
      _
    %v109 = vlaneseq
    %v110 = vand.u32 %v109, 127
    %v111 = vadd.s32 %v110, 128
    %v112 = vadd.s32 %v110, 256
    %v113 = vadd.s32 %v110, 384
    %vm114 = vcmp.ge.s32.totalorder %v110, 256
    %vm115 = vcmp.ge.s32.totalorder %v111, 256
    %vm116 = vcmp.ge.s32.totalorder %v112, 256
    %vm117 = vcmp.ge.s32.totalorder %v113, 256
    %vm118 = vcmp.lt.s32.totalorder %v110, 384
    %vm119 = vcmp.lt.s32.totalorder %v111, 384
    %vm120 = vcmp.lt.s32.totalorder %v112, 384
    %vm121 = vcmp.lt.s32.totalorder %v113, 384
    %vm122 = vmand %vm114, %vm118
    %vm123 = vmand %vm115, %vm119
    %vm124 = vmand %vm116, %vm120
    %vm125 = vmand %vm117, %vm121
    %v126 = vsel %vm122, 1.0, 0.5
    %v127 = vsel %vm123, 1.0, 0.5
    %v128 = vsel %vm124, 1.0, 0.5
    %v129 = vsel %vm125, 1.0, 0.5
    %v130 = vld [vmem:[%s0] sm:$0xff]
    %v131 = vld [vmem:[%s0 + $0x8] sm:$0xff]
    %v132 = vld [vmem:[%s1] sm:$0x77]
    %v133 = vld [vmem:[%s1 + $0x8] sm:$0x77]
    %v134 = vld [vmem:[%s3] sm:$0xf]
    %v136 = vlaneseq
    %v137 = vshrl.u32 %v136, 7
    %v138 = vsub.s32 0, %v137
    %v139 = vrot.slane %v134, %v138
    %v140 = vlaneseq
    %v141 = vshrl.u32 %v140, 7
    %v142 = vsub.s32 1, %v141
    %v143 = vrot.slane %v134, %v142
    %v144 = vlaneseq
    %v145 = vshrl.u32 %v144, 7
    %v146 = vsub.s32 2, %v145
    %v147 = vrot.slane %v134, %v146
    %v148 = vlaneseq
    %v149 = vshrl.u32 %v148, 7
    %v150 = vsub.s32 3, %v149
    %v151 = vrot.slane %v134, %v150
    %v158 = vcombine.high %v132, %v132
    %v159 = vcombine.high %v133, %v133
    %vm160 = vcmask 23552
    %v162 = vsel %vm160, %v130, 0
    %v165 = vsel %vm160, %v131, 0
    %vm167 = vcmask 1042432
    %v168 = vsel %vm167, %v132, 0
    %v170 = vsel %vm167, %v158, 0
    %v172 = vsel %vm167, %v133, 0
    %v174 = vsel %vm167, %v159, 0
    %176 = vmatprep.subr.mxu0 0.0
    %177 = vmatpush1.msra.mxu0 0.0
    %178 = vmatprep.subr.mxu0 0.0
    %179 = vmatpush1.msra.mxu0 0.0
    %180 = vmatprep.subr.mxu0 0.0
    %181 = vmatpush1.msra.mxu0 0.0
    %182 = vmatprep.subr.mxu0 0.0
    %183 = vmatpush1.msra.mxu0 0.0
    %184 = vmatprep.subr.mxu0 0.0
    %185 = vmatpush1.msra.mxu0 0.0
    %186 = vmatprep.subr.mxu0 0.0
    %187 = vmatpush1.msra.mxu0 0.0
    %188 = vmatprep.subr.mxu0 0.0
    %189 = vmatpush1.msra.mxu0 0.0
    %190 = vmatprep.subr.mxu0 0.0
    %191 = vmatpush1.msra.mxu0 0.0
    %192 = vmatprep.subr.mxu0 0.0
    %193 = vmatpush1.msra.mxu0 0.0
    %194 = vmatprep.subr.mxu0 0.0
    %195 = vmatpush1.msra.mxu0 0.0
    %196 = vmatprep.subr.mxu0 0.0
    %197 = vmatpush1.msra.mxu0 0.0
    %198 = vmatprep.subr.mxu0 0.0
    %199 = vmatpush1.msra.mxu0 0.0
    %200 = vmatprep.subr.mxu0 0.0
    %201 = vmatpush1.msra.mxu0 0.0
    %202 = vmatprep.subr.mxu0 0.0
    %203 = vmatpush1.msra.mxu0 0.0
    %204 = vmatprep.subr.mxu0 0.0
    %205 = vmatpush1.msra.mxu0 0.0
    %206 = vmatprep.subr.mxu0 %v170
    %207 = vmatpush1.msra.mxu0 %v168
    %208 = vmatprep.subr.mxu0 0.0
    %209 = vmatpush2.msra.mxu0 0.0
    %210 = vmatprep.subr.mxu0 0.0
    %211 = vmatpush2.msra.mxu0 0.0
    %212 = vmatprep.subr.mxu0 0.0
    %213 = vmatpush2.msra.mxu0 0.0
    %214 = vmatprep.subr.mxu0 0.0
    %215 = vmatpush2.msra.mxu0 0.0
    %216 = vmatprep.subr.mxu0 0.0
    %217 = vmatpush2.msra.mxu0 0.0
    %218 = vmatprep.subr.mxu0 0.0
    %219 = vmatpush2.msra.mxu0 0.0
    %220 = vmatprep.subr.mxu0 0.0
    %221 = vmatpush2.msra.mxu0 0.0
    %222 = vmatprep.subr.mxu0 0.0
    %223 = vmatpush2.msra.mxu0 0.0
    %224 = vmatprep.subr.mxu0 0.0
    %225 = vmatpush2.msra.mxu0 0.0
    %226 = vmatprep.subr.mxu0 0.0
    %227 = vmatpush2.msra.mxu0 0.0
    %228 = vmatprep.subr.mxu0 0.0
    %229 = vmatpush2.msra.mxu0 0.0
    %230 = vmatprep.subr.mxu0 0.0
    %231 = vmatpush2.msra.mxu0 0.0
    %232 = vmatprep.subr.mxu0 0.0
    %233 = vmatpush2.msra.mxu0 0.0
    %234 = vmatprep.subr.mxu0 0.0
    %235 = vmatpush2.msra.mxu0 0.0
    %236 = vmatprep.subr.mxu0 0.0
    %237 = vmatpush2.msra.mxu0 0.0
    %238 = vmatprep.subr.mxu0 0.0
    %239 = vmatpush2.msra.mxu0 0.0
    %240 = vmatprep.mubr.f32.mxu0 0.0
    %241 = vmatmul.mubr.f32.gmra.mxu0 %v162
    %v242 = vpop.f32.mrf.mxu0
    %v243 = vadd.f32 %v139, %v242
    %v244 = vpop.f32.mrf.mxu0
    %v245 = vadd.f32 %v143, %v244
    %246 = vmatprep.mubr.f32.mxu0 0.0
    %247 = vmatmul.mubr.f32.gmra.mxu0 %v165
    %v248 = vpop.f32.mrf.mxu0
    %v249 = vadd.f32 %v139, %v248
    %v250 = vpop.f32.mrf.mxu0
    %v251 = vadd.f32 %v143, %v250
    %252 = vdwg.mxu0
    %253 = vmatprep.subr.mxu0 0.0
    %254 = vmatpush1.msra.mxu0 0.0
    %255 = vmatprep.subr.mxu0 0.0
    %256 = vmatpush1.msra.mxu0 0.0
    %257 = vmatprep.subr.mxu0 0.0
    %258 = vmatpush1.msra.mxu0 0.0
    %259 = vmatprep.subr.mxu0 0.0
    %260 = vmatpush1.msra.mxu0 0.0
    %261 = vmatprep.subr.mxu0 0.0
    %262 = vmatpush1.msra.mxu0 0.0
    %263 = vmatprep.subr.mxu0 0.0
    %264 = vmatpush1.msra.mxu0 0.0
    %265 = vmatprep.subr.mxu0 0.0
    %266 = vmatpush1.msra.mxu0 0.0
    %267 = vmatprep.subr.mxu0 0.0
    %268 = vmatpush1.msra.mxu0 0.0
    %269 = vmatprep.subr.mxu0 0.0
    %270 = vmatpush1.msra.mxu0 0.0
    %271 = vmatprep.subr.mxu0 0.0
    %272 = vmatpush1.msra.mxu0 0.0
    %273 = vmatprep.subr.mxu0 0.0
    %274 = vmatpush1.msra.mxu0 0.0
    %275 = vmatprep.subr.mxu0 0.0
    %276 = vmatpush1.msra.mxu0 0.0
    %277 = vmatprep.subr.mxu0 0.0
    %278 = vmatpush1.msra.mxu0 0.0
    %279 = vmatprep.subr.mxu0 0.0
    %280 = vmatpush1.msra.mxu0 0.0
    %281 = vmatprep.subr.mxu0 0.0
    %282 = vmatpush1.msra.mxu0 0.0
    %283 = vmatprep.subr.mxu0 %v174
    %284 = vmatpush1.msra.mxu0 %v172
    %285 = vmatprep.subr.mxu0 0.0
    %286 = vmatpush2.msra.mxu0 0.0
    %287 = vmatprep.subr.mxu0 0.0
    %288 = vmatpush2.msra.mxu0 0.0
    %289 = vmatprep.subr.mxu0 0.0
    %290 = vmatpush2.msra.mxu0 0.0
    %291 = vmatprep.subr.mxu0 0.0
    %292 = vmatpush2.msra.mxu0 0.0
    %293 = vmatprep.subr.mxu0 0.0
    %294 = vmatpush2.msra.mxu0 0.0
    %295 = vmatprep.subr.mxu0 0.0
    %296 = vmatpush2.msra.mxu0 0.0
    %297 = vmatprep.subr.mxu0 0.0
    %298 = vmatpush2.msra.mxu0 0.0
    %299 = vmatprep.subr.mxu0 0.0
    %300 = vmatpush2.msra.mxu0 0.0
    %301 = vmatprep.subr.mxu0 0.0
    %302 = vmatpush2.msra.mxu0 0.0
    %303 = vmatprep.subr.mxu0 0.0
    %304 = vmatpush2.msra.mxu0 0.0
    %305 = vmatprep.subr.mxu0 0.0
    %306 = vmatpush2.msra.mxu0 0.0
    %307 = vmatprep.subr.mxu0 0.0
    %308 = vmatpush2.msra.mxu0 0.0
    %309 = vmatprep.subr.mxu0 0.0
    %310 = vmatpush2.msra.mxu0 0.0
    %311 = vmatprep.subr.mxu0 0.0
    %312 = vmatpush2.msra.mxu0 0.0
    %313 = vmatprep.subr.mxu0 0.0
    %314 = vmatpush2.msra.mxu0 0.0
    %315 = vmatprep.subr.mxu0 0.0
    %316 = vmatpush2.msra.mxu0 0.0
    %317 = vmatprep.mubr.f32.mxu0 0.0
    %318 = vmatmul.mubr.f32.gmra.mxu0 %v162
    %v319 = vpop.f32.mrf.mxu0
    %v320 = vadd.f32 %v147, %v319
    %v321 = vpop.f32.mrf.mxu0
    %v322 = vadd.f32 %v151, %v321
    %323 = vmatprep.mubr.f32.mxu0 0.0
    %324 = vmatmul.mubr.f32.gmra.mxu0 %v165
    %v325 = vpop.f32.mrf.mxu0
    %v326 = vadd.f32 %v147, %v325
    %v327 = vpop.f32.mrf.mxu0
    %v328 = vadd.f32 %v151, %v327
    %329 = vdwg.mxu0
    %v330 = vld [vmem:[#allocation3] sm:$0xff]
    %v331 = vld [vmem:[#allocation3 + $0x8] sm:$0xff]
    %v332 = vld [vmem:[#allocation3 + $0x10] sm:$0xff]
    %v333 = vld [vmem:[#allocation3 + $0x18] sm:$0xff]
    %v334 = vld [vmem:[#allocation3 + $0x20] sm:$0xff]
    %v335 = vld [vmem:[#allocation3 + $0x28] sm:$0xff]
    %v336 = vld [vmem:[#allocation3 + $0x30] sm:$0xff]
    %v337 = vld [vmem:[#allocation3 + $0x38] sm:$0xff]
    %v338 = vld [vmem:[#allocation3 + $0x40] sm:$0xff]
    %v339 = vld [vmem:[#allocation3 + $0x48] sm:$0xff]
    %v340 = vld [vmem:[#allocation3 + $0x50] sm:$0xff]
    %v341 = vld [vmem:[#allocation3 + $0x58] sm:$0xff]
    %v342 = vld [vmem:[#allocation3 + $0x60] sm:$0xff]
    %v343 = vld [vmem:[#allocation3 + $0x68] sm:$0xff]
    %v344 = vld [vmem:[#allocation3 + $0x70] sm:$0xff]
    %v345 = vld [vmem:[#allocation3 + $0x78] sm:$0xff]
    %v346 = vld [vmem:[#allocation3 + $0x80] sm:$0xff]
    %v347 = vld [vmem:[#allocation3 + $0x88] sm:$0xff]
    %v348 = vld [vmem:[#allocation3 + $0x90] sm:$0xff]
    %v349 = vld [vmem:[#allocation3 + $0x98] sm:$0xff]
    %v350 = vld [vmem:[#allocation3 + $0xa0] sm:$0xff]
    %v351 = vld [vmem:[#allocation3 + $0xa8] sm:$0xff]
    %v352 = vld [vmem:[#allocation3 + $0xb0] sm:$0xff]
    %v353 = vld [vmem:[#allocation3 + $0xb8] sm:$0xff]
    %v354 = vld [vmem:[#allocation3 + $0xc0] sm:$0xff]
    %v355 = vld [vmem:[#allocation3 + $0xc8] sm:$0xff]
    %v356 = vld [vmem:[#allocation3 + $0xd0] sm:$0xff]
    %v357 = vld [vmem:[#allocation3 + $0xd8] sm:$0xff]
    %v358 = vld [vmem:[#allocation3 + $0xe0] sm:$0xff]
    %v359 = vld [vmem:[#allocation3 + $0xe8] sm:$0xff]
    %v360 = vld [vmem:[#allocation3 + $0xf0] sm:$0xff]
    %v361 = vld [vmem:[#allocation3 + $0xf8] sm:$0xff]
    %v362 = vld [vmem:[#allocation3 + $0x100] sm:$0xff]
    %v363 = vld [vmem:[#allocation3 + $0x108] sm:$0xff]
    %v364 = vld [vmem:[#allocation3 + $0x110] sm:$0xff]
    %v365 = vld [vmem:[#allocation3 + $0x118] sm:$0xff]
    %v366 = vld [vmem:[#allocation3 + $0x120] sm:$0xff]
    %v367 = vld [vmem:[#allocation3 + $0x128] sm:$0xff]
    %v368 = vld [vmem:[#allocation3 + $0x130] sm:$0xff]
    %v369 = vld [vmem:[#allocation3 + $0x138] sm:$0xff]
    %v370 = vld [vmem:[#allocation3 + $0x140] sm:$0xff]
    %v371 = vld [vmem:[#allocation3 + $0x148] sm:$0xff]
    %v372 = vld [vmem:[#allocation3 + $0x150] sm:$0xff]
    %v373 = vld [vmem:[#allocation3 + $0x158] sm:$0xff]
    %v374 = vld [vmem:[#allocation3 + $0x160] sm:$0xff]
    %v375 = vld [vmem:[#allocation3 + $0x168] sm:$0xff]
    %v376 = vld [vmem:[#allocation3 + $0x170] sm:$0xff]
    %v377 = vld [vmem:[#allocation3 + $0x178] sm:$0xff]
    %v378 = vld [vmem:[#allocation3 + $0x180] sm:$0xff]
    %v379 = vld [vmem:[#allocation3 + $0x188] sm:$0xff]
    %v380 = vld [vmem:[#allocation3 + $0x190] sm:$0xff]
    %v381 = vld [vmem:[#allocation3 + $0x198] sm:$0xff]
    %v382 = vld [vmem:[#allocation3 + $0x1a0] sm:$0xff]
    %v383 = vld [vmem:[#allocation3 + $0x1a8] sm:$0xff]
    %v384 = vld [vmem:[#allocation3 + $0x1b0] sm:$0xff]
    %v385 = vld [vmem:[#allocation3 + $0x1b8] sm:$0xff]
    %v386 = vld [vmem:[#allocation3 + $0x1c0] sm:$0xff]
    %v387 = vld [vmem:[#allocation3 + $0x1c8] sm:$0xff]
    %v388 = vld [vmem:[#allocation3 + $0x1d0] sm:$0xff]
    %v389 = vld [vmem:[#allocation3 + $0x1d8] sm:$0xff]
    %v390 = vld [vmem:[#allocation3 + $0x1e0] sm:$0xff]
    %v391 = vld [vmem:[#allocation3 + $0x1e8] sm:$0xff]
    %v392 = vld [vmem:[#allocation3 + $0x1f0] sm:$0xff]
    %v393 = vld [vmem:[#allocation3 + $0x1f8] sm:$0xff]
    %v394 = vld [vmem:[#allocation5] sm:$0xff]
    %v395 = vld [vmem:[#allocation5 + $0x8] sm:$0xff]
    %v396 = vld [vmem:[#allocation5 + $0x10] sm:$0xff]
    %v397 = vld [vmem:[#allocation5 + $0x18] sm:$0xff]
    %v398 = vld [vmem:[#allocation5 + $0x20] sm:$0xff]
    %v399 = vld [vmem:[#allocation5 + $0x28] sm:$0xff]
    %v400 = vld [vmem:[#allocation5 + $0x30] sm:$0xff]
    %v401 = vld [vmem:[#allocation5 + $0x38] sm:$0xff]
    %v402 = vld [vmem:[#allocation5 + $0x40] sm:$0xff]
    %v403 = vld [vmem:[#allocation5 + $0x48] sm:$0xff]
    %v404 = vld [vmem:[#allocation5 + $0x50] sm:$0xff]
    %v405 = vld [vmem:[#allocation5 + $0x58] sm:$0xff]
    %v406 = vld [vmem:[#allocation5 + $0x60] sm:$0xff]
    %v407 = vld [vmem:[#allocation5 + $0x68] sm:$0xff]
    %v408 = vld [vmem:[#allocation5 + $0x70] sm:$0xff]
    %v409 = vld [vmem:[#allocation5 + $0x78] sm:$0xff]
    %v410 = vld [vmem:[#allocation5 + $0x80] sm:$0xff]
    %v411 = vld [vmem:[#allocation5 + $0x88] sm:$0xff]
    %v412 = vld [vmem:[#allocation5 + $0x90] sm:$0xff]
    %v413 = vld [vmem:[#allocation5 + $0x98] sm:$0xff]
    %v414 = vld [vmem:[#allocation5 + $0xa0] sm:$0xff]
    %v415 = vld [vmem:[#allocation5 + $0xa8] sm:$0xff]
    %v416 = vld [vmem:[#allocation5 + $0xb0] sm:$0xff]
    %v417 = vld [vmem:[#allocation5 + $0xb8] sm:$0xff]
    %v418 = vld [vmem:[#allocation5 + $0xc0] sm:$0xff]
    %v419 = vld [vmem:[#allocation5 + $0xc8] sm:$0xff]
    %v420 = vld [vmem:[#allocation5 + $0xd0] sm:$0xff]
    %v421 = vld [vmem:[#allocation5 + $0xd8] sm:$0xff]
    %v422 = vld [vmem:[#allocation5 + $0xe0] sm:$0xff]
    %v423 = vld [vmem:[#allocation5 + $0xe8] sm:$0xff]
    %v424 = vld [vmem:[#allocation5 + $0xf0] sm:$0xff]
    %v425 = vld [vmem:[#allocation5 + $0xf8] sm:$0xff]
    %v426 = vld [vmem:[#allocation5 + $0x100] sm:$0xff]
    %v427 = vld [vmem:[#allocation5 + $0x108] sm:$0xff]
    %v428 = vld [vmem:[#allocation5 + $0x110] sm:$0xff]
    %v429 = vld [vmem:[#allocation5 + $0x118] sm:$0xff]
    %v430 = vld [vmem:[#allocation5 + $0x120] sm:$0xff]
    %v431 = vld [vmem:[#allocation5 + $0x128] sm:$0xff]
    %v432 = vld [vmem:[#allocation5 + $0x130] sm:$0xff]
    %v433 = vld [vmem:[#allocation5 + $0x138] sm:$0xff]
    %v434 = vld [vmem:[#allocation5 + $0x140] sm:$0xff]
    %v435 = vld [vmem:[#allocation5 + $0x148] sm:$0xff]
    %v436 = vld [vmem:[#allocation5 + $0x150] sm:$0xff]
    %v437 = vld [vmem:[#allocation5 + $0x158] sm:$0xff]
    %v438 = vld [vmem:[#allocation5 + $0x160] sm:$0xff]
    %v439 = vld [vmem:[#allocation5 + $0x168] sm:$0xff]
    %v440 = vld [vmem:[#allocation5 + $0x170] sm:$0xff]
    %v441 = vld [vmem:[#allocation5 + $0x178] sm:$0xff]
    %v442 = vld [vmem:[#allocation5 + $0x180] sm:$0xff]
    %v443 = vld [vmem:[#allocation5 + $0x188] sm:$0xff]
    %v444 = vld [vmem:[#allocation5 + $0x190] sm:$0xff]
    %v445 = vld [vmem:[#allocation5 + $0x198] sm:$0xff]
    %v446 = vld [vmem:[#allocation5 + $0x1a0] sm:$0xff]
    %v447 = vld [vmem:[#allocation5 + $0x1a8] sm:$0xff]
    %v448 = vld [vmem:[#allocation5 + $0x1b0] sm:$0xff]
    %v449 = vld [vmem:[#allocation5 + $0x1b8] sm:$0xff]
    %v450 = vld [vmem:[#allocation5 + $0x1c0] sm:$0xff]
    %v451 = vld [vmem:[#allocation5 + $0x1c8] sm:$0xff]
    %v452 = vld [vmem:[#allocation5 + $0x1d0] sm:$0xff]
    %v453 = vld [vmem:[#allocation5 + $0x1d8] sm:$0xff]
    %v454 = vld [vmem:[#allocation5 + $0x1e0] sm:$0xff]
    %v455 = vld [vmem:[#allocation5 + $0x1e8] sm:$0xff]
    %v456 = vld [vmem:[#allocation5 + $0x1f0] sm:$0xff]
    %v457 = vld [vmem:[#allocation5 + $0x1f8] sm:$0xff]
    %v458 = vld [vmem:[#allocation5 + $0x200] sm:$0xff]
    %v459 = vld [vmem:[#allocation5 + $0x208] sm:$0xff]
    %v460 = vld [vmem:[#allocation5 + $0x210] sm:$0xff]
    %v461 = vld [vmem:[#allocation5 + $0x218] sm:$0xff]
    %v462 = vld [vmem:[#allocation5 + $0x220] sm:$0xff]
    %v463 = vld [vmem:[#allocation5 + $0x228] sm:$0xff]
    %v464 = vld [vmem:[#allocation5 + $0x230] sm:$0xff]
    %v465 = vld [vmem:[#allocation5 + $0x238] sm:$0xff]
    %v466 = vld [vmem:[#allocation5 + $0x240] sm:$0xff]
    %v467 = vld [vmem:[#allocation5 + $0x248] sm:$0xff]
    %v468 = vld [vmem:[#allocation5 + $0x250] sm:$0xff]
    %v469 = vld [vmem:[#allocation5 + $0x258] sm:$0xff]
    %v470 = vld [vmem:[#allocation5 + $0x260] sm:$0xff]
    %v471 = vld [vmem:[#allocation5 + $0x268] sm:$0xff]
    %v472 = vld [vmem:[#allocation5 + $0x270] sm:$0xff]
    %v473 = vld [vmem:[#allocation5 + $0x278] sm:$0xff]
    %v474 = vld [vmem:[#allocation5 + $0x280] sm:$0xff]
    %v475 = vld [vmem:[#allocation5 + $0x288] sm:$0xff]
    %v476 = vld [vmem:[#allocation5 + $0x290] sm:$0xff]
    %v477 = vld [vmem:[#allocation5 + $0x298] sm:$0xff]
    %v478 = vld [vmem:[#allocation5 + $0x2a0] sm:$0xff]
    %v479 = vld [vmem:[#allocation5 + $0x2a8] sm:$0xff]
    %v480 = vld [vmem:[#allocation5 + $0x2b0] sm:$0xff]
    %v481 = vld [vmem:[#allocation5 + $0x2b8] sm:$0xff]
    %v482 = vld [vmem:[#allocation5 + $0x2c0] sm:$0xff]
    %v483 = vld [vmem:[#allocation5 + $0x2c8] sm:$0xff]
    %v484 = vld [vmem:[#allocation5 + $0x2d0] sm:$0xff]
    %v485 = vld [vmem:[#allocation5 + $0x2d8] sm:$0xff]
    %v486 = vld [vmem:[#allocation5 + $0x2e0] sm:$0xff]
    %v487 = vld [vmem:[#allocation5 + $0x2e8] sm:$0xff]
    %v488 = vld [vmem:[#allocation5 + $0x2f0] sm:$0xff]
    %v489 = vld [vmem:[#allocation5 + $0x2f8] sm:$0xff]
    %v490 = vld [vmem:[#allocation5 + $0x300] sm:$0xff]
    %v491 = vld [vmem:[#allocation5 + $0x308] sm:$0xff]
    %v492 = vld [vmem:[#allocation5 + $0x310] sm:$0xff]
    %v493 = vld [vmem:[#allocation5 + $0x318] sm:$0xff]
    %v494 = vld [vmem:[#allocation5 + $0x320] sm:$0xff]
    %v495 = vld [vmem:[#allocation5 + $0x328] sm:$0xff]
    %v496 = vld [vmem:[#allocation5 + $0x330] sm:$0xff]
    %v497 = vld [vmem:[#allocation5 + $0x338] sm:$0xff]
    %v498 = vld [vmem:[#allocation5 + $0x340] sm:$0xff]
    %v499 = vld [vmem:[#allocation5 + $0x348] sm:$0xff]
    %v500 = vld [vmem:[#allocation5 + $0x350] sm:$0xff]
    %v501 = vld [vmem:[#allocation5 + $0x358] sm:$0xff]
    %v502 = vld [vmem:[#allocation5 + $0x360] sm:$0xff]
    %v503 = vld [vmem:[#allocation5 + $0x368] sm:$0xff]
    %v504 = vld [vmem:[#allocation5 + $0x370] sm:$0xff]
    %v505 = vld [vmem:[#allocation5 + $0x378] sm:$0xff]
    %v506 = vld [vmem:[#allocation5 + $0x380] sm:$0xff]
    %v507 = vld [vmem:[#allocation5 + $0x388] sm:$0xff]
    %v508 = vld [vmem:[#allocation5 + $0x390] sm:$0xff]
    %v509 = vld [vmem:[#allocation5 + $0x398] sm:$0xff]
    %v510 = vld [vmem:[#allocation5 + $0x3a0] sm:$0xff]
    %v511 = vld [vmem:[#allocation5 + $0x3a8] sm:$0xff]
    %v512 = vld [vmem:[#allocation5 + $0x3b0] sm:$0xff]
    %v513 = vld [vmem:[#allocation5 + $0x3b8] sm:$0xff]
    %v514 = vld [vmem:[#allocation5 + $0x3c0] sm:$0xff]
    %v515 = vld [vmem:[#allocation5 + $0x3c8] sm:$0xff]
    %v516 = vld [vmem:[#allocation5 + $0x3d0] sm:$0xff]
    %v517 = vld [vmem:[#allocation5 + $0x3d8] sm:$0xff]
    %v518 = vld [vmem:[#allocation5 + $0x3e0] sm:$0xff]
    %v519 = vld [vmem:[#allocation5 + $0x3e8] sm:$0xff]
    %v520 = vld [vmem:[#allocation5 + $0x3f0] sm:$0xff]
    %v521 = vld [vmem:[#allocation5 + $0x3f8] sm:$0xff]
    %v522 = vld [vmem:[%s5] sm:$0xf]
    %523 = vmatprep.subr.mxu0 %v391
    %524 = vmatpush1.msra.mxu0 %v390
    %525 = vmatprep.subr.mxu0 %v387
    %526 = vmatpush1.msra.mxu0 %v386
    %527 = vmatprep.subr.mxu0 %v383
    %528 = vmatpush1.msra.mxu0 %v382
    %529 = vmatprep.subr.mxu0 %v379
    %530 = vmatpush1.msra.mxu0 %v378
    %531 = vmatprep.subr.mxu0 %v375
    %532 = vmatpush1.msra.mxu0 %v374
    %533 = vmatprep.subr.mxu0 %v371
    %534 = vmatpush1.msra.mxu0 %v370
    %535 = vmatprep.subr.mxu0 %v367
    %536 = vmatpush1.msra.mxu0 %v366
    %537 = vmatprep.subr.mxu0 %v363
    %538 = vmatpush1.msra.mxu0 %v362
    %539 = vmatprep.subr.mxu0 %v359
    %540 = vmatpush1.msra.mxu0 %v358
    %541 = vmatprep.subr.mxu0 %v355
    %542 = vmatpush1.msra.mxu0 %v354
    %543 = vmatprep.subr.mxu0 %v351
    %544 = vmatpush1.msra.mxu0 %v350
    %545 = vmatprep.subr.mxu0 %v347
    %546 = vmatpush1.msra.mxu0 %v346
    %547 = vmatprep.subr.mxu0 %v343
    %548 = vmatpush1.msra.mxu0 %v342
    %549 = vmatprep.subr.mxu0 %v339
    %550 = vmatpush1.msra.mxu0 %v338
    %551 = vmatprep.subr.mxu0 %v335
    %552 = vmatpush1.msra.mxu0 %v334
    %553 = vmatprep.subr.mxu0 %v331
    %554 = vmatpush1.msra.mxu0 %v330
    %555 = vmatprep.subr.mxu0 0.0
    %556 = vmatpush2.msra.mxu0 0.0
    %557 = vmatprep.subr.mxu0 0.0
    %558 = vmatpush2.msra.mxu0 0.0
    %559 = vmatprep.subr.mxu0 0.0
    %560 = vmatpush2.msra.mxu0 0.0
    %561 = vmatprep.subr.mxu0 0.0
    %562 = vmatpush2.msra.mxu0 0.0
    %563 = vmatprep.subr.mxu0 0.0
    %564 = vmatpush2.msra.mxu0 0.0
    %565 = vmatprep.subr.mxu0 0.0
    %566 = vmatpush2.msra.mxu0 0.0
    %567 = vmatprep.subr.mxu0 0.0
    %568 = vmatpush2.msra.mxu0 0.0
    %569 = vmatprep.subr.mxu0 0.0
    %570 = vmatpush2.msra.mxu0 0.0
    %571 = vmatprep.subr.mxu0 0.0
    %572 = vmatpush2.msra.mxu0 0.0
    %573 = vmatprep.subr.mxu0 0.0
    %574 = vmatpush2.msra.mxu0 0.0
    %575 = vmatprep.subr.mxu0 0.0
    %576 = vmatpush2.msra.mxu0 0.0
    %577 = vmatprep.subr.mxu0 0.0
    %578 = vmatpush2.msra.mxu0 0.0
    %579 = vmatprep.subr.mxu0 0.0
    %580 = vmatpush2.msra.mxu0 0.0
    %581 = vmatprep.subr.mxu0 0.0
    %582 = vmatpush2.msra.mxu0 0.0
    %583 = vmatprep.subr.mxu0 0.0
    %584 = vmatpush2.msra.mxu0 0.0
    %585 = vmatprep.subr.mxu0 0.0
    %586 = vmatpush2.msra.mxu0 0.0
    %587 = vmatprep.mubr.f32.mxu0 0.0
    %588 = vmatmul.mubr.f32.gmra.mxu0 0.0
    %v589 = vpop.f32.mrf.mxu0
    %v590 = vadd.f32 0.0, %v589
    %v591 = vpop.f32.mrf.mxu0
    %v592 = vadd.f32 0.0, %v591
    %593 = vdwg.mxu0
    %594 = vmatprep.subr.mxu0 %v393
    %595 = vmatpush1.msra.mxu0 %v392
    %596 = vmatprep.subr.mxu0 %v389
    %597 = vmatpush1.msra.mxu0 %v388
    %598 = vmatprep.subr.mxu0 %v385
    %599 = vmatpush1.msra.mxu0 %v384
    %600 = vmatprep.subr.mxu0 %v381
    %601 = vmatpush1.msra.mxu0 %v380
    %602 = vmatprep.subr.mxu0 %v377
    %603 = vmatpush1.msra.mxu0 %v376
    %604 = vmatprep.subr.mxu0 %v373
    %605 = vmatpush1.msra.mxu0 %v372
    %606 = vmatprep.subr.mxu0 %v369
    %607 = vmatpush1.msra.mxu0 %v368
    %608 = vmatprep.subr.mxu0 %v365
    %609 = vmatpush1.msra.mxu0 %v364
    %610 = vmatprep.subr.mxu0 %v361
    %611 = vmatpush1.msra.mxu0 %v360
    %612 = vmatprep.subr.mxu0 %v357
    %613 = vmatpush1.msra.mxu0 %v356
    %614 = vmatprep.subr.mxu0 %v353
    %615 = vmatpush1.msra.mxu0 %v352
    %616 = vmatprep.subr.mxu0 %v349
    %617 = vmatpush1.msra.mxu0 %v348
    %618 = vmatprep.subr.mxu0 %v345
    %619 = vmatpush1.msra.mxu0 %v344
    %620 = vmatprep.subr.mxu0 %v341
    %621 = vmatpush1.msra.mxu0 %v340
    %622 = vmatprep.subr.mxu0 %v337
    %623 = vmatpush1.msra.mxu0 %v336
    %624 = vmatprep.subr.mxu0 %v333
    %625 = vmatpush1.msra.mxu0 %v332
    %626 = vmatprep.subr.mxu0 0.0
    %627 = vmatpush2.msra.mxu0 0.0
    %628 = vmatprep.subr.mxu0 0.0
    %629 = vmatpush2.msra.mxu0 0.0
    %630 = vmatprep.subr.mxu0 0.0
    %631 = vmatpush2.msra.mxu0 0.0
    %632 = vmatprep.subr.mxu0 0.0
    %633 = vmatpush2.msra.mxu0 0.0
    %634 = vmatprep.subr.mxu0 0.0
    %635 = vmatpush2.msra.mxu0 0.0
    %636 = vmatprep.subr.mxu0 0.0
    %637 = vmatpush2.msra.mxu0 0.0
    %638 = vmatprep.subr.mxu0 0.0
    %639 = vmatpush2.msra.mxu0 0.0
    %640 = vmatprep.subr.mxu0 0.0
    %641 = vmatpush2.msra.mxu0 0.0
    %642 = vmatprep.subr.mxu0 0.0
    %643 = vmatpush2.msra.mxu0 0.0
    %644 = vmatprep.subr.mxu0 0.0
    %645 = vmatpush2.msra.mxu0 0.0
    %646 = vmatprep.subr.mxu0 0.0
    %647 = vmatpush2.msra.mxu0 0.0
    %648 = vmatprep.subr.mxu0 0.0
    %649 = vmatpush2.msra.mxu0 0.0
    %650 = vmatprep.subr.mxu0 0.0
    %651 = vmatpush2.msra.mxu0 0.0
    %652 = vmatprep.subr.mxu0 0.0
    %653 = vmatpush2.msra.mxu0 0.0
    %654 = vmatprep.subr.mxu0 0.0
    %655 = vmatpush2.msra.mxu0 0.0
    %656 = vmatprep.subr.mxu0 0.0
    %657 = vmatpush2.msra.mxu0 0.0
    %658 = vmatprep.mubr.f32.mxu0 0.0
    %659 = vmatmul.mubr.f32.gmra.mxu0 0.0
    %v660 = vpop.f32.mrf.mxu0
    %v661 = vadd.f32 0.0, %v660
    %v662 = vpop.f32.mrf.mxu0
    %v663 = vadd.f32 0.0, %v662
    %664 = vdwg.mxu0
    %v665 = vadd.f32 %v243, %v590
    %v666 = vadd.f32 %v245, %v592
    %v667 = vadd.f32 %v320, %v661
    %v668 = vadd.f32 %v322, %v663
    %v669 = vmul.f32 %v665, %v126
    %v670 = vmul.f32 %v666, %v127
    %v671 = vmul.f32 %v667, %v128
    %v672 = vmul.f32 %v668, %v129
    %v673 = vtanh.pop %v669
    %v674 = vtanh.pop %v670
    %v675 = vtanh.pop %v671
    %v676 = vtanh.pop %v672
    %v677 = vadd.f32 %v673, 1.0
    %v678 = vmul.f32 %v677, 0.5
    %v679 = vadd.f32 %v674, 1.0
    %v680 = vmul.f32 %v679, 0.5
    %v681 = vadd.f32 %v676, 1.0
    %v682 = vmul.f32 %v681, 0.5
    %v683 = vmul.f32 %v680, 0.0
    %v684 = vmul.f32 %v678, %v675
    %v685 = vadd.f32 %v683, %v684
    %v686 = vtanh.pop %v685
    %v687 = vmul.f32 %v682, %v686
    %v689 = vlaneseq
    %v690 = vshrl.u32 %v689, 7
    %v691 = vsub.s32 0, %v690
    %v692 = vrot.slane %v522, %v691
    %v693 = vlaneseq
    %v694 = vshrl.u32 %v693, 7
    %v695 = vsub.s32 1, %v694
    %v696 = vrot.slane %v522, %v695
    %v697 = vlaneseq
    %v698 = vshrl.u32 %v697, 7
    %v699 = vsub.s32 2, %v698
    %v700 = vrot.slane %v522, %v699
    %v701 = vlaneseq
    %v702 = vshrl.u32 %v701, 7
    %v703 = vsub.s32 3, %v702
    %v704 = vrot.slane %v522, %v703
    %709 = vmatprep.subr.mxu0 %v455
    %710 = vmatpush1.msra.mxu0 %v454
    %711 = vmatprep.subr.mxu0 %v451
    %712 = vmatpush1.msra.mxu0 %v450
    %713 = vmatprep.subr.mxu0 %v447
    %714 = vmatpush1.msra.mxu0 %v446
    %715 = vmatprep.subr.mxu0 %v443
    %716 = vmatpush1.msra.mxu0 %v442
    %717 = vmatprep.subr.mxu0 %v439
    %718 = vmatpush1.msra.mxu0 %v438
    %719 = vmatprep.subr.mxu0 %v435
    %720 = vmatpush1.msra.mxu0 %v434
    %721 = vmatprep.subr.mxu0 %v431
    %722 = vmatpush1.msra.mxu0 %v430
    %723 = vmatprep.subr.mxu0 %v427
    %724 = vmatpush1.msra.mxu0 %v426
    %725 = vmatprep.subr.mxu0 %v423
    %726 = vmatpush1.msra.mxu0 %v422
    %727 = vmatprep.subr.mxu0 %v419
    %728 = vmatpush1.msra.mxu0 %v418
    %729 = vmatprep.subr.mxu0 %v415
    %730 = vmatpush1.msra.mxu0 %v414
    %731 = vmatprep.subr.mxu0 %v411
    %732 = vmatpush1.msra.mxu0 %v410
    %733 = vmatprep.subr.mxu0 %v407
    %734 = vmatpush1.msra.mxu0 %v406
    %735 = vmatprep.subr.mxu0 %v403
    %736 = vmatpush1.msra.mxu0 %v402
    %737 = vmatprep.subr.mxu0 %v399
    %738 = vmatpush1.msra.mxu0 %v398
    %739 = vmatprep.subr.mxu0 %v395
    %740 = vmatpush1.msra.mxu0 %v394
    %741 = vmatprep.subr.mxu0 %v519
    %742 = vmatpush2.msra.mxu0 %v518
    %743 = vmatprep.subr.mxu0 %v515
    %744 = vmatpush2.msra.mxu0 %v514
    %745 = vmatprep.subr.mxu0 %v511
    %746 = vmatpush2.msra.mxu0 %v510
    %747 = vmatprep.subr.mxu0 %v507
    %748 = vmatpush2.msra.mxu0 %v506
    %749 = vmatprep.subr.mxu0 %v503
    %750 = vmatpush2.msra.mxu0 %v502
    %751 = vmatprep.subr.mxu0 %v499
    %752 = vmatpush2.msra.mxu0 %v498
    %753 = vmatprep.subr.mxu0 %v495
    %754 = vmatpush2.msra.mxu0 %v494
    %755 = vmatprep.subr.mxu0 %v491
    %756 = vmatpush2.msra.mxu0 %v490
    %757 = vmatprep.subr.mxu0 %v487
    %758 = vmatpush2.msra.mxu0 %v486
    %759 = vmatprep.subr.mxu0 %v483
    %760 = vmatpush2.msra.mxu0 %v482
    %761 = vmatprep.subr.mxu0 %v479
    %762 = vmatpush2.msra.mxu0 %v478
    %763 = vmatprep.subr.mxu0 %v475
    %764 = vmatpush2.msra.mxu0 %v474
    %765 = vmatprep.subr.mxu0 %v471
    %766 = vmatpush2.msra.mxu0 %v470
    %767 = vmatprep.subr.mxu0 %v467
    %768 = vmatpush2.msra.mxu0 %v466
    %769 = vmatprep.subr.mxu0 %v463
    %770 = vmatpush2.msra.mxu0 %v462
    %771 = vmatprep.subr.mxu0 %v459
    %772 = vmatpush2.msra.mxu0 %v458
    %773 = vmatprep.mubr.f32.mxu0 0.0
    %774 = vmatmul.mubr.f32.gmra.mxu0 %v687
    %v775 = vpop.f32.mrf.mxu0
    %v776 = vadd.f32 %v692, %v775
    %v777 = vpop.f32.mrf.mxu0
    %v778 = vadd.f32 %v696, %v777
    %779 = vdwg.mxu0
    %780 = vmatprep.subr.mxu0 %v457
    %781 = vmatpush1.msra.mxu0 %v456
    %782 = vmatprep.subr.mxu0 %v453
    %783 = vmatpush1.msra.mxu0 %v452
    %784 = vmatprep.subr.mxu0 %v449
    %785 = vmatpush1.msra.mxu0 %v448
    %786 = vmatprep.subr.mxu0 %v445
    %787 = vmatpush1.msra.mxu0 %v444
    %788 = vmatprep.subr.mxu0 %v441
    %789 = vmatpush1.msra.mxu0 %v440
    %790 = vmatprep.subr.mxu0 %v437
    %791 = vmatpush1.msra.mxu0 %v436
    %792 = vmatprep.subr.mxu0 %v433
    %793 = vmatpush1.msra.mxu0 %v432
    %794 = vmatprep.subr.mxu0 %v429
    %795 = vmatpush1.msra.mxu0 %v428
    %796 = vmatprep.subr.mxu0 %v425
    %797 = vmatpush1.msra.mxu0 %v424
    %798 = vmatprep.subr.mxu0 %v421
    %799 = vmatpush1.msra.mxu0 %v420
    %800 = vmatprep.subr.mxu0 %v417
    %801 = vmatpush1.msra.mxu0 %v416
    %802 = vmatprep.subr.mxu0 %v413
    %803 = vmatpush1.msra.mxu0 %v412
    %804 = vmatprep.subr.mxu0 %v409
    %805 = vmatpush1.msra.mxu0 %v408
    %806 = vmatprep.subr.mxu0 %v405
    %807 = vmatpush1.msra.mxu0 %v404
    %808 = vmatprep.subr.mxu0 %v401
    %809 = vmatpush1.msra.mxu0 %v400
    %810 = vmatprep.subr.mxu0 %v397
    %811 = vmatpush1.msra.mxu0 %v396
    %812 = vmatprep.subr.mxu0 %v521
    %813 = vmatpush2.msra.mxu0 %v520
    %814 = vmatprep.subr.mxu0 %v517
    %815 = vmatpush2.msra.mxu0 %v516
    %816 = vmatprep.subr.mxu0 %v513
    %817 = vmatpush2.msra.mxu0 %v512
    %818 = vmatprep.subr.mxu0 %v509
    %819 = vmatpush2.msra.mxu0 %v508
    %820 = vmatprep.subr.mxu0 %v505
    %821 = vmatpush2.msra.mxu0 %v504
    %822 = vmatprep.subr.mxu0 %v501
    %823 = vmatpush2.msra.mxu0 %v500
    %824 = vmatprep.subr.mxu0 %v497
    %825 = vmatpush2.msra.mxu0 %v496
    %826 = vmatprep.subr.mxu0 %v493
    %827 = vmatpush2.msra.mxu0 %v492
    %828 = vmatprep.subr.mxu0 %v489
    %829 = vmatpush2.msra.mxu0 %v488
    %830 = vmatprep.subr.mxu0 %v485
    %831 = vmatpush2.msra.mxu0 %v484
    %832 = vmatprep.subr.mxu0 %v481
    %833 = vmatpush2.msra.mxu0 %v480
    %834 = vmatprep.subr.mxu0 %v477
    %835 = vmatpush2.msra.mxu0 %v476
    %836 = vmatprep.subr.mxu0 %v473
    %837 = vmatpush2.msra.mxu0 %v472
    %838 = vmatprep.subr.mxu0 %v469
    %839 = vmatpush2.msra.mxu0 %v468
    %840 = vmatprep.subr.mxu0 %v465
    %841 = vmatpush2.msra.mxu0 %v464
    %842 = vmatprep.subr.mxu0 %v461
    %843 = vmatpush2.msra.mxu0 %v460
    %844 = vmatprep.mubr.f32.mxu0 0.0
    %845 = vmatmul.mubr.f32.gmra.mxu0 %v687
    %v846 = vpop.f32.mrf.mxu0
    %v847 = vadd.f32 %v700, %v846
    %v848 = vpop.f32.mrf.mxu0
    %v849 = vadd.f32 %v704, %v848
    %850 = vdwg.mxu0
    %v851 = vmul.f32 %v776, %v126
    %v852 = vmul.f32 %v778, %v127
    %v853 = vmul.f32 %v847, %v128
    %v854 = vmul.f32 %v849, %v129
    %v855 = vtanh.pop %v851
    %v856 = vtanh.pop %v852
    %v857 = vtanh.pop %v853
    %v858 = vtanh.pop %v854
    %v859 = vadd.f32 %v855, 1.0
    %v860 = vmul.f32 %v859, 0.5
    %v861 = vadd.f32 %v856, 1.0
    %v862 = vmul.f32 %v861, 0.5
    %v863 = vadd.f32 %v858, 1.0
    %v864 = vmul.f32 %v863, 0.5
    %v865 = vmul.f32 %v862, 0.0
    %v866 = vmul.f32 %v860, %v857
    %v867 = vadd.f32 %v865, %v866
    %v868 = vtanh.pop %v867
    %v869 = vmul.f32 %v864, %v868
    %870 = vmatprep.subr.mxu0 %v391
    %871 = vmatpush1.msra.mxu0 %v390
    %872 = vmatprep.subr.mxu0 %v387
    %873 = vmatpush1.msra.mxu0 %v386
    %874 = vmatprep.subr.mxu0 %v383
    %875 = vmatpush1.msra.mxu0 %v382
    %876 = vmatprep.subr.mxu0 %v379
    %877 = vmatpush1.msra.mxu0 %v378
    %878 = vmatprep.subr.mxu0 %v375
    %879 = vmatpush1.msra.mxu0 %v374
    %880 = vmatprep.subr.mxu0 %v371
    %881 = vmatpush1.msra.mxu0 %v370
    %882 = vmatprep.subr.mxu0 %v367
    %883 = vmatpush1.msra.mxu0 %v366
    %884 = vmatprep.subr.mxu0 %v363
    %885 = vmatpush1.msra.mxu0 %v362
    %886 = vmatprep.subr.mxu0 %v359
    %887 = vmatpush1.msra.mxu0 %v358
    %888 = vmatprep.subr.mxu0 %v355
    %889 = vmatpush1.msra.mxu0 %v354
    %890 = vmatprep.subr.mxu0 %v351
    %891 = vmatpush1.msra.mxu0 %v350
    %892 = vmatprep.subr.mxu0 %v347
    %893 = vmatpush1.msra.mxu0 %v346
    %894 = vmatprep.subr.mxu0 %v343
    %895 = vmatpush1.msra.mxu0 %v342
    %896 = vmatprep.subr.mxu0 %v339
    %897 = vmatpush1.msra.mxu0 %v338
    %898 = vmatprep.subr.mxu0 %v335
    %899 = vmatpush1.msra.mxu0 %v334
    %900 = vmatprep.subr.mxu0 %v331
    %901 = vmatpush1.msra.mxu0 %v330
    %902 = vmatprep.subr.mxu0 0.0
    %903 = vmatpush2.msra.mxu0 0.0
    %904 = vmatprep.subr.mxu0 0.0
    %905 = vmatpush2.msra.mxu0 0.0
    %906 = vmatprep.subr.mxu0 0.0
    %907 = vmatpush2.msra.mxu0 0.0
    %908 = vmatprep.subr.mxu0 0.0
    %909 = vmatpush2.msra.mxu0 0.0
    %910 = vmatprep.subr.mxu0 0.0
    %911 = vmatpush2.msra.mxu0 0.0
    %912 = vmatprep.subr.mxu0 0.0
    %913 = vmatpush2.msra.mxu0 0.0
    %914 = vmatprep.subr.mxu0 0.0
    %915 = vmatpush2.msra.mxu0 0.0
    %916 = vmatprep.subr.mxu0 0.0
    %917 = vmatpush2.msra.mxu0 0.0
    %918 = vmatprep.subr.mxu0 0.0
    %919 = vmatpush2.msra.mxu0 0.0
    %920 = vmatprep.subr.mxu0 0.0
    %921 = vmatpush2.msra.mxu0 0.0
    %922 = vmatprep.subr.mxu0 0.0
    %923 = vmatpush2.msra.mxu0 0.0
    %924 = vmatprep.subr.mxu0 0.0
    %925 = vmatpush2.msra.mxu0 0.0
    %926 = vmatprep.subr.mxu0 0.0
    %927 = vmatpush2.msra.mxu0 0.0
    %928 = vmatprep.subr.mxu0 0.0
    %929 = vmatpush2.msra.mxu0 0.0
    %930 = vmatprep.subr.mxu0 0.0
    %931 = vmatpush2.msra.mxu0 0.0
    %932 = vmatprep.subr.mxu0 0.0
    %933 = vmatpush2.msra.mxu0 0.0
    %934 = vmatprep.mubr.f32.mxu0 0.0
    %935 = vmatmul.mubr.f32.gmra.mxu0 %v687
    %v936 = vpop.f32.mrf.mxu0
    %v937 = vadd.f32 0.0, %v936
    %v938 = vpop.f32.mrf.mxu0
    %v939 = vadd.f32 0.0, %v938
    %940 = vdwg.mxu0
    %941 = vmatprep.subr.mxu0 %v393
    %942 = vmatpush1.msra.mxu0 %v392
    %943 = vmatprep.subr.mxu0 %v389
    %944 = vmatpush1.msra.mxu0 %v388
    %945 = vmatprep.subr.mxu0 %v385
    %946 = vmatpush1.msra.mxu0 %v384
    %947 = vmatprep.subr.mxu0 %v381
    %948 = vmatpush1.msra.mxu0 %v380
    %949 = vmatprep.subr.mxu0 %v377
    %950 = vmatpush1.msra.mxu0 %v376
    %951 = vmatprep.subr.mxu0 %v373
    %952 = vmatpush1.msra.mxu0 %v372
    %953 = vmatprep.subr.mxu0 %v369
    %954 = vmatpush1.msra.mxu0 %v368
    %955 = vmatprep.subr.mxu0 %v365
    %956 = vmatpush1.msra.mxu0 %v364
    %957 = vmatprep.subr.mxu0 %v361
    %958 = vmatpush1.msra.mxu0 %v360
    %959 = vmatprep.subr.mxu0 %v357
    %960 = vmatpush1.msra.mxu0 %v356
    %961 = vmatprep.subr.mxu0 %v353
    %962 = vmatpush1.msra.mxu0 %v352
    %963 = vmatprep.subr.mxu0 %v349
    %964 = vmatpush1.msra.mxu0 %v348
    %965 = vmatprep.subr.mxu0 %v345
    %966 = vmatpush1.msra.mxu0 %v344
    %967 = vmatprep.subr.mxu0 %v341
    %968 = vmatpush1.msra.mxu0 %v340
    %969 = vmatprep.subr.mxu0 %v337
    %970 = vmatpush1.msra.mxu0 %v336
    %971 = vmatprep.subr.mxu0 %v333
    %972 = vmatpush1.msra.mxu0 %v332
    %973 = vmatprep.subr.mxu0 0.0
    %974 = vmatpush2.msra.mxu0 0.0
    %975 = vmatprep.subr.mxu0 0.0
    %976 = vmatpush2.msra.mxu0 0.0
    %977 = vmatprep.subr.mxu0 0.0
    %978 = vmatpush2.msra.mxu0 0.0
    %979 = vmatprep.subr.mxu0 0.0
    %980 = vmatpush2.msra.mxu0 0.0
    %981 = vmatprep.subr.mxu0 0.0
    %982 = vmatpush2.msra.mxu0 0.0
    %983 = vmatprep.subr.mxu0 0.0
    %984 = vmatpush2.msra.mxu0 0.0
    %985 = vmatprep.subr.mxu0 0.0
    %986 = vmatpush2.msra.mxu0 0.0
    %987 = vmatprep.subr.mxu0 0.0
    %988 = vmatpush2.msra.mxu0 0.0
    %989 = vmatprep.subr.mxu0 0.0
    %990 = vmatpush2.msra.mxu0 0.0
    %991 = vmatprep.subr.mxu0 0.0
    %992 = vmatpush2.msra.mxu0 0.0
    %993 = vmatprep.subr.mxu0 0.0
    %994 = vmatpush2.msra.mxu0 0.0
    %995 = vmatprep.subr.mxu0 0.0
    %996 = vmatpush2.msra.mxu0 0.0
    %997 = vmatprep.subr.mxu0 0.0
    %998 = vmatpush2.msra.mxu0 0.0
    %999 = vmatprep.subr.mxu0 0.0
    %1000 = vmatpush2.msra.mxu0 0.0
    %1001 = vmatprep.subr.mxu0 0.0
    %1002 = vmatpush2.msra.mxu0 0.0
    %1003 = vmatprep.subr.mxu0 0.0
    %1004 = vmatpush2.msra.mxu0 0.0
    %1005 = vmatprep.mubr.f32.mxu0 0.0
    %1006 = vmatmul.mubr.f32.gmra.mxu0 %v687
    %v1007 = vpop.f32.mrf.mxu0
    %v1008 = vadd.f32 0.0, %v1007
    %v1009 = vpop.f32.mrf.mxu0
    %v1010 = vadd.f32 0.0, %v1009
    %1011 = vdwg.mxu0
    %v1016 = vrot.slane %v937, 6
    %v1017 = vrot.slane %v939, 6
    %v1018 = vrot.slane %v1008, 6
    %v1019 = vrot.slane %v1010, 6
    %v1024 = vadd.f32 %v243, %v1016
    %v1025 = vadd.f32 %v245, %v1017
    %v1026 = vadd.f32 %v320, %v1018
    %v1027 = vadd.f32 %v322, %v1019
    %v1028 = vmul.f32 %v1024, %v126
    %v1029 = vmul.f32 %v1025, %v127
    %v1030 = vmul.f32 %v1026, %v128
    %v1031 = vmul.f32 %v1027, %v129
    %v1032 = vtanh.pop %v1028
    %v1033 = vtanh.pop %v1029
    %v1034 = vtanh.pop %v1030
    %v1035 = vtanh.pop %v1031
    %v1036 = vadd.f32 %v1032, 1.0
    %v1037 = vmul.f32 %v1036, 0.5
    %v1038 = vadd.f32 %v1033, 1.0
    %v1039 = vmul.f32 %v1038, 0.5
    %v1040 = vadd.f32 %v1035, 1.0
    %v1041 = vmul.f32 %v1040, 0.5
    %v1043 = vrot.slane %v685, 6
    %v1045 = vmul.f32 %v1039, %v1043
    %v1046 = vmul.f32 %v1037, %v1034
    %v1047 = vadd.f32 %v1045, %v1046
    %v1048 = vtanh.pop %v1047
    %v1049 = vmul.f32 %v1041, %v1048
    %v1051 = vrot.slane %v869, 6
    %v1053 = vrot.slane %v1049, 2
    %v1054 = vrot.slane %v1051, 2
    %1057 = vmatprep.subr.mxu0 %v455
    %1058 = vmatpush1.msra.mxu0 %v454
    %1059 = vmatprep.subr.mxu0 %v451
    %1060 = vmatpush1.msra.mxu0 %v450
    %1061 = vmatprep.subr.mxu0 %v447
    %1062 = vmatpush1.msra.mxu0 %v446
    %1063 = vmatprep.subr.mxu0 %v443
    %1064 = vmatpush1.msra.mxu0 %v442
    %1065 = vmatprep.subr.mxu0 %v439
    %1066 = vmatpush1.msra.mxu0 %v438
    %1067 = vmatprep.subr.mxu0 %v435
    %1068 = vmatpush1.msra.mxu0 %v434
    %1069 = vmatprep.subr.mxu0 %v431
    %1070 = vmatpush1.msra.mxu0 %v430
    %1071 = vmatprep.subr.mxu0 %v427
    %1072 = vmatpush1.msra.mxu0 %v426
    %1073 = vmatprep.subr.mxu0 %v423
    %1074 = vmatpush1.msra.mxu0 %v422
    %1075 = vmatprep.subr.mxu0 %v419
    %1076 = vmatpush1.msra.mxu0 %v418
    %1077 = vmatprep.subr.mxu0 %v415
    %1078 = vmatpush1.msra.mxu0 %v414
    %1079 = vmatprep.subr.mxu0 %v411
    %1080 = vmatpush1.msra.mxu0 %v410
    %1081 = vmatprep.subr.mxu0 %v407
    %1082 = vmatpush1.msra.mxu0 %v406
    %1083 = vmatprep.subr.mxu0 %v403
    %1084 = vmatpush1.msra.mxu0 %v402
    %1085 = vmatprep.subr.mxu0 %v399
    %1086 = vmatpush1.msra.mxu0 %v398
    %1087 = vmatprep.subr.mxu0 %v395
    %1088 = vmatpush1.msra.mxu0 %v394
    %1089 = vmatprep.subr.mxu0 %v519
    %1090 = vmatpush2.msra.mxu0 %v518
    %1091 = vmatprep.subr.mxu0 %v515
    %1092 = vmatpush2.msra.mxu0 %v514
    %1093 = vmatprep.subr.mxu0 %v511
    %1094 = vmatpush2.msra.mxu0 %v510
    %1095 = vmatprep.subr.mxu0 %v507
    %1096 = vmatpush2.msra.mxu0 %v506
    %1097 = vmatprep.subr.mxu0 %v503
    %1098 = vmatpush2.msra.mxu0 %v502
    %1099 = vmatprep.subr.mxu0 %v499
    %1100 = vmatpush2.msra.mxu0 %v498
    %1101 = vmatprep.subr.mxu0 %v495
    %1102 = vmatpush2.msra.mxu0 %v494
    %1103 = vmatprep.subr.mxu0 %v491
    %1104 = vmatpush2.msra.mxu0 %v490
    %1105 = vmatprep.subr.mxu0 %v487
    %1106 = vmatpush2.msra.mxu0 %v486
    %1107 = vmatprep.subr.mxu0 %v483
    %1108 = vmatpush2.msra.mxu0 %v482
    %1109 = vmatprep.subr.mxu0 %v479
    %1110 = vmatpush2.msra.mxu0 %v478
    %1111 = vmatprep.subr.mxu0 %v475
    %1112 = vmatpush2.msra.mxu0 %v474
    %1113 = vmatprep.subr.mxu0 %v471
    %1114 = vmatpush2.msra.mxu0 %v470
    %1115 = vmatprep.subr.mxu0 %v467
    %1116 = vmatpush2.msra.mxu0 %v466
    %1117 = vmatprep.subr.mxu0 %v463
    %1118 = vmatpush2.msra.mxu0 %v462
    %1119 = vmatprep.subr.mxu0 %v459
    %1120 = vmatpush2.msra.mxu0 %v458
    %1121 = vmatprep.mubr.f32.mxu0 %v1054
    %1122 = vmatmul.mubr.f32.gmra.mxu0 %v1053
    %v1123 = vpop.f32.mrf.mxu0
    %v1124 = vadd.f32 %v692, %v1123
    %v1125 = vpop.f32.mrf.mxu0
    %v1126 = vadd.f32 %v696, %v1125
    %1127 = vdwg.mxu0
    %1128 = vmatprep.subr.mxu0 %v457
    %1129 = vmatpush1.msra.mxu0 %v456
    %1130 = vmatprep.subr.mxu0 %v453
    %1131 = vmatpush1.msra.mxu0 %v452
    %1132 = vmatprep.subr.mxu0 %v449
    %1133 = vmatpush1.msra.mxu0 %v448
    %1134 = vmatprep.subr.mxu0 %v445
    %1135 = vmatpush1.msra.mxu0 %v444
    %1136 = vmatprep.subr.mxu0 %v441
    %1137 = vmatpush1.msra.mxu0 %v440
    %1138 = vmatprep.subr.mxu0 %v437
    %1139 = vmatpush1.msra.mxu0 %v436
    %1140 = vmatprep.subr.mxu0 %v433
    %1141 = vmatpush1.msra.mxu0 %v432
    %1142 = vmatprep.subr.mxu0 %v429
    %1143 = vmatpush1.msra.mxu0 %v428
    %1144 = vmatprep.subr.mxu0 %v425
    %1145 = vmatpush1.msra.mxu0 %v424
    %1146 = vmatprep.subr.mxu0 %v421
    %1147 = vmatpush1.msra.mxu0 %v420
    %1148 = vmatprep.subr.mxu0 %v417
    %1149 = vmatpush1.msra.mxu0 %v416
    %1150 = vmatprep.subr.mxu0 %v413
    %1151 = vmatpush1.msra.mxu0 %v412
    %1152 = vmatprep.subr.mxu0 %v409
    %1153 = vmatpush1.msra.mxu0 %v408
    %1154 = vmatprep.subr.mxu0 %v405
    %1155 = vmatpush1.msra.mxu0 %v404
    %1156 = vmatprep.subr.mxu0 %v401
    %1157 = vmatpush1.msra.mxu0 %v400
    %1158 = vmatprep.subr.mxu0 %v397
    %1159 = vmatpush1.msra.mxu0 %v396
    %1160 = vmatprep.subr.mxu0 %v521
    %1161 = vmatpush2.msra.mxu0 %v520
    %1162 = vmatprep.subr.mxu0 %v517
    %1163 = vmatpush2.msra.mxu0 %v516
    %1164 = vmatprep.subr.mxu0 %v513
    %1165 = vmatpush2.msra.mxu0 %v512
    %1166 = vmatprep.subr.mxu0 %v509
    %1167 = vmatpush2.msra.mxu0 %v508
    %1168 = vmatprep.subr.mxu0 %v505
    %1169 = vmatpush2.msra.mxu0 %v504
    %1170 = vmatprep.subr.mxu0 %v501
    %1171 = vmatpush2.msra.mxu0 %v500
    %1172 = vmatprep.subr.mxu0 %v497
    %1173 = vmatpush2.msra.mxu0 %v496
    %1174 = vmatprep.subr.mxu0 %v493
    %1175 = vmatpush2.msra.mxu0 %v492
    %1176 = vmatprep.subr.mxu0 %v489
    %1177 = vmatpush2.msra.mxu0 %v488
    %1178 = vmatprep.subr.mxu0 %v485
    %1179 = vmatpush2.msra.mxu0 %v484
    %1180 = vmatprep.subr.mxu0 %v481
    %1181 = vmatpush2.msra.mxu0 %v480
    %1182 = vmatprep.subr.mxu0 %v477
    %1183 = vmatpush2.msra.mxu0 %v476
    %1184 = vmatprep.subr.mxu0 %v473
    %1185 = vmatpush2.msra.mxu0 %v472
    %1186 = vmatprep.subr.mxu0 %v469
    %1187 = vmatpush2.msra.mxu0 %v468
    %1188 = vmatprep.subr.mxu0 %v465
    %1189 = vmatpush2.msra.mxu0 %v464
    %1190 = vmatprep.subr.mxu0 %v461
    %1191 = vmatpush2.msra.mxu0 %v460
    %1192 = vmatprep.mubr.f32.mxu0 %v1054
    %1193 = vmatmul.mubr.f32.gmra.mxu0 %v1053
    %v1194 = vpop.f32.mrf.mxu0
    %v1195 = vadd.f32 %v700, %v1194
    %v1196 = vpop.f32.mrf.mxu0
    %v1197 = vadd.f32 %v704, %v1196
    %1198 = vdwg.mxu0
    %v1199 = vmul.f32 %v1124, %v126
    %v1200 = vmul.f32 %v1126, %v127
    %v1201 = vmul.f32 %v1195, %v128
    %v1202 = vmul.f32 %v1197, %v129
    %v1203 = vtanh.pop %v1199
    %v1204 = vtanh.pop %v1200
    %v1205 = vtanh.pop %v1201
    %v1206 = vtanh.pop %v1202
    %v1207 = vadd.f32 %v1203, 1.0
    %v1208 = vmul.f32 %v1207, 0.5
    %v1209 = vadd.f32 %v1204, 1.0
    %v1210 = vmul.f32 %v1209, 0.5
    %v1211 = vadd.f32 %v1206, 1.0
    %v1212 = vmul.f32 %v1211, 0.5
    %v1213 = vmul.f32 %v1210, %v867
    %v1214 = vmul.f32 %v1208, %v1205
    %v1215 = vadd.f32 %v1213, %v1214
    %v1216 = vtanh.pop %v1215
    %v1217 = vmul.f32 %v1212, %v1216
    %1218 = vmatprep.subr.mxu0 %v391
    %1219 = vmatpush1.msra.mxu0 %v390
    %1220 = vmatprep.subr.mxu0 %v387
    %1221 = vmatpush1.msra.mxu0 %v386
    %1222 = vmatprep.subr.mxu0 %v383
    %1223 = vmatpush1.msra.mxu0 %v382
    %1224 = vmatprep.subr.mxu0 %v379
    %1225 = vmatpush1.msra.mxu0 %v378
    %1226 = vmatprep.subr.mxu0 %v375
    %1227 = vmatpush1.msra.mxu0 %v374
    %1228 = vmatprep.subr.mxu0 %v371
    %1229 = vmatpush1.msra.mxu0 %v370
    %1230 = vmatprep.subr.mxu0 %v367
    %1231 = vmatpush1.msra.mxu0 %v366
    %1232 = vmatprep.subr.mxu0 %v363
    %1233 = vmatpush1.msra.mxu0 %v362
    %1234 = vmatprep.subr.mxu0 %v359
    %1235 = vmatpush1.msra.mxu0 %v358
    %1236 = vmatprep.subr.mxu0 %v355
    %1237 = vmatpush1.msra.mxu0 %v354
    %1238 = vmatprep.subr.mxu0 %v351
    %1239 = vmatpush1.msra.mxu0 %v350
    %1240 = vmatprep.subr.mxu0 %v347
    %1241 = vmatpush1.msra.mxu0 %v346
    %1242 = vmatprep.subr.mxu0 %v343
    %1243 = vmatpush1.msra.mxu0 %v342
    %1244 = vmatprep.subr.mxu0 %v339
    %1245 = vmatpush1.msra.mxu0 %v338
    %1246 = vmatprep.subr.mxu0 %v335
    %1247 = vmatpush1.msra.mxu0 %v334
    %1248 = vmatprep.subr.mxu0 %v331
    %1249 = vmatpush1.msra.mxu0 %v330
    %1250 = vmatprep.subr.mxu0 0.0
    %1251 = vmatpush2.msra.mxu0 0.0
    %1252 = vmatprep.subr.mxu0 0.0
    %1253 = vmatpush2.msra.mxu0 0.0
    %1254 = vmatprep.subr.mxu0 0.0
    %1255 = vmatpush2.msra.mxu0 0.0
    %1256 = vmatprep.subr.mxu0 0.0
    %1257 = vmatpush2.msra.mxu0 0.0
    %1258 = vmatprep.subr.mxu0 0.0
    %1259 = vmatpush2.msra.mxu0 0.0
    %1260 = vmatprep.subr.mxu0 0.0
    %1261 = vmatpush2.msra.mxu0 0.0
    %1262 = vmatprep.subr.mxu0 0.0
    %1263 = vmatpush2.msra.mxu0 0.0
    %1264 = vmatprep.subr.mxu0 0.0
    %1265 = vmatpush2.msra.mxu0 0.0
    %1266 = vmatprep.subr.mxu0 0.0
    %1267 = vmatpush2.msra.mxu0 0.0
    %1268 = vmatprep.subr.mxu0 0.0
    %1269 = vmatpush2.msra.mxu0 0.0
    %1270 = vmatprep.subr.mxu0 0.0
    %1271 = vmatpush2.msra.mxu0 0.0
    %1272 = vmatprep.subr.mxu0 0.0
    %1273 = vmatpush2.msra.mxu0 0.0
    %1274 = vmatprep.subr.mxu0 0.0
    %1275 = vmatpush2.msra.mxu0 0.0
    %1276 = vmatprep.subr.mxu0 0.0
    %1277 = vmatpush2.msra.mxu0 0.0
    %1278 = vmatprep.subr.mxu0 0.0
    %1279 = vmatpush2.msra.mxu0 0.0
    %1280 = vmatprep.subr.mxu0 0.0
    %1281 = vmatpush2.msra.mxu0 0.0
    %1282 = vmatprep.mubr.f32.mxu0 0.0
    %1283 = vmatmul.mubr.f32.gmra.mxu0 %v1053
    %v1284 = vpop.f32.mrf.mxu0
    %v1285 = vadd.f32 0.0, %v1284
    %v1286 = vpop.f32.mrf.mxu0
    %v1287 = vadd.f32 0.0, %v1286
    %1288 = vdwg.mxu0
    %1289 = vmatprep.subr.mxu0 %v393
    %1290 = vmatpush1.msra.mxu0 %v392
    %1291 = vmatprep.subr.mxu0 %v389
    %1292 = vmatpush1.msra.mxu0 %v388
    %1293 = vmatprep.subr.mxu0 %v385
    %1294 = vmatpush1.msra.mxu0 %v384
    %1295 = vmatprep.subr.mxu0 %v381
    %1296 = vmatpush1.msra.mxu0 %v380
    %1297 = vmatprep.subr.mxu0 %v377
    %1298 = vmatpush1.msra.mxu0 %v376
    %1299 = vmatprep.subr.mxu0 %v373
    %1300 = vmatpush1.msra.mxu0 %v372
    %1301 = vmatprep.subr.mxu0 %v369
    %1302 = vmatpush1.msra.mxu0 %v368
    %1303 = vmatprep.subr.mxu0 %v365
    %1304 = vmatpush1.msra.mxu0 %v364
    %1305 = vmatprep.subr.mxu0 %v361
    %1306 = vmatpush1.msra.mxu0 %v360
    %1307 = vmatprep.subr.mxu0 %v357
    %1308 = vmatpush1.msra.mxu0 %v356
    %1309 = vmatprep.subr.mxu0 %v353
    %1310 = vmatpush1.msra.mxu0 %v352
    %1311 = vmatprep.subr.mxu0 %v349
    %1312 = vmatpush1.msra.mxu0 %v348
    %1313 = vmatprep.subr.mxu0 %v345
    %1314 = vmatpush1.msra.mxu0 %v344
    %1315 = vmatprep.subr.mxu0 %v341
    %1316 = vmatpush1.msra.mxu0 %v340
    %1317 = vmatprep.subr.mxu0 %v337
    %1318 = vmatpush1.msra.mxu0 %v336
    %1319 = vmatprep.subr.mxu0 %v333
    %1320 = vmatpush1.msra.mxu0 %v332
    %1321 = vmatprep.subr.mxu0 0.0
    %1322 = vmatpush2.msra.mxu0 0.0
    %1323 = vmatprep.subr.mxu0 0.0
    %1324 = vmatpush2.msra.mxu0 0.0
    %1325 = vmatprep.subr.mxu0 0.0
    %1326 = vmatpush2.msra.mxu0 0.0
    %1327 = vmatprep.subr.mxu0 0.0
    %1328 = vmatpush2.msra.mxu0 0.0
    %1329 = vmatprep.subr.mxu0 0.0
    %1330 = vmatpush2.msra.mxu0 0.0
    %1331 = vmatprep.subr.mxu0 0.0
    %1332 = vmatpush2.msra.mxu0 0.0
    %1333 = vmatprep.subr.mxu0 0.0
    %1334 = vmatpush2.msra.mxu0 0.0
    %1335 = vmatprep.subr.mxu0 0.0
    %1336 = vmatpush2.msra.mxu0 0.0
    %1337 = vmatprep.subr.mxu0 0.0
    %1338 = vmatpush2.msra.mxu0 0.0
    %1339 = vmatprep.subr.mxu0 0.0
    %1340 = vmatpush2.msra.mxu0 0.0
    %1341 = vmatprep.subr.mxu0 0.0
    %1342 = vmatpush2.msra.mxu0 0.0
    %1343 = vmatprep.subr.mxu0 0.0
    %1344 = vmatpush2.msra.mxu0 0.0
    %1345 = vmatprep.subr.mxu0 0.0
    %1346 = vmatpush2.msra.mxu0 0.0
    %1347 = vmatprep.subr.mxu0 0.0
    %1348 = vmatpush2.msra.mxu0 0.0
    %1349 = vmatprep.subr.mxu0 0.0
    %1350 = vmatpush2.msra.mxu0 0.0
    %1351 = vmatprep.subr.mxu0 0.0
    %1352 = vmatpush2.msra.mxu0 0.0
    %1353 = vmatprep.mubr.f32.mxu0 0.0
    %1354 = vmatmul.mubr.f32.gmra.mxu0 %v1053
    %v1355 = vpop.f32.mrf.mxu0
    %v1356 = vadd.f32 0.0, %v1355
    %v1357 = vpop.f32.mrf.mxu0
    %v1358 = vadd.f32 0.0, %v1357
    %1359 = vdwg.mxu0
    %v1364 = vrot.slane %v1285, 4
    %v1365 = vrot.slane %v1287, 4
    %v1366 = vrot.slane %v1356, 4
    %v1367 = vrot.slane %v1358, 4
    %v1372 = vadd.f32 %v243, %v1364
    %v1373 = vadd.f32 %v245, %v1365
    %v1374 = vadd.f32 %v320, %v1366
    %v1375 = vadd.f32 %v322, %v1367
    %v1376 = vmul.f32 %v1372, %v126
    %v1377 = vmul.f32 %v1373, %v127
    %v1378 = vmul.f32 %v1374, %v128
    %v1379 = vmul.f32 %v1375, %v129
    %v1380 = vtanh.pop %v1376
    %v1381 = vtanh.pop %v1377
    %v1382 = vtanh.pop %v1378
    %v1383 = vtanh.pop %v1379
    %v1384 = vadd.f32 %v1380, 1.0
    %v1385 = vmul.f32 %v1384, 0.5
    %v1386 = vadd.f32 %v1381, 1.0
    %v1387 = vmul.f32 %v1386, 0.5
    %v1388 = vadd.f32 %v1383, 1.0
    %v1389 = vmul.f32 %v1388, 0.5
    %v1391 = vrot.slane %v1047, 6
    %v1393 = vmul.f32 %v1387, %v1391
    %v1394 = vmul.f32 %v1385, %v1382
    %v1395 = vadd.f32 %v1393, %v1394
    %v1396 = vtanh.pop %v1395
    %v1397 = vmul.f32 %v1389, %v1396
    %v1399 = vrot.slane %v1217, 4
    %v1401 = vrot.slane %v1397, 4
    %v1402 = vrot.slane %v1399, 4
    %1405 = vmatprep.subr.mxu0 %v455
    %1406 = vmatpush1.msra.mxu0 %v454
    %1407 = vmatprep.subr.mxu0 %v451
    %1408 = vmatpush1.msra.mxu0 %v450
    %1409 = vmatprep.subr.mxu0 %v447
    %1410 = vmatpush1.msra.mxu0 %v446
    %1411 = vmatprep.subr.mxu0 %v443
    %1412 = vmatpush1.msra.mxu0 %v442
    %1413 = vmatprep.subr.mxu0 %v439
    %1414 = vmatpush1.msra.mxu0 %v438
    %1415 = vmatprep.subr.mxu0 %v435
    %1416 = vmatpush1.msra.mxu0 %v434
    %1417 = vmatprep.subr.mxu0 %v431
    %1418 = vmatpush1.msra.mxu0 %v430
    %1419 = vmatprep.subr.mxu0 %v427
    %1420 = vmatpush1.msra.mxu0 %v426
    %1421 = vmatprep.subr.mxu0 %v423
    %1422 = vmatpush1.msra.mxu0 %v422
    %1423 = vmatprep.subr.mxu0 %v419
    %1424 = vmatpush1.msra.mxu0 %v418
    %1425 = vmatprep.subr.mxu0 %v415
    %1426 = vmatpush1.msra.mxu0 %v414
    %1427 = vmatprep.subr.mxu0 %v411
    %1428 = vmatpush1.msra.mxu0 %v410
    %1429 = vmatprep.subr.mxu0 %v407
    %1430 = vmatpush1.msra.mxu0 %v406
    %1431 = vmatprep.subr.mxu0 %v403
    %1432 = vmatpush1.msra.mxu0 %v402
    %1433 = vmatprep.subr.mxu0 %v399
    %1434 = vmatpush1.msra.mxu0 %v398
    %1435 = vmatprep.subr.mxu0 %v395
    %1436 = vmatpush1.msra.mxu0 %v394
    %1437 = vmatprep.subr.mxu0 %v519
    %1438 = vmatpush2.msra.mxu0 %v518
    %1439 = vmatprep.subr.mxu0 %v515
    %1440 = vmatpush2.msra.mxu0 %v514
    %1441 = vmatprep.subr.mxu0 %v511
    %1442 = vmatpush2.msra.mxu0 %v510
    %1443 = vmatprep.subr.mxu0 %v507
    %1444 = vmatpush2.msra.mxu0 %v506
    %1445 = vmatprep.subr.mxu0 %v503
    %1446 = vmatpush2.msra.mxu0 %v502
    %1447 = vmatprep.subr.mxu0 %v499
    %1448 = vmatpush2.msra.mxu0 %v498
    %1449 = vmatprep.subr.mxu0 %v495
    %1450 = vmatpush2.msra.mxu0 %v494
    %1451 = vmatprep.subr.mxu0 %v491
    %1452 = vmatpush2.msra.mxu0 %v490
    %1453 = vmatprep.subr.mxu0 %v487
    %1454 = vmatpush2.msra.mxu0 %v486
    %1455 = vmatprep.subr.mxu0 %v483
    %1456 = vmatpush2.msra.mxu0 %v482
    %1457 = vmatprep.subr.mxu0 %v479
    %1458 = vmatpush2.msra.mxu0 %v478
    %1459 = vmatprep.subr.mxu0 %v475
    %1460 = vmatpush2.msra.mxu0 %v474
    %1461 = vmatprep.subr.mxu0 %v471
    %1462 = vmatpush2.msra.mxu0 %v470
    %1463 = vmatprep.subr.mxu0 %v467
    %1464 = vmatpush2.msra.mxu0 %v466
    %1465 = vmatprep.subr.mxu0 %v463
    %1466 = vmatpush2.msra.mxu0 %v462
    %1467 = vmatprep.subr.mxu0 %v459
    %1468 = vmatpush2.msra.mxu0 %v458
    %1469 = vmatprep.mubr.f32.mxu0 %v1402
    %1470 = vmatmul.mubr.f32.gmra.mxu0 %v1401
    %v1471 = vpop.f32.mrf.mxu0
    %v1472 = vadd.f32 %v692, %v1471
    %v1473 = vpop.f32.mrf.mxu0
    %v1474 = vadd.f32 %v696, %v1473
    %1475 = vdwg.mxu0
    %1476 = vmatprep.subr.mxu0 %v457
    %1477 = vmatpush1.msra.mxu0 %v456
    %1478 = vmatprep.subr.mxu0 %v453
    %1479 = vmatpush1.msra.mxu0 %v452
    %1480 = vmatprep.subr.mxu0 %v449
    %1481 = vmatpush1.msra.mxu0 %v448
    %1482 = vmatprep.subr.mxu0 %v445
    %1483 = vmatpush1.msra.mxu0 %v444
    %1484 = vmatprep.subr.mxu0 %v441
    %1485 = vmatpush1.msra.mxu0 %v440
    %1486 = vmatprep.subr.mxu0 %v437
    %1487 = vmatpush1.msra.mxu0 %v436
    %1488 = vmatprep.subr.mxu0 %v433
    %1489 = vmatpush1.msra.mxu0 %v432
    %1490 = vmatprep.subr.mxu0 %v429
    %1491 = vmatpush1.msra.mxu0 %v428
    %1492 = vmatprep.subr.mxu0 %v425
    %1493 = vmatpush1.msra.mxu0 %v424
    %1494 = vmatprep.subr.mxu0 %v421
    %1495 = vmatpush1.msra.mxu0 %v420
    %1496 = vmatprep.subr.mxu0 %v417
    %1497 = vmatpush1.msra.mxu0 %v416
    %1498 = vmatprep.subr.mxu0 %v413
    %1499 = vmatpush1.msra.mxu0 %v412
    %1500 = vmatprep.subr.mxu0 %v409
    %1501 = vmatpush1.msra.mxu0 %v408
    %1502 = vmatprep.subr.mxu0 %v405
    %1503 = vmatpush1.msra.mxu0 %v404
    %1504 = vmatprep.subr.mxu0 %v401
    %1505 = vmatpush1.msra.mxu0 %v400
    %1506 = vmatprep.subr.mxu0 %v397
    %1507 = vmatpush1.msra.mxu0 %v396
    %1508 = vmatprep.subr.mxu0 %v521
    %1509 = vmatpush2.msra.mxu0 %v520
    %1510 = vmatprep.subr.mxu0 %v517
    %1511 = vmatpush2.msra.mxu0 %v516
    %1512 = vmatprep.subr.mxu0 %v513
    %1513 = vmatpush2.msra.mxu0 %v512
    %1514 = vmatprep.subr.mxu0 %v509
    %1515 = vmatpush2.msra.mxu0 %v508
    %1516 = vmatprep.subr.mxu0 %v505
    %1517 = vmatpush2.msra.mxu0 %v504
    %1518 = vmatprep.subr.mxu0 %v501
    %1519 = vmatpush2.msra.mxu0 %v500
    %1520 = vmatprep.subr.mxu0 %v497
    %1521 = vmatpush2.msra.mxu0 %v496
    %1522 = vmatprep.subr.mxu0 %v493
    %1523 = vmatpush2.msra.mxu0 %v492
    %1524 = vmatprep.subr.mxu0 %v489
    %1525 = vmatpush2.msra.mxu0 %v488
    %1526 = vmatprep.subr.mxu0 %v485
    %1527 = vmatpush2.msra.mxu0 %v484
    %1528 = vmatprep.subr.mxu0 %v481
    %1529 = vmatpush2.msra.mxu0 %v480
    %1530 = vmatprep.subr.mxu0 %v477
    %1531 = vmatpush2.msra.mxu0 %v476
    %1532 = vmatprep.subr.mxu0 %v473
    %1533 = vmatpush2.msra.mxu0 %v472
    %1534 = vmatprep.subr.mxu0 %v469
    %1535 = vmatpush2.msra.mxu0 %v468
    %1536 = vmatprep.subr.mxu0 %v465
    %1537 = vmatpush2.msra.mxu0 %v464
    %1538 = vmatprep.subr.mxu0 %v461
    %1539 = vmatpush2.msra.mxu0 %v460
    %1540 = vmatprep.mubr.f32.mxu0 %v1402
    %1541 = vmatmul.mubr.f32.gmra.mxu0 %v1401
    %v1542 = vpop.f32.mrf.mxu0
    %v1543 = vadd.f32 %v700, %v1542
    %v1544 = vpop.f32.mrf.mxu0
    %v1545 = vadd.f32 %v704, %v1544
    %1546 = vdwg.mxu0
    %v1547 = vmul.f32 %v1472, %v126
    %v1548 = vmul.f32 %v1474, %v127
    %v1549 = vmul.f32 %v1543, %v128
    %v1550 = vmul.f32 %v1545, %v129
    %v1551 = vtanh.pop %v1547
    %v1552 = vtanh.pop %v1548
    %v1553 = vtanh.pop %v1549
    %v1554 = vtanh.pop %v1550
    %v1555 = vadd.f32 %v1551, 1.0
    %v1556 = vmul.f32 %v1555, 0.5
    %v1557 = vadd.f32 %v1552, 1.0
    %v1558 = vmul.f32 %v1557, 0.5
    %v1559 = vadd.f32 %v1554, 1.0
    %v1560 = vmul.f32 %v1559, 0.5
    %v1561 = vmul.f32 %v1558, %v1215
    %v1562 = vmul.f32 %v1556, %v1553
    %v1563 = vadd.f32 %v1561, %v1562
    %v1564 = vtanh.pop %v1563
    %v1565 = vmul.f32 %v1560, %v1564
    %1566 = vmatprep.subr.mxu0 %v391
    %1567 = vmatpush1.msra.mxu0 %v390
    %1568 = vmatprep.subr.mxu0 %v387
    %1569 = vmatpush1.msra.mxu0 %v386
    %1570 = vmatprep.subr.mxu0 %v383
    %1571 = vmatpush1.msra.mxu0 %v382
    %1572 = vmatprep.subr.mxu0 %v379
    %1573 = vmatpush1.msra.mxu0 %v378
    %1574 = vmatprep.subr.mxu0 %v375
    %1575 = vmatpush1.msra.mxu0 %v374
    %1576 = vmatprep.subr.mxu0 %v371
    %1577 = vmatpush1.msra.mxu0 %v370
    %1578 = vmatprep.subr.mxu0 %v367
    %1579 = vmatpush1.msra.mxu0 %v366
    %1580 = vmatprep.subr.mxu0 %v363
    %1581 = vmatpush1.msra.mxu0 %v362
    %1582 = vmatprep.subr.mxu0 %v359
    %1583 = vmatpush1.msra.mxu0 %v358
    %1584 = vmatprep.subr.mxu0 %v355
    %1585 = vmatpush1.msra.mxu0 %v354
    %1586 = vmatprep.subr.mxu0 %v351
    %1587 = vmatpush1.msra.mxu0 %v350
    %1588 = vmatprep.subr.mxu0 %v347
    %1589 = vmatpush1.msra.mxu0 %v346
    %1590 = vmatprep.subr.mxu0 %v343
    %1591 = vmatpush1.msra.mxu0 %v342
    %1592 = vmatprep.subr.mxu0 %v339
    %1593 = vmatpush1.msra.mxu0 %v338
    %1594 = vmatprep.subr.mxu0 %v335
    %1595 = vmatpush1.msra.mxu0 %v334
    %1596 = vmatprep.subr.mxu0 %v331
    %1597 = vmatpush1.msra.mxu0 %v330
    %1598 = vmatprep.subr.mxu0 0.0
    %1599 = vmatpush2.msra.mxu0 0.0
    %1600 = vmatprep.subr.mxu0 0.0
    %1601 = vmatpush2.msra.mxu0 0.0
    %1602 = vmatprep.subr.mxu0 0.0
    %1603 = vmatpush2.msra.mxu0 0.0
    %1604 = vmatprep.subr.mxu0 0.0
    %1605 = vmatpush2.msra.mxu0 0.0
    %1606 = vmatprep.subr.mxu0 0.0
    %1607 = vmatpush2.msra.mxu0 0.0
    %1608 = vmatprep.subr.mxu0 0.0
    %1609 = vmatpush2.msra.mxu0 0.0
    %1610 = vmatprep.subr.mxu0 0.0
    %1611 = vmatpush2.msra.mxu0 0.0
    %1612 = vmatprep.subr.mxu0 0.0
    %1613 = vmatpush2.msra.mxu0 0.0
    %1614 = vmatprep.subr.mxu0 0.0
    %1615 = vmatpush2.msra.mxu0 0.0
    %1616 = vmatprep.subr.mxu0 0.0
    %1617 = vmatpush2.msra.mxu0 0.0
    %1618 = vmatprep.subr.mxu0 0.0
    %1619 = vmatpush2.msra.mxu0 0.0
    %1620 = vmatprep.subr.mxu0 0.0
    %1621 = vmatpush2.msra.mxu0 0.0
    %1622 = vmatprep.subr.mxu0 0.0
    %1623 = vmatpush2.msra.mxu0 0.0
    %1624 = vmatprep.subr.mxu0 0.0
    %1625 = vmatpush2.msra.mxu0 0.0
    %1626 = vmatprep.subr.mxu0 0.0
    %1627 = vmatpush2.msra.mxu0 0.0
    %1628 = vmatprep.subr.mxu0 0.0
    %1629 = vmatpush2.msra.mxu0 0.0
    %1630 = vmatprep.mubr.f32.mxu0 0.0
    %1631 = vmatmul.mubr.f32.gmra.mxu0 %v1401
    %v1632 = vpop.f32.mrf.mxu0
    %v1633 = vadd.f32 0.0, %v1632
    %v1634 = vpop.f32.mrf.mxu0
    %v1635 = vadd.f32 0.0, %v1634
    %1636 = vdwg.mxu0
    %1637 = vmatprep.subr.mxu0 %v393
    %1638 = vmatpush1.msra.mxu0 %v392
    %1639 = vmatprep.subr.mxu0 %v389
    %1640 = vmatpush1.msra.mxu0 %v388
    %1641 = vmatprep.subr.mxu0 %v385
    %1642 = vmatpush1.msra.mxu0 %v384
    %1643 = vmatprep.subr.mxu0 %v381
    %1644 = vmatpush1.msra.mxu0 %v380
    %1645 = vmatprep.subr.mxu0 %v377
    %1646 = vmatpush1.msra.mxu0 %v376
    %1647 = vmatprep.subr.mxu0 %v373
    %1648 = vmatpush1.msra.mxu0 %v372
    %1649 = vmatprep.subr.mxu0 %v369
    %1650 = vmatpush1.msra.mxu0 %v368
    %1651 = vmatprep.subr.mxu0 %v365
    %1652 = vmatpush1.msra.mxu0 %v364
    %1653 = vmatprep.subr.mxu0 %v361
    %1654 = vmatpush1.msra.mxu0 %v360
    %1655 = vmatprep.subr.mxu0 %v357
    %1656 = vmatpush1.msra.mxu0 %v356
    %1657 = vmatprep.subr.mxu0 %v353
    %1658 = vmatpush1.msra.mxu0 %v352
    %1659 = vmatprep.subr.mxu0 %v349
    %1660 = vmatpush1.msra.mxu0 %v348
    %1661 = vmatprep.subr.mxu0 %v345
    %1662 = vmatpush1.msra.mxu0 %v344
    %1663 = vmatprep.subr.mxu0 %v341
    %1664 = vmatpush1.msra.mxu0 %v340
    %1665 = vmatprep.subr.mxu0 %v337
    %1666 = vmatpush1.msra.mxu0 %v336
    %1667 = vmatprep.subr.mxu0 %v333
    %1668 = vmatpush1.msra.mxu0 %v332
    %1669 = vmatprep.subr.mxu0 0.0
    %1670 = vmatpush2.msra.mxu0 0.0
    %1671 = vmatprep.subr.mxu0 0.0
    %1672 = vmatpush2.msra.mxu0 0.0
    %1673 = vmatprep.subr.mxu0 0.0
    %1674 = vmatpush2.msra.mxu0 0.0
    %1675 = vmatprep.subr.mxu0 0.0
    %1676 = vmatpush2.msra.mxu0 0.0
    %1677 = vmatprep.subr.mxu0 0.0
    %1678 = vmatpush2.msra.mxu0 0.0
    %1679 = vmatprep.subr.mxu0 0.0
    %1680 = vmatpush2.msra.mxu0 0.0
    %1681 = vmatprep.subr.mxu0 0.0
    %1682 = vmatpush2.msra.mxu0 0.0
    %1683 = vmatprep.subr.mxu0 0.0
    %1684 = vmatpush2.msra.mxu0 0.0
    %1685 = vmatprep.subr.mxu0 0.0
    %1686 = vmatpush2.msra.mxu0 0.0
    %1687 = vmatprep.subr.mxu0 0.0
    %1688 = vmatpush2.msra.mxu0 0.0
    %1689 = vmatprep.subr.mxu0 0.0
    %1690 = vmatpush2.msra.mxu0 0.0
    %1691 = vmatprep.subr.mxu0 0.0
    %1692 = vmatpush2.msra.mxu0 0.0
    %1693 = vmatprep.subr.mxu0 0.0
    %1694 = vmatpush2.msra.mxu0 0.0
    %1695 = vmatprep.subr.mxu0 0.0
    %1696 = vmatpush2.msra.mxu0 0.0
    %1697 = vmatprep.subr.mxu0 0.0
    %1698 = vmatpush2.msra.mxu0 0.0
    %1699 = vmatprep.subr.mxu0 0.0
    %1700 = vmatpush2.msra.mxu0 0.0
    %1701 = vmatprep.mubr.f32.mxu0 0.0
    %1702 = vmatmul.mubr.f32.gmra.mxu0 %v1401
    %v1703 = vpop.f32.mrf.mxu0
    %v1704 = vadd.f32 0.0, %v1703
    %v1705 = vpop.f32.mrf.mxu0
    %v1706 = vadd.f32 0.0, %v1705
    %1707 = vdwg.mxu0
    %v1712 = vrot.slane %v1633, 2
    %v1713 = vrot.slane %v1635, 2
    %v1714 = vrot.slane %v1704, 2
    %v1715 = vrot.slane %v1706, 2
    %v1720 = vadd.f32 %v243, %v1712
    %v1721 = vadd.f32 %v245, %v1713
    %v1722 = vadd.f32 %v320, %v1714
    %v1723 = vadd.f32 %v322, %v1715
    %v1724 = vmul.f32 %v1720, %v126
    %v1725 = vmul.f32 %v1721, %v127
    %v1726 = vmul.f32 %v1722, %v128
    %v1727 = vmul.f32 %v1723, %v129
    %v1728 = vtanh.pop %v1724
    %v1729 = vtanh.pop %v1725
    %v1730 = vtanh.pop %v1726
    %v1731 = vtanh.pop %v1727
    %v1732 = vadd.f32 %v1728, 1.0
    %v1733 = vmul.f32 %v1732, 0.5
    %v1734 = vadd.f32 %v1729, 1.0
    %v1735 = vmul.f32 %v1734, 0.5
    %v1736 = vadd.f32 %v1731, 1.0
    %v1737 = vmul.f32 %v1736, 0.5
    %v1739 = vrot.slane %v1395, 6
    %v1741 = vmul.f32 %v1735, %v1739
    %v1742 = vmul.f32 %v1733, %v1730
    %v1743 = vadd.f32 %v1741, %v1742
    %v1744 = vtanh.pop %v1743
    %v1745 = vmul.f32 %v1737, %v1744
    %v1747 = vrot.slane %v1565, 2
    %v1749 = vrot.slane %v1745, 6
    %v1750 = vrot.slane %v1747, 6
    %1753 = vmatprep.subr.mxu0 %v455
    %1754 = vmatpush1.msra.mxu0 %v454
    %1755 = vmatprep.subr.mxu0 %v451
    %1756 = vmatpush1.msra.mxu0 %v450
    %1757 = vmatprep.subr.mxu0 %v447
    %1758 = vmatpush1.msra.mxu0 %v446
    %1759 = vmatprep.subr.mxu0 %v443
    %1760 = vmatpush1.msra.mxu0 %v442
    %1761 = vmatprep.subr.mxu0 %v439
    %1762 = vmatpush1.msra.mxu0 %v438
    %1763 = vmatprep.subr.mxu0 %v435
    %1764 = vmatpush1.msra.mxu0 %v434
    %1765 = vmatprep.subr.mxu0 %v431
    %1766 = vmatpush1.msra.mxu0 %v430
    %1767 = vmatprep.subr.mxu0 %v427
    %1768 = vmatpush1.msra.mxu0 %v426
    %1769 = vmatprep.subr.mxu0 %v423
    %1770 = vmatpush1.msra.mxu0 %v422
    %1771 = vmatprep.subr.mxu0 %v419
    %1772 = vmatpush1.msra.mxu0 %v418
    %1773 = vmatprep.subr.mxu0 %v415
    %1774 = vmatpush1.msra.mxu0 %v414
    %1775 = vmatprep.subr.mxu0 %v411
    %1776 = vmatpush1.msra.mxu0 %v410
    %1777 = vmatprep.subr.mxu0 %v407
    %1778 = vmatpush1.msra.mxu0 %v406
    %1779 = vmatprep.subr.mxu0 %v403
    %1780 = vmatpush1.msra.mxu0 %v402
    %1781 = vmatprep.subr.mxu0 %v399
    %1782 = vmatpush1.msra.mxu0 %v398
    %1783 = vmatprep.subr.mxu0 %v395
    %1784 = vmatpush1.msra.mxu0 %v394
    %1785 = vmatprep.subr.mxu0 %v519
    %1786 = vmatpush2.msra.mxu0 %v518
    %1787 = vmatprep.subr.mxu0 %v515
    %1788 = vmatpush2.msra.mxu0 %v514
    %1789 = vmatprep.subr.mxu0 %v511
    %1790 = vmatpush2.msra.mxu0 %v510
    %1791 = vmatprep.subr.mxu0 %v507
    %1792 = vmatpush2.msra.mxu0 %v506
    %1793 = vmatprep.subr.mxu0 %v503
    %1794 = vmatpush2.msra.mxu0 %v502
    %1795 = vmatprep.subr.mxu0 %v499
    %1796 = vmatpush2.msra.mxu0 %v498
    %1797 = vmatprep.subr.mxu0 %v495
    %1798 = vmatpush2.msra.mxu0 %v494
    %1799 = vmatprep.subr.mxu0 %v491
    %1800 = vmatpush2.msra.mxu0 %v490
    %1801 = vmatprep.subr.mxu0 %v487
    %1802 = vmatpush2.msra.mxu0 %v486
    %1803 = vmatprep.subr.mxu0 %v483
    %1804 = vmatpush2.msra.mxu0 %v482
    %1805 = vmatprep.subr.mxu0 %v479
    %1806 = vmatpush2.msra.mxu0 %v478
    %1807 = vmatprep.subr.mxu0 %v475
    %1808 = vmatpush2.msra.mxu0 %v474
    %1809 = vmatprep.subr.mxu0 %v471
    %1810 = vmatpush2.msra.mxu0 %v470
    %1811 = vmatprep.subr.mxu0 %v467
    %1812 = vmatpush2.msra.mxu0 %v466
    %1813 = vmatprep.subr.mxu0 %v463
    %1814 = vmatpush2.msra.mxu0 %v462
    %1815 = vmatprep.subr.mxu0 %v459
    %1816 = vmatpush2.msra.mxu0 %v458
    %1817 = vmatprep.mubr.f32.mxu0 %v1750
    %1818 = vmatmul.mubr.f32.gmra.mxu0 %v1749
    %v1819 = vpop.f32.mrf.mxu0
    %v1820 = vadd.f32 %v692, %v1819
    %v1821 = vpop.f32.mrf.mxu0
    %v1822 = vadd.f32 %v696, %v1821
    %1823 = vdwg.mxu0
    %1824 = vmatprep.subr.mxu0 %v457
    %1825 = vmatpush1.msra.mxu0 %v456
    %1826 = vmatprep.subr.mxu0 %v453
    %1827 = vmatpush1.msra.mxu0 %v452
    %1828 = vmatprep.subr.mxu0 %v449
    %1829 = vmatpush1.msra.mxu0 %v448
    %1830 = vmatprep.subr.mxu0 %v445
    %1831 = vmatpush1.msra.mxu0 %v444
    %1832 = vmatprep.subr.mxu0 %v441
    %1833 = vmatpush1.msra.mxu0 %v440
    %1834 = vmatprep.subr.mxu0 %v437
    %1835 = vmatpush1.msra.mxu0 %v436
    %1836 = vmatprep.subr.mxu0 %v433
    %1837 = vmatpush1.msra.mxu0 %v432
    %1838 = vmatprep.subr.mxu0 %v429
    %1839 = vmatpush1.msra.mxu0 %v428
    %1840 = vmatprep.subr.mxu0 %v425
    %1841 = vmatpush1.msra.mxu0 %v424
    %1842 = vmatprep.subr.mxu0 %v421
    %1843 = vmatpush1.msra.mxu0 %v420
    %1844 = vmatprep.subr.mxu0 %v417
    %1845 = vmatpush1.msra.mxu0 %v416
    %1846 = vmatprep.subr.mxu0 %v413
    %1847 = vmatpush1.msra.mxu0 %v412
    %1848 = vmatprep.subr.mxu0 %v409
    %1849 = vmatpush1.msra.mxu0 %v408
    %1850 = vmatprep.subr.mxu0 %v405
    %1851 = vmatpush1.msra.mxu0 %v404
    %1852 = vmatprep.subr.mxu0 %v401
    %1853 = vmatpush1.msra.mxu0 %v400
    %1854 = vmatprep.subr.mxu0 %v397
    %1855 = vmatpush1.msra.mxu0 %v396
    %1856 = vmatprep.subr.mxu0 %v521
    %1857 = vmatpush2.msra.mxu0 %v520
    %1858 = vmatprep.subr.mxu0 %v517
    %1859 = vmatpush2.msra.mxu0 %v516
    %1860 = vmatprep.subr.mxu0 %v513
    %1861 = vmatpush2.msra.mxu0 %v512
    %1862 = vmatprep.subr.mxu0 %v509
    %1863 = vmatpush2.msra.mxu0 %v508
    %1864 = vmatprep.subr.mxu0 %v505
    %1865 = vmatpush2.msra.mxu0 %v504
    %1866 = vmatprep.subr.mxu0 %v501
    %1867 = vmatpush2.msra.mxu0 %v500
    %1868 = vmatprep.subr.mxu0 %v497
    %1869 = vmatpush2.msra.mxu0 %v496
    %1870 = vmatprep.subr.mxu0 %v493
    %1871 = vmatpush2.msra.mxu0 %v492
    %1872 = vmatprep.subr.mxu0 %v489
    %1873 = vmatpush2.msra.mxu0 %v488
    %1874 = vmatprep.subr.mxu0 %v485
    %1875 = vmatpush2.msra.mxu0 %v484
    %1876 = vmatprep.subr.mxu0 %v481
    %1877 = vmatpush2.msra.mxu0 %v480
    %1878 = vmatprep.subr.mxu0 %v477
    %1879 = vmatpush2.msra.mxu0 %v476
    %1880 = vmatprep.subr.mxu0 %v473
    %1881 = vmatpush2.msra.mxu0 %v472
    %1882 = vmatprep.subr.mxu0 %v469
    %1883 = vmatpush2.msra.mxu0 %v468
    %1884 = vmatprep.subr.mxu0 %v465
    %1885 = vmatpush2.msra.mxu0 %v464
    %1886 = vmatprep.subr.mxu0 %v461
    %1887 = vmatpush2.msra.mxu0 %v460
    %1888 = vmatprep.mubr.f32.mxu0 %v1750
    %1889 = vmatmul.mubr.f32.gmra.mxu0 %v1749
    %v1890 = vpop.f32.mrf.mxu0
    %v1891 = vadd.f32 %v700, %v1890
    %v1892 = vpop.f32.mrf.mxu0
    %v1893 = vadd.f32 %v704, %v1892
    %1894 = vdwg.mxu0
    %v1895 = vmul.f32 %v1820, %v126
    %v1896 = vmul.f32 %v1822, %v127
    %v1897 = vmul.f32 %v1891, %v128
    %v1898 = vmul.f32 %v1893, %v129
    %v1899 = vtanh.pop %v1895
    %v1900 = vtanh.pop %v1896
    %v1901 = vtanh.pop %v1897
    %v1902 = vtanh.pop %v1898
    %v1903 = vadd.f32 %v1899, 1.0
    %v1904 = vmul.f32 %v1903, 0.5
    %v1905 = vadd.f32 %v1900, 1.0
    %v1906 = vmul.f32 %v1905, 0.5
    %v1907 = vadd.f32 %v1902, 1.0
    %v1908 = vmul.f32 %v1907, 0.5
    %v1909 = vmul.f32 %v1906, %v1563
    %v1910 = vmul.f32 %v1904, %v1901
    %v1911 = vadd.f32 %v1909, %v1910
    %v1912 = vtanh.pop %v1911
    %v1913 = vmul.f32 %v1908, %v1912
    %1914 = vmatprep.subr.mxu0 %v391
    %1915 = vmatpush1.msra.mxu0 %v390
    %1916 = vmatprep.subr.mxu0 %v387
    %1917 = vmatpush1.msra.mxu0 %v386
    %1918 = vmatprep.subr.mxu0 %v383
    %1919 = vmatpush1.msra.mxu0 %v382
    %1920 = vmatprep.subr.mxu0 %v379
    %1921 = vmatpush1.msra.mxu0 %v378
    %1922 = vmatprep.subr.mxu0 %v375
    %1923 = vmatpush1.msra.mxu0 %v374
    %1924 = vmatprep.subr.mxu0 %v371
    %1925 = vmatpush1.msra.mxu0 %v370
    %1926 = vmatprep.subr.mxu0 %v367
    %1927 = vmatpush1.msra.mxu0 %v366
    %1928 = vmatprep.subr.mxu0 %v363
    %1929 = vmatpush1.msra.mxu0 %v362
    %1930 = vmatprep.subr.mxu0 %v359
    %1931 = vmatpush1.msra.mxu0 %v358
    %1932 = vmatprep.subr.mxu0 %v355
    %1933 = vmatpush1.msra.mxu0 %v354
    %1934 = vmatprep.subr.mxu0 %v351
    %1935 = vmatpush1.msra.mxu0 %v350
    %1936 = vmatprep.subr.mxu0 %v347
    %1937 = vmatpush1.msra.mxu0 %v346
    %1938 = vmatprep.subr.mxu0 %v343
    %1939 = vmatpush1.msra.mxu0 %v342
    %1940 = vmatprep.subr.mxu0 %v339
    %1941 = vmatpush1.msra.mxu0 %v338
    %1942 = vmatprep.subr.mxu0 %v335
    %1943 = vmatpush1.msra.mxu0 %v334
    %1944 = vmatprep.subr.mxu0 %v331
    %1945 = vmatpush1.msra.mxu0 %v330
    %1946 = vmatprep.subr.mxu0 0.0
    %1947 = vmatpush2.msra.mxu0 0.0
    %1948 = vmatprep.subr.mxu0 0.0
    %1949 = vmatpush2.msra.mxu0 0.0
    %1950 = vmatprep.subr.mxu0 0.0
    %1951 = vmatpush2.msra.mxu0 0.0
    %1952 = vmatprep.subr.mxu0 0.0
    %1953 = vmatpush2.msra.mxu0 0.0
    %1954 = vmatprep.subr.mxu0 0.0
    %1955 = vmatpush2.msra.mxu0 0.0
    %1956 = vmatprep.subr.mxu0 0.0
    %1957 = vmatpush2.msra.mxu0 0.0
    %1958 = vmatprep.subr.mxu0 0.0
    %1959 = vmatpush2.msra.mxu0 0.0
    %1960 = vmatprep.subr.mxu0 0.0
    %1961 = vmatpush2.msra.mxu0 0.0
    %1962 = vmatprep.subr.mxu0 0.0
    %1963 = vmatpush2.msra.mxu0 0.0
    %1964 = vmatprep.subr.mxu0 0.0
    %1965 = vmatpush2.msra.mxu0 0.0
    %1966 = vmatprep.subr.mxu0 0.0
    %1967 = vmatpush2.msra.mxu0 0.0
    %1968 = vmatprep.subr.mxu0 0.0
    %1969 = vmatpush2.msra.mxu0 0.0
    %1970 = vmatprep.subr.mxu0 0.0
    %1971 = vmatpush2.msra.mxu0 0.0
    %1972 = vmatprep.subr.mxu0 0.0
    %1973 = vmatpush2.msra.mxu0 0.0
    %1974 = vmatprep.subr.mxu0 0.0
    %1975 = vmatpush2.msra.mxu0 0.0
    %1976 = vmatprep.subr.mxu0 0.0
    %1977 = vmatpush2.msra.mxu0 0.0
    %1978 = vmatprep.mubr.f32.mxu0 0.0
    %1979 = vmatmul.mubr.f32.gmra.mxu0 %v1749
    %v1980 = vpop.f32.mrf.mxu0
    %v1981 = vadd.f32 0.0, %v1980
    %v1982 = vpop.f32.mrf.mxu0
    %v1983 = vadd.f32 0.0, %v1982
    %1984 = vdwg.mxu0
    %1985 = vmatprep.subr.mxu0 %v393
    %1986 = vmatpush1.msra.mxu0 %v392
    %1987 = vmatprep.subr.mxu0 %v389
    %1988 = vmatpush1.msra.mxu0 %v388
    %1989 = vmatprep.subr.mxu0 %v385
    %1990 = vmatpush1.msra.mxu0 %v384
    %1991 = vmatprep.subr.mxu0 %v381
    %1992 = vmatpush1.msra.mxu0 %v380
    %1993 = vmatprep.subr.mxu0 %v377
    %1994 = vmatpush1.msra.mxu0 %v376
    %1995 = vmatprep.subr.mxu0 %v373
    %1996 = vmatpush1.msra.mxu0 %v372
    %1997 = vmatprep.subr.mxu0 %v369
    %1998 = vmatpush1.msra.mxu0 %v368
    %1999 = vmatprep.subr.mxu0 %v365
    %2000 = vmatpush1.msra.mxu0 %v364
    %2001 = vmatprep.subr.mxu0 %v361
    %2002 = vmatpush1.msra.mxu0 %v360
    %2003 = vmatprep.subr.mxu0 %v357
    %2004 = vmatpush1.msra.mxu0 %v356
    %2005 = vmatprep.subr.mxu0 %v353
    %2006 = vmatpush1.msra.mxu0 %v352
    %2007 = vmatprep.subr.mxu0 %v349
    %2008 = vmatpush1.msra.mxu0 %v348
    %2009 = vmatprep.subr.mxu0 %v345
    %2010 = vmatpush1.msra.mxu0 %v344
    %2011 = vmatprep.subr.mxu0 %v341
    %2012 = vmatpush1.msra.mxu0 %v340
    %2013 = vmatprep.subr.mxu0 %v337
    %2014 = vmatpush1.msra.mxu0 %v336
    %2015 = vmatprep.subr.mxu0 %v333
    %2016 = vmatpush1.msra.mxu0 %v332
    %2017 = vmatprep.subr.mxu0 0.0
    %2018 = vmatpush2.msra.mxu0 0.0
    %2019 = vmatprep.subr.mxu0 0.0
    %2020 = vmatpush2.msra.mxu0 0.0
    %2021 = vmatprep.subr.mxu0 0.0
    %2022 = vmatpush2.msra.mxu0 0.0
    %2023 = vmatprep.subr.mxu0 0.0
    %2024 = vmatpush2.msra.mxu0 0.0
    %2025 = vmatprep.subr.mxu0 0.0
    %2026 = vmatpush2.msra.mxu0 0.0
    %2027 = vmatprep.subr.mxu0 0.0
    %2028 = vmatpush2.msra.mxu0 0.0
    %2029 = vmatprep.subr.mxu0 0.0
    %2030 = vmatpush2.msra.mxu0 0.0
    %2031 = vmatprep.subr.mxu0 0.0
    %2032 = vmatpush2.msra.mxu0 0.0
    %2033 = vmatprep.subr.mxu0 0.0
    %2034 = vmatpush2.msra.mxu0 0.0
    %2035 = vmatprep.subr.mxu0 0.0
    %2036 = vmatpush2.msra.mxu0 0.0
    %2037 = vmatprep.subr.mxu0 0.0
    %2038 = vmatpush2.msra.mxu0 0.0
    %2039 = vmatprep.subr.mxu0 0.0
    %2040 = vmatpush2.msra.mxu0 0.0
    %2041 = vmatprep.subr.mxu0 0.0
    %2042 = vmatpush2.msra.mxu0 0.0
    %2043 = vmatprep.subr.mxu0 0.0
    %2044 = vmatpush2.msra.mxu0 0.0
    %2045 = vmatprep.subr.mxu0 0.0
    %2046 = vmatpush2.msra.mxu0 0.0
    %2047 = vmatprep.subr.mxu0 0.0
    %2048 = vmatpush2.msra.mxu0 0.0
    %2049 = vmatprep.mubr.f32.mxu0 0.0
    %2050 = vmatmul.mubr.f32.gmra.mxu0 %v1749
    %v2051 = vpop.f32.mrf.mxu0
    %v2052 = vadd.f32 0.0, %v2051
    %v2053 = vpop.f32.mrf.mxu0
    %v2054 = vadd.f32 0.0, %v2053
    %2055 = vdwg.mxu0
    %v2056 = vadd.f32 %v249, %v1981
    %v2057 = vadd.f32 %v251, %v1983
    %v2058 = vadd.f32 %v326, %v2052
    %v2059 = vadd.f32 %v328, %v2054
    %v2060 = vmul.f32 %v2056, %v126
    %v2061 = vmul.f32 %v2057, %v127
    %v2062 = vmul.f32 %v2058, %v128
    %v2063 = vmul.f32 %v2059, %v129
    %v2064 = vtanh.pop %v2060
    %v2065 = vtanh.pop %v2061
    %v2066 = vtanh.pop %v2062
    %v2067 = vtanh.pop %v2063
    %v2068 = vadd.f32 %v2064, 1.0
    %v2069 = vmul.f32 %v2068, 0.5
    %v2070 = vadd.f32 %v2065, 1.0
    %v2071 = vmul.f32 %v2070, 0.5
    %v2072 = vadd.f32 %v2067, 1.0
    %v2073 = vmul.f32 %v2072, 0.5
    %v2075 = vrot.slane %v1743, 6
    %v2077 = vmul.f32 %v2071, %v2075
    %v2078 = vmul.f32 %v2069, %v2066
    %v2079 = vadd.f32 %v2077, %v2078
    %v2080 = vtanh.pop %v2079
    %v2081 = vmul.f32 %v2073, %v2080
    %2082 = vmatprep.subr.mxu0 %v455
    %2083 = vmatpush1.msra.mxu0 %v454
    %2084 = vmatprep.subr.mxu0 %v451
    %2085 = vmatpush1.msra.mxu0 %v450
    %2086 = vmatprep.subr.mxu0 %v447
    %2087 = vmatpush1.msra.mxu0 %v446
    %2088 = vmatprep.subr.mxu0 %v443
    %2089 = vmatpush1.msra.mxu0 %v442
    %2090 = vmatprep.subr.mxu0 %v439
    %2091 = vmatpush1.msra.mxu0 %v438
    %2092 = vmatprep.subr.mxu0 %v435
    %2093 = vmatpush1.msra.mxu0 %v434
    %2094 = vmatprep.subr.mxu0 %v431
    %2095 = vmatpush1.msra.mxu0 %v430
    %2096 = vmatprep.subr.mxu0 %v427
    %2097 = vmatpush1.msra.mxu0 %v426
    %2098 = vmatprep.subr.mxu0 %v423
    %2099 = vmatpush1.msra.mxu0 %v422
    %2100 = vmatprep.subr.mxu0 %v419
    %2101 = vmatpush1.msra.mxu0 %v418
    %2102 = vmatprep.subr.mxu0 %v415
    %2103 = vmatpush1.msra.mxu0 %v414
    %2104 = vmatprep.subr.mxu0 %v411
    %2105 = vmatpush1.msra.mxu0 %v410
    %2106 = vmatprep.subr.mxu0 %v407
    %2107 = vmatpush1.msra.mxu0 %v406
    %2108 = vmatprep.subr.mxu0 %v403
    %2109 = vmatpush1.msra.mxu0 %v402
    %2110 = vmatprep.subr.mxu0 %v399
    %2111 = vmatpush1.msra.mxu0 %v398
    %2112 = vmatprep.subr.mxu0 %v395
    %2113 = vmatpush1.msra.mxu0 %v394
    %2114 = vmatprep.subr.mxu0 %v519
    %2115 = vmatpush2.msra.mxu0 %v518
    %2116 = vmatprep.subr.mxu0 %v515
    %2117 = vmatpush2.msra.mxu0 %v514
    %2118 = vmatprep.subr.mxu0 %v511
    %2119 = vmatpush2.msra.mxu0 %v510
    %2120 = vmatprep.subr.mxu0 %v507
    %2121 = vmatpush2.msra.mxu0 %v506
    %2122 = vmatprep.subr.mxu0 %v503
    %2123 = vmatpush2.msra.mxu0 %v502
    %2124 = vmatprep.subr.mxu0 %v499
    %2125 = vmatpush2.msra.mxu0 %v498
    %2126 = vmatprep.subr.mxu0 %v495
    %2127 = vmatpush2.msra.mxu0 %v494
    %2128 = vmatprep.subr.mxu0 %v491
    %2129 = vmatpush2.msra.mxu0 %v490
    %2130 = vmatprep.subr.mxu0 %v487
    %2131 = vmatpush2.msra.mxu0 %v486
    %2132 = vmatprep.subr.mxu0 %v483
    %2133 = vmatpush2.msra.mxu0 %v482
    %2134 = vmatprep.subr.mxu0 %v479
    %2135 = vmatpush2.msra.mxu0 %v478
    %2136 = vmatprep.subr.mxu0 %v475
    %2137 = vmatpush2.msra.mxu0 %v474
    %2138 = vmatprep.subr.mxu0 %v471
    %2139 = vmatpush2.msra.mxu0 %v470
    %2140 = vmatprep.subr.mxu0 %v467
    %2141 = vmatpush2.msra.mxu0 %v466
    %2142 = vmatprep.subr.mxu0 %v463
    %2143 = vmatpush2.msra.mxu0 %v462
    %2144 = vmatprep.subr.mxu0 %v459
    %2145 = vmatpush2.msra.mxu0 %v458
    %2146 = vmatprep.mubr.f32.mxu0 %v1913
    %2147 = vmatmul.mubr.f32.gmra.mxu0 %v2081
    %v2148 = vpop.f32.mrf.mxu0
    %v2149 = vadd.f32 %v692, %v2148
    %v2150 = vpop.f32.mrf.mxu0
    %v2151 = vadd.f32 %v696, %v2150
    %2152 = vdwg.mxu0
    %2153 = vmatprep.subr.mxu0 %v457
    %2154 = vmatpush1.msra.mxu0 %v456
    %2155 = vmatprep.subr.mxu0 %v453
    %2156 = vmatpush1.msra.mxu0 %v452
    %2157 = vmatprep.subr.mxu0 %v449
    %2158 = vmatpush1.msra.mxu0 %v448
    %2159 = vmatprep.subr.mxu0 %v445
    %2160 = vmatpush1.msra.mxu0 %v444
    %2161 = vmatprep.subr.mxu0 %v441
    %2162 = vmatpush1.msra.mxu0 %v440
    %2163 = vmatprep.subr.mxu0 %v437
    %2164 = vmatpush1.msra.mxu0 %v436
    %2165 = vmatprep.subr.mxu0 %v433
    %2166 = vmatpush1.msra.mxu0 %v432
    %2167 = vmatprep.subr.mxu0 %v429
    %2168 = vmatpush1.msra.mxu0 %v428
    %2169 = vmatprep.subr.mxu0 %v425
    %2170 = vmatpush1.msra.mxu0 %v424
    %2171 = vmatprep.subr.mxu0 %v421
    %2172 = vmatpush1.msra.mxu0 %v420
    %2173 = vmatprep.subr.mxu0 %v417
    %2174 = vmatpush1.msra.mxu0 %v416
    %2175 = vmatprep.subr.mxu0 %v413
    %2176 = vmatpush1.msra.mxu0 %v412
    %2177 = vmatprep.subr.mxu0 %v409
    %2178 = vmatpush1.msra.mxu0 %v408
    %2179 = vmatprep.subr.mxu0 %v405
    %2180 = vmatpush1.msra.mxu0 %v404
    %2181 = vmatprep.subr.mxu0 %v401
    %2182 = vmatpush1.msra.mxu0 %v400
    %2183 = vmatprep.subr.mxu0 %v397
    %2184 = vmatpush1.msra.mxu0 %v396
    %2185 = vmatprep.subr.mxu0 %v521
    %2186 = vmatpush2.msra.mxu0 %v520
    %2187 = vmatprep.subr.mxu0 %v517
    %2188 = vmatpush2.msra.mxu0 %v516
    %2189 = vmatprep.subr.mxu0 %v513
    %2190 = vmatpush2.msra.mxu0 %v512
    %2191 = vmatprep.subr.mxu0 %v509
    %2192 = vmatpush2.msra.mxu0 %v508
    %2193 = vmatprep.subr.mxu0 %v505
    %2194 = vmatpush2.msra.mxu0 %v504
    %2195 = vmatprep.subr.mxu0 %v501
    %2196 = vmatpush2.msra.mxu0 %v500
    %2197 = vmatprep.subr.mxu0 %v497
    %2198 = vmatpush2.msra.mxu0 %v496
    %2199 = vmatprep.subr.mxu0 %v493
    %2200 = vmatpush2.msra.mxu0 %v492
    %2201 = vmatprep.subr.mxu0 %v489
    %2202 = vmatpush2.msra.mxu0 %v488
    %2203 = vmatprep.subr.mxu0 %v485
    %2204 = vmatpush2.msra.mxu0 %v484
    %2205 = vmatprep.subr.mxu0 %v481
    %2206 = vmatpush2.msra.mxu0 %v480
    %2207 = vmatprep.subr.mxu0 %v477
    %2208 = vmatpush2.msra.mxu0 %v476
    %2209 = vmatprep.subr.mxu0 %v473
    %2210 = vmatpush2.msra.mxu0 %v472
    %2211 = vmatprep.subr.mxu0 %v469
    %2212 = vmatpush2.msra.mxu0 %v468
    %2213 = vmatprep.subr.mxu0 %v465
    %2214 = vmatpush2.msra.mxu0 %v464
    %2215 = vmatprep.subr.mxu0 %v461
    %2216 = vmatpush2.msra.mxu0 %v460
    %2217 = vmatprep.mubr.f32.mxu0 %v1913
    %2218 = vmatmul.mubr.f32.gmra.mxu0 %v2081
    %v2219 = vpop.f32.mrf.mxu0
    %v2220 = vadd.f32 %v700, %v2219
    %v2221 = vpop.f32.mrf.mxu0
    %v2222 = vadd.f32 %v704, %v2221
    %2223 = vdwg.mxu0
    %v2224 = vmul.f32 %v2149, %v126
    %v2225 = vmul.f32 %v2151, %v127
    %v2226 = vmul.f32 %v2220, %v128
    %v2227 = vmul.f32 %v2222, %v129
    %v2228 = vtanh.pop %v2224
    %v2229 = vtanh.pop %v2225
    %v2230 = vtanh.pop %v2226
    %v2231 = vtanh.pop %v2227
    %v2232 = vadd.f32 %v2228, 1.0
    %v2233 = vmul.f32 %v2232, 0.5
    %v2234 = vadd.f32 %v2229, 1.0
    %v2235 = vmul.f32 %v2234, 0.5
    %v2236 = vadd.f32 %v2231, 1.0
    %v2237 = vmul.f32 %v2236, 0.5
    %v2238 = vmul.f32 %v2235, %v1911
    %v2239 = vmul.f32 %v2233, %v2230
    %v2240 = vadd.f32 %v2238, %v2239
    %v2241 = vtanh.pop %v2240
    %v2242 = vmul.f32 %v2237, %v2241
    %2243 = vmatprep.subr.mxu0 %v391
    %2244 = vmatpush1.msra.mxu0 %v390
    %2245 = vmatprep.subr.mxu0 %v387
    %2246 = vmatpush1.msra.mxu0 %v386
    %2247 = vmatprep.subr.mxu0 %v383
    %2248 = vmatpush1.msra.mxu0 %v382
    %2249 = vmatprep.subr.mxu0 %v379
    %2250 = vmatpush1.msra.mxu0 %v378
    %2251 = vmatprep.subr.mxu0 %v375
    %2252 = vmatpush1.msra.mxu0 %v374
    %2253 = vmatprep.subr.mxu0 %v371
    %2254 = vmatpush1.msra.mxu0 %v370
    %2255 = vmatprep.subr.mxu0 %v367
    %2256 = vmatpush1.msra.mxu0 %v366
    %2257 = vmatprep.subr.mxu0 %v363
    %2258 = vmatpush1.msra.mxu0 %v362
    %2259 = vmatprep.subr.mxu0 %v359
    %2260 = vmatpush1.msra.mxu0 %v358
    %2261 = vmatprep.subr.mxu0 %v355
    %2262 = vmatpush1.msra.mxu0 %v354
    %2263 = vmatprep.subr.mxu0 %v351
    %2264 = vmatpush1.msra.mxu0 %v350
    %2265 = vmatprep.subr.mxu0 %v347
    %2266 = vmatpush1.msra.mxu0 %v346
    %2267 = vmatprep.subr.mxu0 %v343
    %2268 = vmatpush1.msra.mxu0 %v342
    %2269 = vmatprep.subr.mxu0 %v339
    %2270 = vmatpush1.msra.mxu0 %v338
    %2271 = vmatprep.subr.mxu0 %v335
    %2272 = vmatpush1.msra.mxu0 %v334
    %2273 = vmatprep.subr.mxu0 %v331
    %2274 = vmatpush1.msra.mxu0 %v330
    %2275 = vmatprep.subr.mxu0 0.0
    %2276 = vmatpush2.msra.mxu0 0.0
    %2277 = vmatprep.subr.mxu0 0.0
    %2278 = vmatpush2.msra.mxu0 0.0
    %2279 = vmatprep.subr.mxu0 0.0
    %2280 = vmatpush2.msra.mxu0 0.0
    %2281 = vmatprep.subr.mxu0 0.0
    %2282 = vmatpush2.msra.mxu0 0.0
    %2283 = vmatprep.subr.mxu0 0.0
    %2284 = vmatpush2.msra.mxu0 0.0
    %2285 = vmatprep.subr.mxu0 0.0
    %2286 = vmatpush2.msra.mxu0 0.0
    %2287 = vmatprep.subr.mxu0 0.0
    %2288 = vmatpush2.msra.mxu0 0.0
    %2289 = vmatprep.subr.mxu0 0.0
    %2290 = vmatpush2.msra.mxu0 0.0
    %2291 = vmatprep.subr.mxu0 0.0
    %2292 = vmatpush2.msra.mxu0 0.0
    %2293 = vmatprep.subr.mxu0 0.0
    %2294 = vmatpush2.msra.mxu0 0.0
    %2295 = vmatprep.subr.mxu0 0.0
    %2296 = vmatpush2.msra.mxu0 0.0
    %2297 = vmatprep.subr.mxu0 0.0
    %2298 = vmatpush2.msra.mxu0 0.0
    %2299 = vmatprep.subr.mxu0 0.0
    %2300 = vmatpush2.msra.mxu0 0.0
    %2301 = vmatprep.subr.mxu0 0.0
    %2302 = vmatpush2.msra.mxu0 0.0
    %2303 = vmatprep.subr.mxu0 0.0
    %2304 = vmatpush2.msra.mxu0 0.0
    %2305 = vmatprep.subr.mxu0 0.0
    %2306 = vmatpush2.msra.mxu0 0.0
    %2307 = vmatprep.mubr.f32.mxu0 0.0
    %2308 = vmatmul.mubr.f32.gmra.mxu0 %v2081
    %v2309 = vpop.f32.mrf.mxu0
    %v2310 = vadd.f32 0.0, %v2309
    %v2311 = vpop.f32.mrf.mxu0
    %v2312 = vadd.f32 0.0, %v2311
    %2313 = vdwg.mxu0
    %2314 = vmatprep.subr.mxu0 %v393
    %2315 = vmatpush1.msra.mxu0 %v392
    %2316 = vmatprep.subr.mxu0 %v389
    %2317 = vmatpush1.msra.mxu0 %v388
    %2318 = vmatprep.subr.mxu0 %v385
    %2319 = vmatpush1.msra.mxu0 %v384
    %2320 = vmatprep.subr.mxu0 %v381
    %2321 = vmatpush1.msra.mxu0 %v380
    %2322 = vmatprep.subr.mxu0 %v377
    %2323 = vmatpush1.msra.mxu0 %v376
    %2324 = vmatprep.subr.mxu0 %v373
    %2325 = vmatpush1.msra.mxu0 %v372
    %2326 = vmatprep.subr.mxu0 %v369
    %2327 = vmatpush1.msra.mxu0 %v368
    %2328 = vmatprep.subr.mxu0 %v365
    %2329 = vmatpush1.msra.mxu0 %v364
    %2330 = vmatprep.subr.mxu0 %v361
    %2331 = vmatpush1.msra.mxu0 %v360
    %2332 = vmatprep.subr.mxu0 %v357
    %2333 = vmatpush1.msra.mxu0 %v356
    %2334 = vmatprep.subr.mxu0 %v353
    %2335 = vmatpush1.msra.mxu0 %v352
    %2336 = vmatprep.subr.mxu0 %v349
    %2337 = vmatpush1.msra.mxu0 %v348
    %2338 = vmatprep.subr.mxu0 %v345
    %2339 = vmatpush1.msra.mxu0 %v344
    %2340 = vmatprep.subr.mxu0 %v341
    %2341 = vmatpush1.msra.mxu0 %v340
    %2342 = vmatprep.subr.mxu0 %v337
    %2343 = vmatpush1.msra.mxu0 %v336
    %2344 = vmatprep.subr.mxu0 %v333
    %2345 = vmatpush1.msra.mxu0 %v332
    %2346 = vmatprep.subr.mxu0 0.0
    %2347 = vmatpush2.msra.mxu0 0.0
    %2348 = vmatprep.subr.mxu0 0.0
    %2349 = vmatpush2.msra.mxu0 0.0
    %2350 = vmatprep.subr.mxu0 0.0
    %2351 = vmatpush2.msra.mxu0 0.0
    %2352 = vmatprep.subr.mxu0 0.0
    %2353 = vmatpush2.msra.mxu0 0.0
    %2354 = vmatprep.subr.mxu0 0.0
    %2355 = vmatpush2.msra.mxu0 0.0
    %2356 = vmatprep.subr.mxu0 0.0
    %2357 = vmatpush2.msra.mxu0 0.0
    %2358 = vmatprep.subr.mxu0 0.0
    %2359 = vmatpush2.msra.mxu0 0.0
    %2360 = vmatprep.subr.mxu0 0.0
    %2361 = vmatpush2.msra.mxu0 0.0
    %2362 = vmatprep.subr.mxu0 0.0
    %2363 = vmatpush2.msra.mxu0 0.0
    %2364 = vmatprep.subr.mxu0 0.0
    %2365 = vmatpush2.msra.mxu0 0.0
    %2366 = vmatprep.subr.mxu0 0.0
    %2367 = vmatpush2.msra.mxu0 0.0
    %2368 = vmatprep.subr.mxu0 0.0
    %2369 = vmatpush2.msra.mxu0 0.0
    %2370 = vmatprep.subr.mxu0 0.0
    %2371 = vmatpush2.msra.mxu0 0.0
    %2372 = vmatprep.subr.mxu0 0.0
    %2373 = vmatpush2.msra.mxu0 0.0
    %2374 = vmatprep.subr.mxu0 0.0
    %2375 = vmatpush2.msra.mxu0 0.0
    %2376 = vmatprep.subr.mxu0 0.0
    %2377 = vmatpush2.msra.mxu0 0.0
    %2378 = vmatprep.mubr.f32.mxu0 0.0
    %2379 = vmatmul.mubr.f32.gmra.mxu0 %v2081
    %v2380 = vpop.f32.mrf.mxu0
    %v2381 = vadd.f32 0.0, %v2380
    %v2382 = vpop.f32.mrf.mxu0
    %v2383 = vadd.f32 0.0, %v2382
    %2384 = vdwg.mxu0
    %v2389 = vrot.slane %v2310, 6
    %v2390 = vrot.slane %v2312, 6
    %v2391 = vrot.slane %v2381, 6
    %v2392 = vrot.slane %v2383, 6
    %v2397 = vadd.f32 %v249, %v2389
    %v2398 = vadd.f32 %v251, %v2390
    %v2399 = vadd.f32 %v326, %v2391
    %v2400 = vadd.f32 %v328, %v2392
    %v2401 = vmul.f32 %v2397, %v126
    %v2402 = vmul.f32 %v2398, %v127
    %v2403 = vmul.f32 %v2399, %v128
    %v2404 = vmul.f32 %v2400, %v129
    %v2405 = vtanh.pop %v2401
    %v2406 = vtanh.pop %v2402
    %v2407 = vtanh.pop %v2403
    %v2408 = vtanh.pop %v2404
    %v2409 = vadd.f32 %v2405, 1.0
    %v2410 = vmul.f32 %v2409, 0.5
    %v2411 = vadd.f32 %v2406, 1.0
    %v2412 = vmul.f32 %v2411, 0.5
    %v2413 = vadd.f32 %v2408, 1.0
    %v2414 = vmul.f32 %v2413, 0.5
    %v2416 = vrot.slane %v2079, 6
    %v2418 = vmul.f32 %v2412, %v2416
    %v2419 = vmul.f32 %v2410, %v2407
    %v2420 = vadd.f32 %v2418, %v2419
    %v2421 = vtanh.pop %v2420
    %v2422 = vmul.f32 %v2414, %v2421
    %v2424 = vrot.slane %v2242, 6
    %v2426 = vrot.slane %v2422, 2
    %v2427 = vrot.slane %v2424, 2
    %2430 = vmatprep.subr.mxu0 %v455
    %2431 = vmatpush1.msra.mxu0 %v454
    %2432 = vmatprep.subr.mxu0 %v451
    %2433 = vmatpush1.msra.mxu0 %v450
    %2434 = vmatprep.subr.mxu0 %v447
    %2435 = vmatpush1.msra.mxu0 %v446
    %2436 = vmatprep.subr.mxu0 %v443
    %2437 = vmatpush1.msra.mxu0 %v442
    %2438 = vmatprep.subr.mxu0 %v439
    %2439 = vmatpush1.msra.mxu0 %v438
    %2440 = vmatprep.subr.mxu0 %v435
    %2441 = vmatpush1.msra.mxu0 %v434
    %2442 = vmatprep.subr.mxu0 %v431
    %2443 = vmatpush1.msra.mxu0 %v430
    %2444 = vmatprep.subr.mxu0 %v427
    %2445 = vmatpush1.msra.mxu0 %v426
    %2446 = vmatprep.subr.mxu0 %v423
    %2447 = vmatpush1.msra.mxu0 %v422
    %2448 = vmatprep.subr.mxu0 %v419
    %2449 = vmatpush1.msra.mxu0 %v418
    %2450 = vmatprep.subr.mxu0 %v415
    %2451 = vmatpush1.msra.mxu0 %v414
    %2452 = vmatprep.subr.mxu0 %v411
    %2453 = vmatpush1.msra.mxu0 %v410
    %2454 = vmatprep.subr.mxu0 %v407
    %2455 = vmatpush1.msra.mxu0 %v406
    %2456 = vmatprep.subr.mxu0 %v403
    %2457 = vmatpush1.msra.mxu0 %v402
    %2458 = vmatprep.subr.mxu0 %v399
    %2459 = vmatpush1.msra.mxu0 %v398
    %2460 = vmatprep.subr.mxu0 %v395
    %2461 = vmatpush1.msra.mxu0 %v394
    %2462 = vmatprep.subr.mxu0 %v519
    %2463 = vmatpush2.msra.mxu0 %v518
    %2464 = vmatprep.subr.mxu0 %v515
    %2465 = vmatpush2.msra.mxu0 %v514
    %2466 = vmatprep.subr.mxu0 %v511
    %2467 = vmatpush2.msra.mxu0 %v510
    %2468 = vmatprep.subr.mxu0 %v507
    %2469 = vmatpush2.msra.mxu0 %v506
    %2470 = vmatprep.subr.mxu0 %v503
    %2471 = vmatpush2.msra.mxu0 %v502
    %2472 = vmatprep.subr.mxu0 %v499
    %2473 = vmatpush2.msra.mxu0 %v498
    %2474 = vmatprep.subr.mxu0 %v495
    %2475 = vmatpush2.msra.mxu0 %v494
    %2476 = vmatprep.subr.mxu0 %v491
    %2477 = vmatpush2.msra.mxu0 %v490
    %2478 = vmatprep.subr.mxu0 %v487
    %2479 = vmatpush2.msra.mxu0 %v486
    %2480 = vmatprep.subr.mxu0 %v483
    %2481 = vmatpush2.msra.mxu0 %v482
    %2482 = vmatprep.subr.mxu0 %v479
    %2483 = vmatpush2.msra.mxu0 %v478
    %2484 = vmatprep.subr.mxu0 %v475
    %2485 = vmatpush2.msra.mxu0 %v474
    %2486 = vmatprep.subr.mxu0 %v471
    %2487 = vmatpush2.msra.mxu0 %v470
    %2488 = vmatprep.subr.mxu0 %v467
    %2489 = vmatpush2.msra.mxu0 %v466
    %2490 = vmatprep.subr.mxu0 %v463
    %2491 = vmatpush2.msra.mxu0 %v462
    %2492 = vmatprep.subr.mxu0 %v459
    %2493 = vmatpush2.msra.mxu0 %v458
    %2494 = vmatprep.mubr.f32.mxu0 %v2427
    %2495 = vmatmul.mubr.f32.gmra.mxu0 %v2426
    %v2496 = vpop.f32.mrf.mxu0
    %v2497 = vadd.f32 %v692, %v2496
    %v2498 = vpop.f32.mrf.mxu0
    %v2499 = vadd.f32 %v696, %v2498
    %2500 = vdwg.mxu0
    %2501 = vmatprep.subr.mxu0 %v457
    %2502 = vmatpush1.msra.mxu0 %v456
    %2503 = vmatprep.subr.mxu0 %v453
    %2504 = vmatpush1.msra.mxu0 %v452
    %2505 = vmatprep.subr.mxu0 %v449
    %2506 = vmatpush1.msra.mxu0 %v448
    %2507 = vmatprep.subr.mxu0 %v445
    %2508 = vmatpush1.msra.mxu0 %v444
    %2509 = vmatprep.subr.mxu0 %v441
    %2510 = vmatpush1.msra.mxu0 %v440
    %2511 = vmatprep.subr.mxu0 %v437
    %2512 = vmatpush1.msra.mxu0 %v436
    %2513 = vmatprep.subr.mxu0 %v433
    %2514 = vmatpush1.msra.mxu0 %v432
    %2515 = vmatprep.subr.mxu0 %v429
    %2516 = vmatpush1.msra.mxu0 %v428
    %2517 = vmatprep.subr.mxu0 %v425
    %2518 = vmatpush1.msra.mxu0 %v424
    %2519 = vmatprep.subr.mxu0 %v421
    %2520 = vmatpush1.msra.mxu0 %v420
    %2521 = vmatprep.subr.mxu0 %v417
    %2522 = vmatpush1.msra.mxu0 %v416
    %2523 = vmatprep.subr.mxu0 %v413
    %2524 = vmatpush1.msra.mxu0 %v412
    %2525 = vmatprep.subr.mxu0 %v409
    %2526 = vmatpush1.msra.mxu0 %v408
    %2527 = vmatprep.subr.mxu0 %v405
    %2528 = vmatpush1.msra.mxu0 %v404
    %2529 = vmatprep.subr.mxu0 %v401
    %2530 = vmatpush1.msra.mxu0 %v400
    %2531 = vmatprep.subr.mxu0 %v397
    %2532 = vmatpush1.msra.mxu0 %v396
    %2533 = vmatprep.subr.mxu0 %v521
    %2534 = vmatpush2.msra.mxu0 %v520
    %2535 = vmatprep.subr.mxu0 %v517
    %2536 = vmatpush2.msra.mxu0 %v516
    %2537 = vmatprep.subr.mxu0 %v513
    %2538 = vmatpush2.msra.mxu0 %v512
    %2539 = vmatprep.subr.mxu0 %v509
    %2540 = vmatpush2.msra.mxu0 %v508
    %2541 = vmatprep.subr.mxu0 %v505
    %2542 = vmatpush2.msra.mxu0 %v504
    %2543 = vmatprep.subr.mxu0 %v501
    %2544 = vmatpush2.msra.mxu0 %v500
    %2545 = vmatprep.subr.mxu0 %v497
    %2546 = vmatpush2.msra.mxu0 %v496
    %2547 = vmatprep.subr.mxu0 %v493
    %2548 = vmatpush2.msra.mxu0 %v492
    %2549 = vmatprep.subr.mxu0 %v489
    %2550 = vmatpush2.msra.mxu0 %v488
    %2551 = vmatprep.subr.mxu0 %v485
    %2552 = vmatpush2.msra.mxu0 %v484
    %2553 = vmatprep.subr.mxu0 %v481
    %2554 = vmatpush2.msra.mxu0 %v480
    %2555 = vmatprep.subr.mxu0 %v477
    %2556 = vmatpush2.msra.mxu0 %v476
    %2557 = vmatprep.subr.mxu0 %v473
    %2558 = vmatpush2.msra.mxu0 %v472
    %2559 = vmatprep.subr.mxu0 %v469
    %2560 = vmatpush2.msra.mxu0 %v468
    %2561 = vmatprep.subr.mxu0 %v465
    %2562 = vmatpush2.msra.mxu0 %v464
    %2563 = vmatprep.subr.mxu0 %v461
    %2564 = vmatpush2.msra.mxu0 %v460
    %2565 = vmatprep.mubr.f32.mxu0 %v2427
    %2566 = vmatmul.mubr.f32.gmra.mxu0 %v2426
    %v2567 = vpop.f32.mrf.mxu0
    %v2568 = vadd.f32 %v700, %v2567
    %v2569 = vpop.f32.mrf.mxu0
    %v2570 = vadd.f32 %v704, %v2569
    %2571 = vdwg.mxu0
    %v2572 = vmul.f32 %v2497, %v126
    %v2573 = vmul.f32 %v2499, %v127
    %v2574 = vmul.f32 %v2568, %v128
    %v2575 = vmul.f32 %v2570, %v129
    %v2576 = vtanh.pop %v2572
    %v2577 = vtanh.pop %v2573
    %v2578 = vtanh.pop %v2574
    %v2579 = vtanh.pop %v2575
    %v2580 = vadd.f32 %v2576, 1.0
    %v2581 = vmul.f32 %v2580, 0.5
    %v2582 = vadd.f32 %v2577, 1.0
    %v2583 = vmul.f32 %v2582, 0.5
    %v2584 = vadd.f32 %v2579, 1.0
    %v2585 = vmul.f32 %v2584, 0.5
    %v2586 = vmul.f32 %v2583, %v2240
    %v2587 = vmul.f32 %v2581, %v2578
    %v2588 = vadd.f32 %v2586, %v2587
    %v2589 = vtanh.pop %v2588
    %v2590 = vmul.f32 %v2585, %v2589
    %2591 = vmatprep.subr.mxu0 %v391
    %2592 = vmatpush1.msra.mxu0 %v390
    %2593 = vmatprep.subr.mxu0 %v387
    %2594 = vmatpush1.msra.mxu0 %v386
    %2595 = vmatprep.subr.mxu0 %v383
    %2596 = vmatpush1.msra.mxu0 %v382
    %2597 = vmatprep.subr.mxu0 %v379
    %2598 = vmatpush1.msra.mxu0 %v378
    %2599 = vmatprep.subr.mxu0 %v375
    %2600 = vmatpush1.msra.mxu0 %v374
    %2601 = vmatprep.subr.mxu0 %v371
    %2602 = vmatpush1.msra.mxu0 %v370
    %2603 = vmatprep.subr.mxu0 %v367
    %2604 = vmatpush1.msra.mxu0 %v366
    %2605 = vmatprep.subr.mxu0 %v363
    %2606 = vmatpush1.msra.mxu0 %v362
    %2607 = vmatprep.subr.mxu0 %v359
    %2608 = vmatpush1.msra.mxu0 %v358
    %2609 = vmatprep.subr.mxu0 %v355
    %2610 = vmatpush1.msra.mxu0 %v354
    %2611 = vmatprep.subr.mxu0 %v351
    %2612 = vmatpush1.msra.mxu0 %v350
    %2613 = vmatprep.subr.mxu0 %v347
    %2614 = vmatpush1.msra.mxu0 %v346
    %2615 = vmatprep.subr.mxu0 %v343
    %2616 = vmatpush1.msra.mxu0 %v342
    %2617 = vmatprep.subr.mxu0 %v339
    %2618 = vmatpush1.msra.mxu0 %v338
    %2619 = vmatprep.subr.mxu0 %v335
    %2620 = vmatpush1.msra.mxu0 %v334
    %2621 = vmatprep.subr.mxu0 %v331
    %2622 = vmatpush1.msra.mxu0 %v330
    %2623 = vmatprep.subr.mxu0 0.0
    %2624 = vmatpush2.msra.mxu0 0.0
    %2625 = vmatprep.subr.mxu0 0.0
    %2626 = vmatpush2.msra.mxu0 0.0
    %2627 = vmatprep.subr.mxu0 0.0
    %2628 = vmatpush2.msra.mxu0 0.0
    %2629 = vmatprep.subr.mxu0 0.0
    %2630 = vmatpush2.msra.mxu0 0.0
    %2631 = vmatprep.subr.mxu0 0.0
    %2632 = vmatpush2.msra.mxu0 0.0
    %2633 = vmatprep.subr.mxu0 0.0
    %2634 = vmatpush2.msra.mxu0 0.0
    %2635 = vmatprep.subr.mxu0 0.0
    %2636 = vmatpush2.msra.mxu0 0.0
    %2637 = vmatprep.subr.mxu0 0.0
    %2638 = vmatpush2.msra.mxu0 0.0
    %2639 = vmatprep.subr.mxu0 0.0
    %2640 = vmatpush2.msra.mxu0 0.0
    %2641 = vmatprep.subr.mxu0 0.0
    %2642 = vmatpush2.msra.mxu0 0.0
    %2643 = vmatprep.subr.mxu0 0.0
    %2644 = vmatpush2.msra.mxu0 0.0
    %2645 = vmatprep.subr.mxu0 0.0
    %2646 = vmatpush2.msra.mxu0 0.0
    %2647 = vmatprep.subr.mxu0 0.0
    %2648 = vmatpush2.msra.mxu0 0.0
    %2649 = vmatprep.subr.mxu0 0.0
    %2650 = vmatpush2.msra.mxu0 0.0
    %2651 = vmatprep.subr.mxu0 0.0
    %2652 = vmatpush2.msra.mxu0 0.0
    %2653 = vmatprep.subr.mxu0 0.0
    %2654 = vmatpush2.msra.mxu0 0.0
    %2655 = vmatprep.mubr.f32.mxu0 0.0
    %2656 = vmatmul.mubr.f32.gmra.mxu0 %v2426
    %v2657 = vpop.f32.mrf.mxu0
    %v2658 = vadd.f32 0.0, %v2657
    %v2659 = vpop.f32.mrf.mxu0
    %v2660 = vadd.f32 0.0, %v2659
    %2661 = vdwg.mxu0
    %2662 = vmatprep.subr.mxu0 %v393
    %2663 = vmatpush1.msra.mxu0 %v392
    %2664 = vmatprep.subr.mxu0 %v389
    %2665 = vmatpush1.msra.mxu0 %v388
    %2666 = vmatprep.subr.mxu0 %v385
    %2667 = vmatpush1.msra.mxu0 %v384
    %2668 = vmatprep.subr.mxu0 %v381
    %2669 = vmatpush1.msra.mxu0 %v380
    %2670 = vmatprep.subr.mxu0 %v377
    %2671 = vmatpush1.msra.mxu0 %v376
    %2672 = vmatprep.subr.mxu0 %v373
    %2673 = vmatpush1.msra.mxu0 %v372
    %2674 = vmatprep.subr.mxu0 %v369
    %2675 = vmatpush1.msra.mxu0 %v368
    %2676 = vmatprep.subr.mxu0 %v365
    %2677 = vmatpush1.msra.mxu0 %v364
    %2678 = vmatprep.subr.mxu0 %v361
    %2679 = vmatpush1.msra.mxu0 %v360
    %2680 = vmatprep.subr.mxu0 %v357
    %2681 = vmatpush1.msra.mxu0 %v356
    %2682 = vmatprep.subr.mxu0 %v353
    %2683 = vmatpush1.msra.mxu0 %v352
    %2684 = vmatprep.subr.mxu0 %v349
    %2685 = vmatpush1.msra.mxu0 %v348
    %2686 = vmatprep.subr.mxu0 %v345
    %2687 = vmatpush1.msra.mxu0 %v344
    %2688 = vmatprep.subr.mxu0 %v341
    %2689 = vmatpush1.msra.mxu0 %v340
    %2690 = vmatprep.subr.mxu0 %v337
    %2691 = vmatpush1.msra.mxu0 %v336
    %2692 = vmatprep.subr.mxu0 %v333
    %2693 = vmatpush1.msra.mxu0 %v332
    %2694 = vmatprep.subr.mxu0 0.0
    %2695 = vmatpush2.msra.mxu0 0.0
    %2696 = vmatprep.subr.mxu0 0.0
    %2697 = vmatpush2.msra.mxu0 0.0
    %2698 = vmatprep.subr.mxu0 0.0
    %2699 = vmatpush2.msra.mxu0 0.0
    %2700 = vmatprep.subr.mxu0 0.0
    %2701 = vmatpush2.msra.mxu0 0.0
    %2702 = vmatprep.subr.mxu0 0.0
    %2703 = vmatpush2.msra.mxu0 0.0
    %2704 = vmatprep.subr.mxu0 0.0
    %2705 = vmatpush2.msra.mxu0 0.0
    %2706 = vmatprep.subr.mxu0 0.0
    %2707 = vmatpush2.msra.mxu0 0.0
    %2708 = vmatprep.subr.mxu0 0.0
    %2709 = vmatpush2.msra.mxu0 0.0
    %2710 = vmatprep.subr.mxu0 0.0
    %2711 = vmatpush2.msra.mxu0 0.0
    %2712 = vmatprep.subr.mxu0 0.0
    %2713 = vmatpush2.msra.mxu0 0.0
    %2714 = vmatprep.subr.mxu0 0.0
    %2715 = vmatpush2.msra.mxu0 0.0
    %2716 = vmatprep.subr.mxu0 0.0
    %2717 = vmatpush2.msra.mxu0 0.0
    %2718 = vmatprep.subr.mxu0 0.0
    %2719 = vmatpush2.msra.mxu0 0.0
    %2720 = vmatprep.subr.mxu0 0.0
    %2721 = vmatpush2.msra.mxu0 0.0
    %2722 = vmatprep.subr.mxu0 0.0
    %2723 = vmatpush2.msra.mxu0 0.0
    %2724 = vmatprep.subr.mxu0 0.0
    %2725 = vmatpush2.msra.mxu0 0.0
    %2726 = vmatprep.mubr.f32.mxu0 0.0
    %2727 = vmatmul.mubr.f32.gmra.mxu0 %v2426
    %v2728 = vpop.f32.mrf.mxu0
    %v2729 = vadd.f32 0.0, %v2728
    %v2730 = vpop.f32.mrf.mxu0
    %v2731 = vadd.f32 0.0, %v2730
    %2732 = vdwg.mxu0
    %v2737 = vrot.slane %v2658, 4
    %v2738 = vrot.slane %v2660, 4
    %v2739 = vrot.slane %v2729, 4
    %v2740 = vrot.slane %v2731, 4
    %v2745 = vadd.f32 %v249, %v2737
    %v2746 = vadd.f32 %v251, %v2738
    %v2747 = vadd.f32 %v326, %v2739
    %v2748 = vadd.f32 %v328, %v2740
    %v2749 = vmul.f32 %v2745, %v126
    %v2750 = vmul.f32 %v2746, %v127
    %v2751 = vmul.f32 %v2747, %v128
    %v2752 = vmul.f32 %v2748, %v129
    %v2753 = vtanh.pop %v2749
    %v2754 = vtanh.pop %v2750
    %v2755 = vtanh.pop %v2751
    %v2756 = vtanh.pop %v2752
    %v2757 = vadd.f32 %v2753, 1.0
    %v2758 = vmul.f32 %v2757, 0.5
    %v2759 = vadd.f32 %v2754, 1.0
    %v2760 = vmul.f32 %v2759, 0.5
    %v2761 = vadd.f32 %v2756, 1.0
    %v2762 = vmul.f32 %v2761, 0.5
    %v2764 = vrot.slane %v2420, 6
    %v2766 = vmul.f32 %v2760, %v2764
    %v2767 = vmul.f32 %v2758, %v2755
    %v2768 = vadd.f32 %v2766, %v2767
    %v2769 = vtanh.pop %v2768
    %v2770 = vmul.f32 %v2762, %v2769
    %v2772 = vrot.slane %v2590, 4
    %v2774 = vrot.slane %v2770, 4
    %v2775 = vrot.slane %v2772, 4
    %2778 = vmatprep.subr.mxu0 %v455
    %2779 = vmatpush1.msra.mxu0 %v454
    %2780 = vmatprep.subr.mxu0 %v451
    %2781 = vmatpush1.msra.mxu0 %v450
    %2782 = vmatprep.subr.mxu0 %v447
    %2783 = vmatpush1.msra.mxu0 %v446
    %2784 = vmatprep.subr.mxu0 %v443
    %2785 = vmatpush1.msra.mxu0 %v442
    %2786 = vmatprep.subr.mxu0 %v439
    %2787 = vmatpush1.msra.mxu0 %v438
    %2788 = vmatprep.subr.mxu0 %v435
    %2789 = vmatpush1.msra.mxu0 %v434
    %2790 = vmatprep.subr.mxu0 %v431
    %2791 = vmatpush1.msra.mxu0 %v430
    %2792 = vmatprep.subr.mxu0 %v427
    %2793 = vmatpush1.msra.mxu0 %v426
    %2794 = vmatprep.subr.mxu0 %v423
    %2795 = vmatpush1.msra.mxu0 %v422
    %2796 = vmatprep.subr.mxu0 %v419
    %2797 = vmatpush1.msra.mxu0 %v418
    %2798 = vmatprep.subr.mxu0 %v415
    %2799 = vmatpush1.msra.mxu0 %v414
    %2800 = vmatprep.subr.mxu0 %v411
    %2801 = vmatpush1.msra.mxu0 %v410
    %2802 = vmatprep.subr.mxu0 %v407
    %2803 = vmatpush1.msra.mxu0 %v406
    %2804 = vmatprep.subr.mxu0 %v403
    %2805 = vmatpush1.msra.mxu0 %v402
    %2806 = vmatprep.subr.mxu0 %v399
    %2807 = vmatpush1.msra.mxu0 %v398
    %2808 = vmatprep.subr.mxu0 %v395
    %2809 = vmatpush1.msra.mxu0 %v394
    %2810 = vmatprep.subr.mxu0 %v519
    %2811 = vmatpush2.msra.mxu0 %v518
    %2812 = vmatprep.subr.mxu0 %v515
    %2813 = vmatpush2.msra.mxu0 %v514
    %2814 = vmatprep.subr.mxu0 %v511
    %2815 = vmatpush2.msra.mxu0 %v510
    %2816 = vmatprep.subr.mxu0 %v507
    %2817 = vmatpush2.msra.mxu0 %v506
    %2818 = vmatprep.subr.mxu0 %v503
    %2819 = vmatpush2.msra.mxu0 %v502
    %2820 = vmatprep.subr.mxu0 %v499
    %2821 = vmatpush2.msra.mxu0 %v498
    %2822 = vmatprep.subr.mxu0 %v495
    %2823 = vmatpush2.msra.mxu0 %v494
    %2824 = vmatprep.subr.mxu0 %v491
    %2825 = vmatpush2.msra.mxu0 %v490
    %2826 = vmatprep.subr.mxu0 %v487
    %2827 = vmatpush2.msra.mxu0 %v486
    %2828 = vmatprep.subr.mxu0 %v483
    %2829 = vmatpush2.msra.mxu0 %v482
    %2830 = vmatprep.subr.mxu0 %v479
    %2831 = vmatpush2.msra.mxu0 %v478
    %2832 = vmatprep.subr.mxu0 %v475
    %2833 = vmatpush2.msra.mxu0 %v474
    %2834 = vmatprep.subr.mxu0 %v471
    %2835 = vmatpush2.msra.mxu0 %v470
    %2836 = vmatprep.subr.mxu0 %v467
    %2837 = vmatpush2.msra.mxu0 %v466
    %2838 = vmatprep.subr.mxu0 %v463
    %2839 = vmatpush2.msra.mxu0 %v462
    %2840 = vmatprep.subr.mxu0 %v459
    %2841 = vmatpush2.msra.mxu0 %v458
    %2842 = vmatprep.mubr.f32.mxu0 %v2775
    %2843 = vmatmul.mubr.f32.gmra.mxu0 %v2774
    %v2844 = vpop.f32.mrf.mxu0
    %v2845 = vadd.f32 %v692, %v2844
    %v2846 = vpop.f32.mrf.mxu0
    %v2847 = vadd.f32 %v696, %v2846
    %2848 = vdwg.mxu0
    %2849 = vmatprep.subr.mxu0 %v457
    %2850 = vmatpush1.msra.mxu0 %v456
    %2851 = vmatprep.subr.mxu0 %v453
    %2852 = vmatpush1.msra.mxu0 %v452
    %2853 = vmatprep.subr.mxu0 %v449
    %2854 = vmatpush1.msra.mxu0 %v448
    %2855 = vmatprep.subr.mxu0 %v445
    %2856 = vmatpush1.msra.mxu0 %v444
    %2857 = vmatprep.subr.mxu0 %v441
    %2858 = vmatpush1.msra.mxu0 %v440
    %2859 = vmatprep.subr.mxu0 %v437
    %2860 = vmatpush1.msra.mxu0 %v436
    %2861 = vmatprep.subr.mxu0 %v433
    %2862 = vmatpush1.msra.mxu0 %v432
    %2863 = vmatprep.subr.mxu0 %v429
    %2864 = vmatpush1.msra.mxu0 %v428
    %2865 = vmatprep.subr.mxu0 %v425
    %2866 = vmatpush1.msra.mxu0 %v424
    %2867 = vmatprep.subr.mxu0 %v421
    %2868 = vmatpush1.msra.mxu0 %v420
    %2869 = vmatprep.subr.mxu0 %v417
    %2870 = vmatpush1.msra.mxu0 %v416
    %2871 = vmatprep.subr.mxu0 %v413
    %2872 = vmatpush1.msra.mxu0 %v412
    %2873 = vmatprep.subr.mxu0 %v409
    %2874 = vmatpush1.msra.mxu0 %v408
    %2875 = vmatprep.subr.mxu0 %v405
    %2876 = vmatpush1.msra.mxu0 %v404
    %2877 = vmatprep.subr.mxu0 %v401
    %2878 = vmatpush1.msra.mxu0 %v400
    %2879 = vmatprep.subr.mxu0 %v397
    %2880 = vmatpush1.msra.mxu0 %v396
    %2881 = vmatprep.subr.mxu0 %v521
    %2882 = vmatpush2.msra.mxu0 %v520
    %2883 = vmatprep.subr.mxu0 %v517
    %2884 = vmatpush2.msra.mxu0 %v516
    %2885 = vmatprep.subr.mxu0 %v513
    %2886 = vmatpush2.msra.mxu0 %v512
    %2887 = vmatprep.subr.mxu0 %v509
    %2888 = vmatpush2.msra.mxu0 %v508
    %2889 = vmatprep.subr.mxu0 %v505
    %2890 = vmatpush2.msra.mxu0 %v504
    %2891 = vmatprep.subr.mxu0 %v501
    %2892 = vmatpush2.msra.mxu0 %v500
    %2893 = vmatprep.subr.mxu0 %v497
    %2894 = vmatpush2.msra.mxu0 %v496
    %2895 = vmatprep.subr.mxu0 %v493
    %2896 = vmatpush2.msra.mxu0 %v492
    %2897 = vmatprep.subr.mxu0 %v489
    %2898 = vmatpush2.msra.mxu0 %v488
    %2899 = vmatprep.subr.mxu0 %v485
    %2900 = vmatpush2.msra.mxu0 %v484
    %2901 = vmatprep.subr.mxu0 %v481
    %2902 = vmatpush2.msra.mxu0 %v480
    %2903 = vmatprep.subr.mxu0 %v477
    %2904 = vmatpush2.msra.mxu0 %v476
    %2905 = vmatprep.subr.mxu0 %v473
    %2906 = vmatpush2.msra.mxu0 %v472
    %2907 = vmatprep.subr.mxu0 %v469
    %2908 = vmatpush2.msra.mxu0 %v468
    %2909 = vmatprep.subr.mxu0 %v465
    %2910 = vmatpush2.msra.mxu0 %v464
    %2911 = vmatprep.subr.mxu0 %v461
    %2912 = vmatpush2.msra.mxu0 %v460
    %2913 = vmatprep.mubr.f32.mxu0 %v2775
    %2914 = vmatmul.mubr.f32.gmra.mxu0 %v2774
    %v2915 = vpop.f32.mrf.mxu0
    %v2916 = vadd.f32 %v700, %v2915
    %v2917 = vpop.f32.mrf.mxu0
    %v2918 = vadd.f32 %v704, %v2917
    %2919 = vdwg.mxu0
    %v2920 = vmul.f32 %v2845, %v126
    %v2921 = vmul.f32 %v2847, %v127
    %v2922 = vmul.f32 %v2916, %v128
    %v2923 = vmul.f32 %v2918, %v129
    %v2924 = vtanh.pop %v2920
    %v2925 = vtanh.pop %v2921
    %v2926 = vtanh.pop %v2922
    %v2927 = vtanh.pop %v2923
    %v2928 = vadd.f32 %v2924, 1.0
    %v2929 = vmul.f32 %v2928, 0.5
    %v2930 = vadd.f32 %v2925, 1.0
    %v2931 = vmul.f32 %v2930, 0.5
    %v2932 = vadd.f32 %v2927, 1.0
    %v2933 = vmul.f32 %v2932, 0.5
    %v2934 = vmul.f32 %v2931, %v2588
    %v2935 = vmul.f32 %v2929, %v2926
    %v2936 = vadd.f32 %v2934, %v2935
    %v2937 = vtanh.pop %v2936
    %v2938 = vmul.f32 %v2933, %v2937
    %2939 = vmatprep.subr.mxu0 %v391
    %2940 = vmatpush1.msra.mxu0 %v390
    %2941 = vmatprep.subr.mxu0 %v387
    %2942 = vmatpush1.msra.mxu0 %v386
    %2943 = vmatprep.subr.mxu0 %v383
    %2944 = vmatpush1.msra.mxu0 %v382
    %2945 = vmatprep.subr.mxu0 %v379
    %2946 = vmatpush1.msra.mxu0 %v378
    %2947 = vmatprep.subr.mxu0 %v375
    %2948 = vmatpush1.msra.mxu0 %v374
    %2949 = vmatprep.subr.mxu0 %v371
    %2950 = vmatpush1.msra.mxu0 %v370
    %2951 = vmatprep.subr.mxu0 %v367
    %2952 = vmatpush1.msra.mxu0 %v366
    %2953 = vmatprep.subr.mxu0 %v363
    %2954 = vmatpush1.msra.mxu0 %v362
    %2955 = vmatprep.subr.mxu0 %v359
    %2956 = vmatpush1.msra.mxu0 %v358
    %2957 = vmatprep.subr.mxu0 %v355
    %2958 = vmatpush1.msra.mxu0 %v354
    %2959 = vmatprep.subr.mxu0 %v351
    %2960 = vmatpush1.msra.mxu0 %v350
    %2961 = vmatprep.subr.mxu0 %v347
    %2962 = vmatpush1.msra.mxu0 %v346
    %2963 = vmatprep.subr.mxu0 %v343
    %2964 = vmatpush1.msra.mxu0 %v342
    %2965 = vmatprep.subr.mxu0 %v339
    %2966 = vmatpush1.msra.mxu0 %v338
    %2967 = vmatprep.subr.mxu0 %v335
    %2968 = vmatpush1.msra.mxu0 %v334
    %2969 = vmatprep.subr.mxu0 %v331
    %2970 = vmatpush1.msra.mxu0 %v330
    %2971 = vmatprep.subr.mxu0 0.0
    %2972 = vmatpush2.msra.mxu0 0.0
    %2973 = vmatprep.subr.mxu0 0.0
    %2974 = vmatpush2.msra.mxu0 0.0
    %2975 = vmatprep.subr.mxu0 0.0
    %2976 = vmatpush2.msra.mxu0 0.0
    %2977 = vmatprep.subr.mxu0 0.0
    %2978 = vmatpush2.msra.mxu0 0.0
    %2979 = vmatprep.subr.mxu0 0.0
    %2980 = vmatpush2.msra.mxu0 0.0
    %2981 = vmatprep.subr.mxu0 0.0
    %2982 = vmatpush2.msra.mxu0 0.0
    %2983 = vmatprep.subr.mxu0 0.0
    %2984 = vmatpush2.msra.mxu0 0.0
    %2985 = vmatprep.subr.mxu0 0.0
    %2986 = vmatpush2.msra.mxu0 0.0
    %2987 = vmatprep.subr.mxu0 0.0
    %2988 = vmatpush2.msra.mxu0 0.0
    %2989 = vmatprep.subr.mxu0 0.0
    %2990 = vmatpush2.msra.mxu0 0.0
    %2991 = vmatprep.subr.mxu0 0.0
    %2992 = vmatpush2.msra.mxu0 0.0
    %2993 = vmatprep.subr.mxu0 0.0
    %2994 = vmatpush2.msra.mxu0 0.0
    %2995 = vmatprep.subr.mxu0 0.0
    %2996 = vmatpush2.msra.mxu0 0.0
    %2997 = vmatprep.subr.mxu0 0.0
    %2998 = vmatpush2.msra.mxu0 0.0
    %2999 = vmatprep.subr.mxu0 0.0
    %3000 = vmatpush2.msra.mxu0 0.0
    %3001 = vmatprep.subr.mxu0 0.0
    %3002 = vmatpush2.msra.mxu0 0.0
    %3003 = vmatprep.mubr.f32.mxu0 0.0
    %3004 = vmatmul.mubr.f32.gmra.mxu0 %v2774
    %v3005 = vpop.f32.mrf.mxu0
    %v3006 = vadd.f32 0.0, %v3005
    %v3007 = vpop.f32.mrf.mxu0
    %v3008 = vadd.f32 0.0, %v3007
    %3009 = vdwg.mxu0
    %3010 = vmatprep.subr.mxu0 %v393
    %3011 = vmatpush1.msra.mxu0 %v392
    %3012 = vmatprep.subr.mxu0 %v389
    %3013 = vmatpush1.msra.mxu0 %v388
    %3014 = vmatprep.subr.mxu0 %v385
    %3015 = vmatpush1.msra.mxu0 %v384
    %3016 = vmatprep.subr.mxu0 %v381
    %3017 = vmatpush1.msra.mxu0 %v380
    %3018 = vmatprep.subr.mxu0 %v377
    %3019 = vmatpush1.msra.mxu0 %v376
    %3020 = vmatprep.subr.mxu0 %v373
    %3021 = vmatpush1.msra.mxu0 %v372
    %3022 = vmatprep.subr.mxu0 %v369
    %3023 = vmatpush1.msra.mxu0 %v368
    %3024 = vmatprep.subr.mxu0 %v365
    %3025 = vmatpush1.msra.mxu0 %v364
    %3026 = vmatprep.subr.mxu0 %v361
    %3027 = vmatpush1.msra.mxu0 %v360
    %3028 = vmatprep.subr.mxu0 %v357
    %3029 = vmatpush1.msra.mxu0 %v356
    %3030 = vmatprep.subr.mxu0 %v353
    %3031 = vmatpush1.msra.mxu0 %v352
    %3032 = vmatprep.subr.mxu0 %v349
    %3033 = vmatpush1.msra.mxu0 %v348
    %3034 = vmatprep.subr.mxu0 %v345
    %3035 = vmatpush1.msra.mxu0 %v344
    %3036 = vmatprep.subr.mxu0 %v341
    %3037 = vmatpush1.msra.mxu0 %v340
    %3038 = vmatprep.subr.mxu0 %v337
    %3039 = vmatpush1.msra.mxu0 %v336
    %3040 = vmatprep.subr.mxu0 %v333
    %3041 = vmatpush1.msra.mxu0 %v332
    %3042 = vmatprep.subr.mxu0 0.0
    %3043 = vmatpush2.msra.mxu0 0.0
    %3044 = vmatprep.subr.mxu0 0.0
    %3045 = vmatpush2.msra.mxu0 0.0
    %3046 = vmatprep.subr.mxu0 0.0
    %3047 = vmatpush2.msra.mxu0 0.0
    %3048 = vmatprep.subr.mxu0 0.0
    %3049 = vmatpush2.msra.mxu0 0.0
    %3050 = vmatprep.subr.mxu0 0.0
    %3051 = vmatpush2.msra.mxu0 0.0
    %3052 = vmatprep.subr.mxu0 0.0
    %3053 = vmatpush2.msra.mxu0 0.0
    %3054 = vmatprep.subr.mxu0 0.0
    %3055 = vmatpush2.msra.mxu0 0.0
    %3056 = vmatprep.subr.mxu0 0.0
    %3057 = vmatpush2.msra.mxu0 0.0
    %3058 = vmatprep.subr.mxu0 0.0
    %3059 = vmatpush2.msra.mxu0 0.0
    %3060 = vmatprep.subr.mxu0 0.0
    %3061 = vmatpush2.msra.mxu0 0.0
    %3062 = vmatprep.subr.mxu0 0.0
    %3063 = vmatpush2.msra.mxu0 0.0
    %3064 = vmatprep.subr.mxu0 0.0
    %3065 = vmatpush2.msra.mxu0 0.0
    %3066 = vmatprep.subr.mxu0 0.0
    %3067 = vmatpush2.msra.mxu0 0.0
    %3068 = vmatprep.subr.mxu0 0.0
    %3069 = vmatpush2.msra.mxu0 0.0
    %3070 = vmatprep.subr.mxu0 0.0
    %3071 = vmatpush2.msra.mxu0 0.0
    %3072 = vmatprep.subr.mxu0 0.0
    %3073 = vmatpush2.msra.mxu0 0.0
    %3074 = vmatprep.mubr.f32.mxu0 0.0
    %3075 = vmatmul.mubr.f32.gmra.mxu0 %v2774
    %v3076 = vpop.f32.mrf.mxu0
    %v3077 = vadd.f32 0.0, %v3076
    %v3078 = vpop.f32.mrf.mxu0
    %v3079 = vadd.f32 0.0, %v3078
    %3080 = vdwg.mxu0
    %v3085 = vrot.slane %v3006, 2
    %v3086 = vrot.slane %v3008, 2
    %v3087 = vrot.slane %v3077, 2
    %v3088 = vrot.slane %v3079, 2
    %v3093 = vadd.f32 %v249, %v3085
    %v3094 = vadd.f32 %v251, %v3086
    %v3095 = vadd.f32 %v326, %v3087
    %v3096 = vadd.f32 %v328, %v3088
    %v3097 = vmul.f32 %v3093, %v126
    %v3098 = vmul.f32 %v3094, %v127
    %v3099 = vmul.f32 %v3095, %v128
    %v3100 = vmul.f32 %v3096, %v129
    %v3101 = vtanh.pop %v3097
    %v3102 = vtanh.pop %v3098
    %v3103 = vtanh.pop %v3099
    %v3104 = vtanh.pop %v3100
    %v3105 = vadd.f32 %v3101, 1.0
    %v3106 = vmul.f32 %v3105, 0.5
    %v3107 = vadd.f32 %v3102, 1.0
    %v3108 = vmul.f32 %v3107, 0.5
    %v3109 = vadd.f32 %v3104, 1.0
    %v3110 = vmul.f32 %v3109, 0.5
    %v3112 = vrot.slane %v2768, 6
    %v3114 = vmul.f32 %v3108, %v3112
    %v3115 = vmul.f32 %v3106, %v3103
    %v3116 = vadd.f32 %v3114, %v3115
    %v3117 = vtanh.pop %v3116
    %v3118 = vmul.f32 %v3110, %v3117
    %v3120 = vrot.slane %v2938, 2
    %v3122 = vrot.slane %v3118, 6
    %v3123 = vrot.slane %v3120, 6
    %3126 = vmatprep.subr.mxu0 %v455
    %3127 = vmatpush1.msra.mxu0 %v454
    %3128 = vmatprep.subr.mxu0 %v451
    %3129 = vmatpush1.msra.mxu0 %v450
    %3130 = vmatprep.subr.mxu0 %v447
    %3131 = vmatpush1.msra.mxu0 %v446
    %3132 = vmatprep.subr.mxu0 %v443
    %3133 = vmatpush1.msra.mxu0 %v442
    %3134 = vmatprep.subr.mxu0 %v439
    %3135 = vmatpush1.msra.mxu0 %v438
    %3136 = vmatprep.subr.mxu0 %v435
    %3137 = vmatpush1.msra.mxu0 %v434
    %3138 = vmatprep.subr.mxu0 %v431
    %3139 = vmatpush1.msra.mxu0 %v430
    %3140 = vmatprep.subr.mxu0 %v427
    %3141 = vmatpush1.msra.mxu0 %v426
    %3142 = vmatprep.subr.mxu0 %v423
    %3143 = vmatpush1.msra.mxu0 %v422
    %3144 = vmatprep.subr.mxu0 %v419
    %3145 = vmatpush1.msra.mxu0 %v418
    %3146 = vmatprep.subr.mxu0 %v415
    %3147 = vmatpush1.msra.mxu0 %v414
    %3148 = vmatprep.subr.mxu0 %v411
    %3149 = vmatpush1.msra.mxu0 %v410
    %3150 = vmatprep.subr.mxu0 %v407
    %3151 = vmatpush1.msra.mxu0 %v406
    %3152 = vmatprep.subr.mxu0 %v403
    %3153 = vmatpush1.msra.mxu0 %v402
    %3154 = vmatprep.subr.mxu0 %v399
    %3155 = vmatpush1.msra.mxu0 %v398
    %3156 = vmatprep.subr.mxu0 %v395
    %3157 = vmatpush1.msra.mxu0 %v394
    %3158 = vmatprep.subr.mxu0 %v519
    %3159 = vmatpush2.msra.mxu0 %v518
    %3160 = vmatprep.subr.mxu0 %v515
    %3161 = vmatpush2.msra.mxu0 %v514
    %3162 = vmatprep.subr.mxu0 %v511
    %3163 = vmatpush2.msra.mxu0 %v510
    %3164 = vmatprep.subr.mxu0 %v507
    %3165 = vmatpush2.msra.mxu0 %v506
    %3166 = vmatprep.subr.mxu0 %v503
    %3167 = vmatpush2.msra.mxu0 %v502
    %3168 = vmatprep.subr.mxu0 %v499
    %3169 = vmatpush2.msra.mxu0 %v498
    %3170 = vmatprep.subr.mxu0 %v495
    %3171 = vmatpush2.msra.mxu0 %v494
    %3172 = vmatprep.subr.mxu0 %v491
    %3173 = vmatpush2.msra.mxu0 %v490
    %3174 = vmatprep.subr.mxu0 %v487
    %3175 = vmatpush2.msra.mxu0 %v486
    %3176 = vmatprep.subr.mxu0 %v483
    %3177 = vmatpush2.msra.mxu0 %v482
    %3178 = vmatprep.subr.mxu0 %v479
    %3179 = vmatpush2.msra.mxu0 %v478
    %3180 = vmatprep.subr.mxu0 %v475
    %3181 = vmatpush2.msra.mxu0 %v474
    %3182 = vmatprep.subr.mxu0 %v471
    %3183 = vmatpush2.msra.mxu0 %v470
    %3184 = vmatprep.subr.mxu0 %v467
    %3185 = vmatpush2.msra.mxu0 %v466
    %3186 = vmatprep.subr.mxu0 %v463
    %3187 = vmatpush2.msra.mxu0 %v462
    %3188 = vmatprep.subr.mxu0 %v459
    %3189 = vmatpush2.msra.mxu0 %v458
    %3190 = vmatprep.mubr.f32.mxu0 %v3123
    %3191 = vmatmul.mubr.f32.gmra.mxu0 %v3122
    %v3192 = vpop.f32.mrf.mxu0
    %v3193 = vadd.f32 %v692, %v3192
    %v3194 = vpop.f32.mrf.mxu0
    %v3195 = vadd.f32 %v696, %v3194
    %3196 = vdwg.mxu0
    %3197 = vmatprep.subr.mxu0 %v457
    %3198 = vmatpush1.msra.mxu0 %v456
    %3199 = vmatprep.subr.mxu0 %v453
    %3200 = vmatpush1.msra.mxu0 %v452
    %3201 = vmatprep.subr.mxu0 %v449
    %3202 = vmatpush1.msra.mxu0 %v448
    %3203 = vmatprep.subr.mxu0 %v445
    %3204 = vmatpush1.msra.mxu0 %v444
    %3205 = vmatprep.subr.mxu0 %v441
    %3206 = vmatpush1.msra.mxu0 %v440
    %3207 = vmatprep.subr.mxu0 %v437
    %3208 = vmatpush1.msra.mxu0 %v436
    %3209 = vmatprep.subr.mxu0 %v433
    %3210 = vmatpush1.msra.mxu0 %v432
    %3211 = vmatprep.subr.mxu0 %v429
    %3212 = vmatpush1.msra.mxu0 %v428
    %3213 = vmatprep.subr.mxu0 %v425
    %3214 = vmatpush1.msra.mxu0 %v424
    %3215 = vmatprep.subr.mxu0 %v421
    %3216 = vmatpush1.msra.mxu0 %v420
    %3217 = vmatprep.subr.mxu0 %v417
    %3218 = vmatpush1.msra.mxu0 %v416
    %3219 = vmatprep.subr.mxu0 %v413
    %3220 = vmatpush1.msra.mxu0 %v412
    %3221 = vmatprep.subr.mxu0 %v409
    %3222 = vmatpush1.msra.mxu0 %v408
    %3223 = vmatprep.subr.mxu0 %v405
    %3224 = vmatpush1.msra.mxu0 %v404
    %3225 = vmatprep.subr.mxu0 %v401
    %3226 = vmatpush1.msra.mxu0 %v400
    %3227 = vmatprep.subr.mxu0 %v397
    %3228 = vmatpush1.msra.mxu0 %v396
    %3229 = vmatprep.subr.mxu0 %v521
    %3230 = vmatpush2.msra.mxu0 %v520
    %3231 = vmatprep.subr.mxu0 %v517
    %3232 = vmatpush2.msra.mxu0 %v516
    %3233 = vmatprep.subr.mxu0 %v513
    %3234 = vmatpush2.msra.mxu0 %v512
    %3235 = vmatprep.subr.mxu0 %v509
    %3236 = vmatpush2.msra.mxu0 %v508
    %3237 = vmatprep.subr.mxu0 %v505
    %3238 = vmatpush2.msra.mxu0 %v504
    %3239 = vmatprep.subr.mxu0 %v501
    %3240 = vmatpush2.msra.mxu0 %v500
    %3241 = vmatprep.subr.mxu0 %v497
    %3242 = vmatpush2.msra.mxu0 %v496
    %3243 = vmatprep.subr.mxu0 %v493
    %3244 = vmatpush2.msra.mxu0 %v492
    %3245 = vmatprep.subr.mxu0 %v489
    %3246 = vmatpush2.msra.mxu0 %v488
    %3247 = vmatprep.subr.mxu0 %v485
    %3248 = vmatpush2.msra.mxu0 %v484
    %3249 = vmatprep.subr.mxu0 %v481
    %3250 = vmatpush2.msra.mxu0 %v480
    %3251 = vmatprep.subr.mxu0 %v477
    %3252 = vmatpush2.msra.mxu0 %v476
    %3253 = vmatprep.subr.mxu0 %v473
    %3254 = vmatpush2.msra.mxu0 %v472
    %3255 = vmatprep.subr.mxu0 %v469
    %3256 = vmatpush2.msra.mxu0 %v468
    %3257 = vmatprep.subr.mxu0 %v465
    %3258 = vmatpush2.msra.mxu0 %v464
    %3259 = vmatprep.subr.mxu0 %v461
    %3260 = vmatpush2.msra.mxu0 %v460
    %3261 = vmatprep.mubr.f32.mxu0 %v3123
    %3262 = vmatmul.mubr.f32.gmra.mxu0 %v3122
    %v3263 = vpop.f32.mrf.mxu0
    %v3264 = vadd.f32 %v700, %v3263
    %v3265 = vpop.f32.mrf.mxu0
    %v3266 = vadd.f32 %v704, %v3265
    %3267 = vdwg.mxu0
    %v3268 = vmul.f32 %v3193, %v126
    %v3269 = vmul.f32 %v3195, %v127
    %v3270 = vmul.f32 %v3264, %v128
    %v3271 = vmul.f32 %v3266, %v129
    %v3272 = vtanh.pop %v3268
    %v3273 = vtanh.pop %v3269
    %v3274 = vtanh.pop %v3270
    %v3275 = vtanh.pop %v3271
    %v3276 = vadd.f32 %v3272, 1.0
    %v3277 = vmul.f32 %v3276, 0.5
    %v3278 = vadd.f32 %v3273, 1.0
    %v3279 = vmul.f32 %v3278, 0.5
    %v3280 = vadd.f32 %v3275, 1.0
    %v3281 = vmul.f32 %v3280, 0.5
    %v3282 = vmul.f32 %v3279, %v2936
    %v3283 = vmul.f32 %v3277, %v3274
    %v3284 = vadd.f32 %v3282, %v3283
    %v3285 = vtanh.pop %v3284
    %v3286 = vmul.f32 %v3281, %v3285
    %v3287 = vrot.slane %v1217, 6
    %v3289 = vrot.slane %v1565, 4
    %v3292 = vrot.slane %v1913, 2
    %v3294 = vrot.slane %v2590, 6
    %v3296 = vrot.slane %v2938, 4
    %v3299 = vrot.slane %v3286, 2
    %vm3301 = vcmask 1041408
    %v3302 = vsel %vm3301, %v869, %v3287
    %vm3303 = vcmask 1043456
    %v3304 = vsel %vm3303, %v3302, %v3289
    %vm3305 = vcmask 1045504
    %v3306 = vsel %vm3305, %v3304, %v3292
    %v3307 = vsel %vm3301, %v2242, %v3294
    %v3308 = vsel %vm3303, %v3307, %v3296
    %v3309 = vsel %vm3305, %v3308, %v3299
    %v3310 = vld [vmem:[#allocation7] sm:$0xff]
    %v3311 = vld [vmem:[#allocation7 + $0x8] sm:$0xff]
    %v3312 = vld [vmem:[#allocation7 + $0x10] sm:$0xff]
    %v3313 = vld [vmem:[#allocation7 + $0x18] sm:$0xff]
    %v3314 = vld [vmem:[#allocation7 + $0x20] sm:$0xff]
    %v3315 = vld [vmem:[#allocation7 + $0x28] sm:$0xff]
    %v3316 = vld [vmem:[#allocation7 + $0x30] sm:$0xff]
    %v3317 = vld [vmem:[#allocation7 + $0x38] sm:$0xff]
    %v3318 = vld [vmem:[#allocation7 + $0x40] sm:$0xff]
    %v3319 = vld [vmem:[#allocation7 + $0x48] sm:$0xff]
    %v3320 = vld [vmem:[#allocation7 + $0x50] sm:$0xff]
    %v3321 = vld [vmem:[#allocation7 + $0x58] sm:$0xff]
    %v3322 = vld [vmem:[#allocation7 + $0x60] sm:$0xff]
    %v3323 = vld [vmem:[#allocation7 + $0x68] sm:$0xff]
    %v3324 = vld [vmem:[#allocation7 + $0x70] sm:$0xff]
    %v3325 = vld [vmem:[#allocation7 + $0x78] sm:$0xff]
    %v3326 = vld [vmem:[#allocation7 + $0x80] sm:$0xff]
    %v3327 = vld [vmem:[#allocation7 + $0x88] sm:$0xff]
    %v3328 = vld [vmem:[#allocation7 + $0x90] sm:$0xff]
    %v3329 = vld [vmem:[#allocation7 + $0x98] sm:$0xff]
    %v3330 = vld [vmem:[#allocation7 + $0xa0] sm:$0xff]
    %v3331 = vld [vmem:[#allocation7 + $0xa8] sm:$0xff]
    %v3332 = vld [vmem:[#allocation7 + $0xb0] sm:$0xff]
    %v3333 = vld [vmem:[#allocation7 + $0xb8] sm:$0xff]
    %v3334 = vld [vmem:[#allocation7 + $0xc0] sm:$0xff]
    %v3335 = vld [vmem:[#allocation7 + $0xc8] sm:$0xff]
    %v3336 = vld [vmem:[#allocation7 + $0xd0] sm:$0xff]
    %v3337 = vld [vmem:[#allocation7 + $0xd8] sm:$0xff]
    %v3338 = vld [vmem:[#allocation7 + $0xe0] sm:$0xff]
    %v3339 = vld [vmem:[#allocation7 + $0xe8] sm:$0xff]
    %v3340 = vld [vmem:[#allocation7 + $0xf0] sm:$0xff]
    %v3341 = vld [vmem:[#allocation7 + $0xf8] sm:$0xff]
    %v3342 = vld [vmem:[#allocation7 + $0x100] sm:$0xff]
    %v3343 = vld [vmem:[#allocation7 + $0x108] sm:$0xff]
    %v3344 = vld [vmem:[#allocation7 + $0x110] sm:$0xff]
    %v3345 = vld [vmem:[#allocation7 + $0x118] sm:$0xff]
    %v3346 = vld [vmem:[#allocation7 + $0x120] sm:$0xff]
    %v3347 = vld [vmem:[#allocation7 + $0x128] sm:$0xff]
    %v3348 = vld [vmem:[#allocation7 + $0x130] sm:$0xff]
    %v3349 = vld [vmem:[#allocation7 + $0x138] sm:$0xff]
    %v3350 = vld [vmem:[#allocation7 + $0x140] sm:$0xff]
    %v3351 = vld [vmem:[#allocation7 + $0x148] sm:$0xff]
    %v3352 = vld [vmem:[#allocation7 + $0x150] sm:$0xff]
    %v3353 = vld [vmem:[#allocation7 + $0x158] sm:$0xff]
    %v3354 = vld [vmem:[#allocation7 + $0x160] sm:$0xff]
    %v3355 = vld [vmem:[#allocation7 + $0x168] sm:$0xff]
    %v3356 = vld [vmem:[#allocation7 + $0x170] sm:$0xff]
    %v3357 = vld [vmem:[#allocation7 + $0x178] sm:$0xff]
    %v3358 = vld [vmem:[#allocation7 + $0x180] sm:$0xff]
    %v3359 = vld [vmem:[#allocation7 + $0x188] sm:$0xff]
    %v3360 = vld [vmem:[#allocation7 + $0x190] sm:$0xff]
    %v3361 = vld [vmem:[#allocation7 + $0x198] sm:$0xff]
    %v3362 = vld [vmem:[#allocation7 + $0x1a0] sm:$0xff]
    %v3363 = vld [vmem:[#allocation7 + $0x1a8] sm:$0xff]
    %v3364 = vld [vmem:[#allocation7 + $0x1b0] sm:$0xff]
    %v3365 = vld [vmem:[#allocation7 + $0x1b8] sm:$0xff]
    %v3366 = vld [vmem:[#allocation7 + $0x1c0] sm:$0xff]
    %v3367 = vld [vmem:[#allocation7 + $0x1c8] sm:$0xff]
    %v3368 = vld [vmem:[#allocation7 + $0x1d0] sm:$0xff]
    %v3369 = vld [vmem:[#allocation7 + $0x1d8] sm:$0xff]
    %v3370 = vld [vmem:[#allocation7 + $0x1e0] sm:$0xff]
    %v3371 = vld [vmem:[#allocation7 + $0x1e8] sm:$0xff]
    %v3372 = vld [vmem:[#allocation7 + $0x1f0] sm:$0xff]
    %v3373 = vld [vmem:[#allocation7 + $0x1f8] sm:$0xff]
    %v3374 = vld [vmem:[%s7] sm:$0xf]
    %v3376 = vlaneseq
    %v3377 = vshrl.u32 %v3376, 7
    %v3378 = vsub.s32 0, %v3377
    %v3379 = vrot.slane %v3374, %v3378
    %v3380 = vlaneseq
    %v3381 = vshrl.u32 %v3380, 7
    %v3382 = vsub.s32 1, %v3381
    %v3383 = vrot.slane %v3374, %v3382
    %v3384 = vlaneseq
    %v3385 = vshrl.u32 %v3384, 7
    %v3386 = vsub.s32 2, %v3385
    %v3387 = vrot.slane %v3374, %v3386
    %v3388 = vlaneseq
    %v3389 = vshrl.u32 %v3388, 7
    %v3390 = vsub.s32 3, %v3389
    %v3391 = vrot.slane %v3374, %v3390
    %3396 = vmatprep.subr.mxu0 %v3371
    %3397 = vmatpush1.msra.mxu0 %v3370
    %3398 = vmatprep.subr.mxu0 %v3367
    %3399 = vmatpush1.msra.mxu0 %v3366
    %3400 = vmatprep.subr.mxu0 %v3363
    %3401 = vmatpush1.msra.mxu0 %v3362
    %3402 = vmatprep.subr.mxu0 %v3359
    %3403 = vmatpush1.msra.mxu0 %v3358
    %3404 = vmatprep.subr.mxu0 %v3355
    %3405 = vmatpush1.msra.mxu0 %v3354
    %3406 = vmatprep.subr.mxu0 %v3351
    %3407 = vmatpush1.msra.mxu0 %v3350
    %3408 = vmatprep.subr.mxu0 %v3347
    %3409 = vmatpush1.msra.mxu0 %v3346
    %3410 = vmatprep.subr.mxu0 %v3343
    %3411 = vmatpush1.msra.mxu0 %v3342
    %3412 = vmatprep.subr.mxu0 %v3339
    %3413 = vmatpush1.msra.mxu0 %v3338
    %3414 = vmatprep.subr.mxu0 %v3335
    %3415 = vmatpush1.msra.mxu0 %v3334
    %3416 = vmatprep.subr.mxu0 %v3331
    %3417 = vmatpush1.msra.mxu0 %v3330
    %3418 = vmatprep.subr.mxu0 %v3327
    %3419 = vmatpush1.msra.mxu0 %v3326
    %3420 = vmatprep.subr.mxu0 %v3323
    %3421 = vmatpush1.msra.mxu0 %v3322
    %3422 = vmatprep.subr.mxu0 %v3319
    %3423 = vmatpush1.msra.mxu0 %v3318
    %3424 = vmatprep.subr.mxu0 %v3315
    %3425 = vmatpush1.msra.mxu0 %v3314
    %3426 = vmatprep.subr.mxu0 %v3311
    %3427 = vmatpush1.msra.mxu0 %v3310
    %3428 = vmatprep.subr.mxu0 0.0
    %3429 = vmatpush2.msra.mxu0 0.0
    %3430 = vmatprep.subr.mxu0 0.0
    %3431 = vmatpush2.msra.mxu0 0.0
    %3432 = vmatprep.subr.mxu0 0.0
    %3433 = vmatpush2.msra.mxu0 0.0
    %3434 = vmatprep.subr.mxu0 0.0
    %3435 = vmatpush2.msra.mxu0 0.0
    %3436 = vmatprep.subr.mxu0 0.0
    %3437 = vmatpush2.msra.mxu0 0.0
    %3438 = vmatprep.subr.mxu0 0.0
    %3439 = vmatpush2.msra.mxu0 0.0
    %3440 = vmatprep.subr.mxu0 0.0
    %3441 = vmatpush2.msra.mxu0 0.0
    %3442 = vmatprep.subr.mxu0 0.0
    %3443 = vmatpush2.msra.mxu0 0.0
    %3444 = vmatprep.subr.mxu0 0.0
    %3445 = vmatpush2.msra.mxu0 0.0
    %3446 = vmatprep.subr.mxu0 0.0
    %3447 = vmatpush2.msra.mxu0 0.0
    %3448 = vmatprep.subr.mxu0 0.0
    %3449 = vmatpush2.msra.mxu0 0.0
    %3450 = vmatprep.subr.mxu0 0.0
    %3451 = vmatpush2.msra.mxu0 0.0
    %3452 = vmatprep.subr.mxu0 0.0
    %3453 = vmatpush2.msra.mxu0 0.0
    %3454 = vmatprep.subr.mxu0 0.0
    %3455 = vmatpush2.msra.mxu0 0.0
    %3456 = vmatprep.subr.mxu0 0.0
    %3457 = vmatpush2.msra.mxu0 0.0
    %3458 = vmatprep.subr.mxu0 0.0
    %3459 = vmatpush2.msra.mxu0 0.0
    %3460 = vmatprep.mubr.f32.mxu0 0.0
    %3461 = vmatmul.mubr.f32.gmra.mxu0 %v3306
    %v3462 = vpop.f32.mrf.mxu0
    %v3463 = vadd.f32 %v3379, %v3462
    %v3464 = vpop.f32.mrf.mxu0
    %v3465 = vadd.f32 %v3383, %v3464
    %3466 = vmatprep.mubr.f32.mxu0 0.0
    %3467 = vmatmul.mubr.f32.gmra.mxu0 %v3309
    %v3468 = vpop.f32.mrf.mxu0
    %v3469 = vadd.f32 %v3379, %v3468
    %v3470 = vpop.f32.mrf.mxu0
    %v3471 = vadd.f32 %v3383, %v3470
    %3472 = vdwg.mxu0
    %3473 = vmatprep.subr.mxu0 %v3373
    %3474 = vmatpush1.msra.mxu0 %v3372
    %3475 = vmatprep.subr.mxu0 %v3369
    %3476 = vmatpush1.msra.mxu0 %v3368
    %3477 = vmatprep.subr.mxu0 %v3365
    %3478 = vmatpush1.msra.mxu0 %v3364
    %3479 = vmatprep.subr.mxu0 %v3361
    %3480 = vmatpush1.msra.mxu0 %v3360
    %3481 = vmatprep.subr.mxu0 %v3357
    %3482 = vmatpush1.msra.mxu0 %v3356
    %3483 = vmatprep.subr.mxu0 %v3353
    %3484 = vmatpush1.msra.mxu0 %v3352
    %3485 = vmatprep.subr.mxu0 %v3349
    %3486 = vmatpush1.msra.mxu0 %v3348
    %3487 = vmatprep.subr.mxu0 %v3345
    %3488 = vmatpush1.msra.mxu0 %v3344
    %3489 = vmatprep.subr.mxu0 %v3341
    %3490 = vmatpush1.msra.mxu0 %v3340
    %3491 = vmatprep.subr.mxu0 %v3337
    %3492 = vmatpush1.msra.mxu0 %v3336
    %3493 = vmatprep.subr.mxu0 %v3333
    %3494 = vmatpush1.msra.mxu0 %v3332
    %3495 = vmatprep.subr.mxu0 %v3329
    %3496 = vmatpush1.msra.mxu0 %v3328
    %3497 = vmatprep.subr.mxu0 %v3325
    %3498 = vmatpush1.msra.mxu0 %v3324
    %3499 = vmatprep.subr.mxu0 %v3321
    %3500 = vmatpush1.msra.mxu0 %v3320
    %3501 = vmatprep.subr.mxu0 %v3317
    %3502 = vmatpush1.msra.mxu0 %v3316
    %3503 = vmatprep.subr.mxu0 %v3313
    %3504 = vmatpush1.msra.mxu0 %v3312
    %3505 = vmatprep.subr.mxu0 0.0
    %3506 = vmatpush2.msra.mxu0 0.0
    %3507 = vmatprep.subr.mxu0 0.0
    %3508 = vmatpush2.msra.mxu0 0.0
    %3509 = vmatprep.subr.mxu0 0.0
    %3510 = vmatpush2.msra.mxu0 0.0
    %3511 = vmatprep.subr.mxu0 0.0
    %3512 = vmatpush2.msra.mxu0 0.0
    %3513 = vmatprep.subr.mxu0 0.0
    %3514 = vmatpush2.msra.mxu0 0.0
    %3515 = vmatprep.subr.mxu0 0.0
    %3516 = vmatpush2.msra.mxu0 0.0
    %3517 = vmatprep.subr.mxu0 0.0
    %3518 = vmatpush2.msra.mxu0 0.0
    %3519 = vmatprep.subr.mxu0 0.0
    %3520 = vmatpush2.msra.mxu0 0.0
    %3521 = vmatprep.subr.mxu0 0.0
    %3522 = vmatpush2.msra.mxu0 0.0
    %3523 = vmatprep.subr.mxu0 0.0
    %3524 = vmatpush2.msra.mxu0 0.0
    %3525 = vmatprep.subr.mxu0 0.0
    %3526 = vmatpush2.msra.mxu0 0.0
    %3527 = vmatprep.subr.mxu0 0.0
    %3528 = vmatpush2.msra.mxu0 0.0
    %3529 = vmatprep.subr.mxu0 0.0
    %3530 = vmatpush2.msra.mxu0 0.0
    %3531 = vmatprep.subr.mxu0 0.0
    %3532 = vmatpush2.msra.mxu0 0.0
    %3533 = vmatprep.subr.mxu0 0.0
    %3534 = vmatpush2.msra.mxu0 0.0
    %3535 = vmatprep.subr.mxu0 0.0
    %3536 = vmatpush2.msra.mxu0 0.0
    %3537 = vmatprep.mubr.f32.mxu0 0.0
    %3538 = vmatmul.mubr.f32.gmra.mxu0 %v3306
    %v3539 = vpop.f32.mrf.mxu0
    %v3540 = vadd.f32 %v3387, %v3539
    %v3541 = vpop.f32.mrf.mxu0
    %v3542 = vadd.f32 %v3391, %v3541
    %3543 = vmatprep.mubr.f32.mxu0 0.0
    %3544 = vmatmul.mubr.f32.gmra.mxu0 %v3309
    %v3545 = vpop.f32.mrf.mxu0
    %v3546 = vadd.f32 %v3387, %v3545
    %v3547 = vpop.f32.mrf.mxu0
    %v3548 = vadd.f32 %v3391, %v3547
    %3549 = vdwg.mxu0
    %v3550 = vmax.f32 %v3463, 0.0
    %v3551 = vmax.f32 %v3465, 0.0
    %v3552 = vmax.f32 %v3540, 0.0
    %v3553 = vmax.f32 %v3542, 0.0
    %v3554 = vmax.f32 %v3469, 0.0
    %v3555 = vmax.f32 %v3471, 0.0
    %v3556 = vmax.f32 %v3546, 0.0
    %v3557 = vmax.f32 %v3548, 0.0
    %v3558 = vld [vmem:[#allocation8] sm:$0xff]
    %v3559 = vld [vmem:[#allocation8 + $0x8] sm:$0xff]
    %v3560 = vld [vmem:[#allocation8 + $0x10] sm:$0xff]
    %v3561 = vld [vmem:[#allocation8 + $0x18] sm:$0xff]
    %v3562 = vld [vmem:[#allocation8 + $0x20] sm:$0xff]
    %v3563 = vld [vmem:[#allocation8 + $0x28] sm:$0xff]
    %v3564 = vld [vmem:[#allocation8 + $0x30] sm:$0xff]
    %v3565 = vld [vmem:[#allocation8 + $0x38] sm:$0xff]
    %v3566 = vld [vmem:[#allocation8 + $0x40] sm:$0xff]
    %v3567 = vld [vmem:[#allocation8 + $0x48] sm:$0xff]
    %v3568 = vld [vmem:[#allocation8 + $0x50] sm:$0xff]
    %v3569 = vld [vmem:[#allocation8 + $0x58] sm:$0xff]
    %v3570 = vld [vmem:[#allocation8 + $0x60] sm:$0xff]
    %v3571 = vld [vmem:[#allocation8 + $0x68] sm:$0xff]
    %v3572 = vld [vmem:[#allocation8 + $0x70] sm:$0xff]
    %v3573 = vld [vmem:[#allocation8 + $0x78] sm:$0xff]
    %v3574 = vld [vmem:[#allocation8 + $0x80] sm:$0xff]
    %v3575 = vld [vmem:[#allocation8 + $0x88] sm:$0xff]
    %v3576 = vld [vmem:[#allocation8 + $0x90] sm:$0xff]
    %v3577 = vld [vmem:[#allocation8 + $0x98] sm:$0xff]
    %v3578 = vld [vmem:[#allocation8 + $0xa0] sm:$0xff]
    %v3579 = vld [vmem:[#allocation8 + $0xa8] sm:$0xff]
    %v3580 = vld [vmem:[#allocation8 + $0xb0] sm:$0xff]
    %v3581 = vld [vmem:[#allocation8 + $0xb8] sm:$0xff]
    %v3582 = vld [vmem:[#allocation8 + $0xc0] sm:$0xff]
    %v3583 = vld [vmem:[#allocation8 + $0xc8] sm:$0xff]
    %v3584 = vld [vmem:[#allocation8 + $0xd0] sm:$0xff]
    %v3585 = vld [vmem:[#allocation8 + $0xd8] sm:$0xff]
    %v3586 = vld [vmem:[#allocation8 + $0xe0] sm:$0xff]
    %v3587 = vld [vmem:[#allocation8 + $0xe8] sm:$0xff]
    %v3588 = vld [vmem:[#allocation8 + $0xf0] sm:$0xff]
    %v3589 = vld [vmem:[#allocation8 + $0xf8] sm:$0xff]
    %v3590 = vld [vmem:[#allocation8 + $0x100] sm:$0xff]
    %v3591 = vld [vmem:[#allocation8 + $0x108] sm:$0xff]
    %v3592 = vld [vmem:[#allocation8 + $0x110] sm:$0xff]
    %v3593 = vld [vmem:[#allocation8 + $0x118] sm:$0xff]
    %v3594 = vld [vmem:[#allocation8 + $0x120] sm:$0xff]
    %v3595 = vld [vmem:[#allocation8 + $0x128] sm:$0xff]
    %v3596 = vld [vmem:[#allocation8 + $0x130] sm:$0xff]
    %v3597 = vld [vmem:[#allocation8 + $0x138] sm:$0xff]
    %v3598 = vld [vmem:[#allocation8 + $0x140] sm:$0xff]
    %v3599 = vld [vmem:[#allocation8 + $0x148] sm:$0xff]
    %v3600 = vld [vmem:[#allocation8 + $0x150] sm:$0xff]
    %v3601 = vld [vmem:[#allocation8 + $0x158] sm:$0xff]
    %v3602 = vld [vmem:[#allocation8 + $0x160] sm:$0xff]
    %v3603 = vld [vmem:[#allocation8 + $0x168] sm:$0xff]
    %v3604 = vld [vmem:[#allocation8 + $0x170] sm:$0xff]
    %v3605 = vld [vmem:[#allocation8 + $0x178] sm:$0xff]
    %v3606 = vld [vmem:[#allocation8 + $0x180] sm:$0xff]
    %v3607 = vld [vmem:[#allocation8 + $0x188] sm:$0xff]
    %v3608 = vld [vmem:[#allocation8 + $0x190] sm:$0xff]
    %v3609 = vld [vmem:[#allocation8 + $0x198] sm:$0xff]
    %v3610 = vld [vmem:[#allocation8 + $0x1a0] sm:$0xff]
    %v3611 = vld [vmem:[#allocation8 + $0x1a8] sm:$0xff]
    %v3612 = vld [vmem:[#allocation8 + $0x1b0] sm:$0xff]
    %v3613 = vld [vmem:[#allocation8 + $0x1b8] sm:$0xff]
    %v3614 = vld [vmem:[#allocation8 + $0x1c0] sm:$0xff]
    %v3615 = vld [vmem:[#allocation8 + $0x1c8] sm:$0xff]
    %v3616 = vld [vmem:[#allocation8 + $0x1d0] sm:$0xff]
    %v3617 = vld [vmem:[#allocation8 + $0x1d8] sm:$0xff]
    %v3618 = vld [vmem:[#allocation8 + $0x1e0] sm:$0xff]
    %v3619 = vld [vmem:[#allocation8 + $0x1e8] sm:$0xff]
    %v3620 = vld [vmem:[#allocation8 + $0x1f0] sm:$0xff]
    %v3621 = vld [vmem:[#allocation8 + $0x1f8] sm:$0xff]
    %v3622 = vld [vmem:[%s9] sm:$0x1]
    %v3624 = vlaneseq
    %v3625 = vshrl.u32 %v3624, 7
    %v3626 = vsub.s32 0, %v3625
    %v3627 = vrot.slane %v3622, %v3626
    %3629 = vmatprep.subr.mxu0 0.0
    %3630 = vmatpush1.msra.mxu0 %v3573
    %3631 = vmatprep.subr.mxu0 0.0
    %3632 = vmatpush1.msra.mxu0 %v3572
    %3633 = vmatprep.subr.mxu0 0.0
    %3634 = vmatpush1.msra.mxu0 %v3571
    %3635 = vmatprep.subr.mxu0 0.0
    %3636 = vmatpush1.msra.mxu0 %v3570
    %3637 = vmatprep.subr.mxu0 0.0
    %3638 = vmatpush1.msra.mxu0 %v3569
    %3639 = vmatprep.subr.mxu0 0.0
    %3640 = vmatpush1.msra.mxu0 %v3568
    %3641 = vmatprep.subr.mxu0 0.0
    %3642 = vmatpush1.msra.mxu0 %v3567
    %3643 = vmatprep.subr.mxu0 0.0
    %3644 = vmatpush1.msra.mxu0 %v3566
    %3645 = vmatprep.subr.mxu0 0.0
    %3646 = vmatpush1.msra.mxu0 %v3565
    %3647 = vmatprep.subr.mxu0 0.0
    %3648 = vmatpush1.msra.mxu0 %v3564
    %3649 = vmatprep.subr.mxu0 0.0
    %3650 = vmatpush1.msra.mxu0 %v3563
    %3651 = vmatprep.subr.mxu0 0.0
    %3652 = vmatpush1.msra.mxu0 %v3562
    %3653 = vmatprep.subr.mxu0 0.0
    %3654 = vmatpush1.msra.mxu0 %v3561
    %3655 = vmatprep.subr.mxu0 0.0
    %3656 = vmatpush1.msra.mxu0 %v3560
    %3657 = vmatprep.subr.mxu0 0.0
    %3658 = vmatpush1.msra.mxu0 %v3559
    %3659 = vmatprep.subr.mxu0 0.0
    %3660 = vmatpush1.msra.mxu0 %v3558
    %3661 = vmatprep.subr.mxu0 0.0
    %3662 = vmatpush2.msra.mxu0 %v3589
    %3663 = vmatprep.subr.mxu0 0.0
    %3664 = vmatpush2.msra.mxu0 %v3588
    %3665 = vmatprep.subr.mxu0 0.0
    %3666 = vmatpush2.msra.mxu0 %v3587
    %3667 = vmatprep.subr.mxu0 0.0
    %3668 = vmatpush2.msra.mxu0 %v3586
    %3669 = vmatprep.subr.mxu0 0.0
    %3670 = vmatpush2.msra.mxu0 %v3585
    %3671 = vmatprep.subr.mxu0 0.0
    %3672 = vmatpush2.msra.mxu0 %v3584
    %3673 = vmatprep.subr.mxu0 0.0
    %3674 = vmatpush2.msra.mxu0 %v3583
    %3675 = vmatprep.subr.mxu0 0.0
    %3676 = vmatpush2.msra.mxu0 %v3582
    %3677 = vmatprep.subr.mxu0 0.0
    %3678 = vmatpush2.msra.mxu0 %v3581
    %3679 = vmatprep.subr.mxu0 0.0
    %3680 = vmatpush2.msra.mxu0 %v3580
    %3681 = vmatprep.subr.mxu0 0.0
    %3682 = vmatpush2.msra.mxu0 %v3579
    %3683 = vmatprep.subr.mxu0 0.0
    %3684 = vmatpush2.msra.mxu0 %v3578
    %3685 = vmatprep.subr.mxu0 0.0
    %3686 = vmatpush2.msra.mxu0 %v3577
    %3687 = vmatprep.subr.mxu0 0.0
    %3688 = vmatpush2.msra.mxu0 %v3576
    %3689 = vmatprep.subr.mxu0 0.0
    %3690 = vmatpush2.msra.mxu0 %v3575
    %3691 = vmatprep.subr.mxu0 0.0
    %3692 = vmatpush2.msra.mxu0 %v3574
    %3693 = vmatprep.mubr.f32.mxu0 %v3551
    %3694 = vmatmul.mubr.f32.gmra.mxu0 %v3550
    %v3695 = vpop.f32.mrf.mxu0
    %v3696 = vadd.f32 %v3627, %v3695
    %v3697 = vpop.f32.mrf.mxu0
    %3698 = vmatprep.mubr.f32.mxu0 %v3555
    %3699 = vmatmul.mubr.f32.gmra.mxu0 %v3554
    %v3700 = vpop.f32.mrf.mxu0
    %v3701 = vadd.f32 %v3627, %v3700
    %v3702 = vpop.f32.mrf.mxu0
    %3703 = vdwg.mxu0
    %3704 = vmatprep.subr.mxu0 0.0
    %3705 = vmatpush1.msra.mxu0 %v3605
    %3706 = vmatprep.subr.mxu0 0.0
    %3707 = vmatpush1.msra.mxu0 %v3604
    %3708 = vmatprep.subr.mxu0 0.0
    %3709 = vmatpush1.msra.mxu0 %v3603
    %3710 = vmatprep.subr.mxu0 0.0
    %3711 = vmatpush1.msra.mxu0 %v3602
    %3712 = vmatprep.subr.mxu0 0.0
    %3713 = vmatpush1.msra.mxu0 %v3601
    %3714 = vmatprep.subr.mxu0 0.0
    %3715 = vmatpush1.msra.mxu0 %v3600
    %3716 = vmatprep.subr.mxu0 0.0
    %3717 = vmatpush1.msra.mxu0 %v3599
    %3718 = vmatprep.subr.mxu0 0.0
    %3719 = vmatpush1.msra.mxu0 %v3598
    %3720 = vmatprep.subr.mxu0 0.0
    %3721 = vmatpush1.msra.mxu0 %v3597
    %3722 = vmatprep.subr.mxu0 0.0
    %3723 = vmatpush1.msra.mxu0 %v3596
    %3724 = vmatprep.subr.mxu0 0.0
    %3725 = vmatpush1.msra.mxu0 %v3595
    %3726 = vmatprep.subr.mxu0 0.0
    %3727 = vmatpush1.msra.mxu0 %v3594
    %3728 = vmatprep.subr.mxu0 0.0
    %3729 = vmatpush1.msra.mxu0 %v3593
    %3730 = vmatprep.subr.mxu0 0.0
    %3731 = vmatpush1.msra.mxu0 %v3592
    %3732 = vmatprep.subr.mxu0 0.0
    %3733 = vmatpush1.msra.mxu0 %v3591
    %3734 = vmatprep.subr.mxu0 0.0
    %3735 = vmatpush1.msra.mxu0 %v3590
    %3736 = vmatprep.subr.mxu0 0.0
    %3737 = vmatpush2.msra.mxu0 %v3621
    %3738 = vmatprep.subr.mxu0 0.0
    %3739 = vmatpush2.msra.mxu0 %v3620
    %3740 = vmatprep.subr.mxu0 0.0
    %3741 = vmatpush2.msra.mxu0 %v3619
    %3742 = vmatprep.subr.mxu0 0.0
    %3743 = vmatpush2.msra.mxu0 %v3618
    %3744 = vmatprep.subr.mxu0 0.0
    %3745 = vmatpush2.msra.mxu0 %v3617
    %3746 = vmatprep.subr.mxu0 0.0
    %3747 = vmatpush2.msra.mxu0 %v3616
    %3748 = vmatprep.subr.mxu0 0.0
    %3749 = vmatpush2.msra.mxu0 %v3615
    %3750 = vmatprep.subr.mxu0 0.0
    %3751 = vmatpush2.msra.mxu0 %v3614
    %3752 = vmatprep.subr.mxu0 0.0
    %3753 = vmatpush2.msra.mxu0 %v3613
    %3754 = vmatprep.subr.mxu0 0.0
    %3755 = vmatpush2.msra.mxu0 %v3612
    %3756 = vmatprep.subr.mxu0 0.0
    %3757 = vmatpush2.msra.mxu0 %v3611
    %3758 = vmatprep.subr.mxu0 0.0
    %3759 = vmatpush2.msra.mxu0 %v3610
    %3760 = vmatprep.subr.mxu0 0.0
    %3761 = vmatpush2.msra.mxu0 %v3609
    %3762 = vmatprep.subr.mxu0 0.0
    %3763 = vmatpush2.msra.mxu0 %v3608
    %3764 = vmatprep.subr.mxu0 0.0
    %3765 = vmatpush2.msra.mxu0 %v3607
    %3766 = vmatprep.subr.mxu0 0.0
    %3767 = vmatpush2.msra.mxu0 %v3606
    %3768 = vmatprep.mubr.f32.mxu0 %v3553
    %3769 = vmatmul.mubr.f32.gmra.mxu0 %v3552
    %v3770 = vpop.f32.mrf.mxu0
    %v3771 = vadd.f32 %v3696, %v3770
    %v3772 = vpop.f32.mrf.mxu0
    %3773 = vmatprep.mubr.f32.mxu0 %v3557
    %3774 = vmatmul.mubr.f32.gmra.mxu0 %v3556
    %v3775 = vpop.f32.mrf.mxu0
    %v3776 = vadd.f32 %v3701, %v3775
    %v3777 = vpop.f32.mrf.mxu0
    %3778 = vdwg.mxu0
    %v3779 = vmax.f32 %v3771, 0.0
    %v3780 = vmax.f32 %v3776, 0.0
    %v3781 = vld [vmem:[#allocation10] sm:$0x1]
    %v3782 = vld [vmem:[#allocation2] sm:$0x1]
    %3784 = vset.pattern.permute.xlu0 0
    %3785 = vperm.xlu0 %3784, %v3782
    %v3786 = vpop.permute.xlu0 %3785
    %v3788 = vlaneseq
    %v3789 = vshrl.u32 %v3788, 7
    %v3790 = vsub.s32 0, %v3789
    %v3791 = vrot.slane %v3786, %v3790
    %3792 = vmatprep.subr.mxu0 0.0
    %3793 = vmatpush1.xpose.msra.mxu0 0.0
    %3794 = vmatprep.subr.mxu0 0.0
    %3795 = vmatpush1.xpose.msra.mxu0 0.0
    %3796 = vmatprep.subr.mxu0 0.0
    %3797 = vmatpush1.xpose.msra.mxu0 0.0
    %3798 = vmatprep.subr.mxu0 0.0
    %3799 = vmatpush1.xpose.msra.mxu0 0.0
    %3800 = vmatprep.subr.mxu0 0.0
    %3801 = vmatpush1.xpose.msra.mxu0 0.0
    %3802 = vmatprep.subr.mxu0 0.0
    %3803 = vmatpush1.xpose.msra.mxu0 0.0
    %3804 = vmatprep.subr.mxu0 0.0
    %3805 = vmatpush1.xpose.msra.mxu0 0.0
    %3806 = vmatprep.subr.mxu0 0.0
    %3807 = vmatpush1.xpose.msra.mxu0 0.0
    %3808 = vmatprep.subr.mxu0 0.0
    %3809 = vmatpush1.xpose.msra.mxu0 0.0
    %3810 = vmatprep.subr.mxu0 0.0
    %3811 = vmatpush1.xpose.msra.mxu0 0.0
    %3812 = vmatprep.subr.mxu0 0.0
    %3813 = vmatpush1.xpose.msra.mxu0 0.0
    %3814 = vmatprep.subr.mxu0 0.0
    %3815 = vmatpush1.xpose.msra.mxu0 0.0
    %3816 = vmatprep.subr.mxu0 0.0
    %3817 = vmatpush1.xpose.msra.mxu0 0.0
    %3818 = vmatprep.subr.mxu0 0.0
    %3819 = vmatpush1.xpose.msra.mxu0 0.0
    %3820 = vmatprep.subr.mxu0 0.0
    %3821 = vmatpush1.xpose.msra.mxu0 %v3780
    %3822 = vmatprep.subr.mxu0 0.0
    %3823 = vmatpush1.xpose.msra.mxu0 %v3779
    %3824 = vmatprep.subr.mxu0 0.0
    %3825 = vmatpush2.xpose.msra.mxu0 0.0
    %3826 = vmatprep.subr.mxu0 0.0
    %3827 = vmatpush2.xpose.msra.mxu0 0.0
    %3828 = vmatprep.subr.mxu0 0.0
    %3829 = vmatpush2.xpose.msra.mxu0 0.0
    %3830 = vmatprep.subr.mxu0 0.0
    %3831 = vmatpush2.xpose.msra.mxu0 0.0
    %3832 = vmatprep.subr.mxu0 0.0
    %3833 = vmatpush2.xpose.msra.mxu0 0.0
    %3834 = vmatprep.subr.mxu0 0.0
    %3835 = vmatpush2.xpose.msra.mxu0 0.0
    %3836 = vmatprep.subr.mxu0 0.0
    %3837 = vmatpush2.xpose.msra.mxu0 0.0
    %3838 = vmatprep.subr.mxu0 0.0
    %3839 = vmatpush2.xpose.msra.mxu0 0.0
    %3840 = vmatprep.subr.mxu0 0.0
    %3841 = vmatpush2.xpose.msra.mxu0 0.0
    %3842 = vmatprep.subr.mxu0 0.0
    %3843 = vmatpush2.xpose.msra.mxu0 0.0
    %3844 = vmatprep.subr.mxu0 0.0
    %3845 = vmatpush2.xpose.msra.mxu0 0.0
    %3846 = vmatprep.subr.mxu0 0.0
    %3847 = vmatpush2.xpose.msra.mxu0 0.0
    %3848 = vmatprep.subr.mxu0 0.0
    %3849 = vmatpush2.xpose.msra.mxu0 0.0
    %3850 = vmatprep.subr.mxu0 0.0
    %3851 = vmatpush2.xpose.msra.mxu0 0.0
    %3852 = vmatprep.subr.mxu0 0.0
    %3853 = vmatpush2.xpose.msra.mxu0 0.0
    %3854 = vmatprep.subr.mxu0 0.0
    %3855 = vmatpush2.xpose.msra.mxu0 0.0
    %3856 = vmatprep.mubr.f32.mxu0 0.0
    %3857 = vmatmul.mubr.f32.gmra.mxu0 %v3781
    %v3858 = vpop.f32.mrf.mxu0
    %v3859 = vadd.f32 %v3791, %v3858
    %v3860 = vpop.f32.mrf.mxu0
    %3861 = vdwg.mxu0
    %vm3862 = vcmask 122880
    %3863 = vst.msk [vmem:[%s12] sm:$0x1] %vm3862, %v3859
    // Predicated region
    $region70: #{sp_forward.1} parent=1 // pred_check
      _
    $region71: #{sp_forward.1} parent=1 // pred_check_branch
      %3865 = sbr.rel (0) target = $region73
    $region72: #{sp_forward.1} parent=1 // pred_region
      _
    $region73: #{sp_forward.1} parent=1 // pred_fallthru
      _
    // Predicated region
    $region74: #{sp_forward.1} parent=1 // pred_check
      _
    $region75: #{sp_forward.1} parent=1 // pred_check_branch
      %3867 = sbr.rel (0) target = $region77
    $region76: #{sp_forward.1} parent=1 // pred_region
      _
    $region77: #{sp_forward.1} parent=1 // pred_fallthru
      _
    %3868 = vsyncpa [#allocation4], 1
    %3869 = vsyncpa [#allocation6], 1
    %3870 = vsyncpa [#allocation9], 1

</llo_original>
